<compile_context>
chip_gen: v7x
topology: tpu7x:2x2x1
jax: 0.10.0
libtpu: 0.0.40
codegen_flags: <defaults>
</compile_context>

<pallas_src>
import functools

import jax
import jax.numpy as jnp
from jax.experimental import pallas as pl
from jax.experimental.pallas import tpu as pltpu

# ----------------------------- configuration --------------------------------
C_FEAT = 32        # backbone.num_channels (1024 in the real model)
HIDDEN = 32        # featurefusion_network.d_model (256 in the real model)
NUM_CLASSES = 1    # single-object tracking
IDX_GROUPS = [[0, 1, 2], [3, 4, 5], [6, 7, 8], [9, 10, 11], [12, 13, 14]]

D_PAD = 128        # lane-dense projected-feature width
HEAD_PAD = 64      # per-head padded hidden width (2*HEAD_PAD = 128 fused lanes)
OUT_PAD = 128      # lane-dense head-output width
ROW_TILE = 256     # rows (tokens) per grid step (raise to 512-1024 at real-model sizes)


def _round_up(x, m):
    return ((x + m - 1) // m) * m


def _vmem_budget(const_arrays, tile_bytes):
    """Explicit VMEM limit: double-buffered constants + tiles + headroom."""
    const_bytes = sum(int(a.size) * a.dtype.itemsize for a in const_arrays)
    need = 2 * (const_bytes + tile_bytes) + (4 << 20)
    return int(min(max(need, 16 << 20), 64 << 20))


# ------------------------------ Pallas kernels -------------------------------
def _prefusion_kernel(x_ref, bbw_ref, bbb_ref, avg_ref, decw_ref, decb_ref,
                      projw_ref, projb_ref, o_ref, *, eps):
    """Fused: backbone(5 groups) -> encoder(identity) -> avg + decoder ->
    out_norm -> relu -> 0.3*x + residual -> input_proj (output padded to 128 lanes).

    The decoder weights (decoder_f_x vs decoder_f_z) are branch-specific and are
    selected per grid block by the BlockSpec index_map."""
    x = x_ref[...].astype(jnp.bfloat16)                                   # (TM, 15)
    # TODO(synk): backbone is an external module; stand-in = per-pixel 3->C linear
    # applied to each of the 5 channel groups (folded into one block-diag 15->5C matmul).
    feat5 = jnp.dot(x, bbw_ref[...], preferred_element_type=jnp.float32) + bbb_ref[...]
    feat5 = jnp.maximum(feat5, 0.0)                                       # (TM, 5C) f32
    feat5_b = feat5.astype(jnp.bfloat16)
    # TODO(synk): encoder_f_x / encoder_f_z are external modules; stand-in = identity.
    # src_*_2_f = mean of the 5 encoder chunks (block-identity/5 matrix).
    avg = jnp.dot(feat5_b, avg_ref[...], preferred_element_type=jnp.float32)   # (TM, C)
    # TODO(synk): decoder_f_* architecture unknown; stand-in = per-token linear 5C->C.
    dec = (jnp.dot(feat5_b, decw_ref[...], preferred_element_type=jnp.float32)
           + decb_ref[...])                                               # (TM, C)
    # TODO(synk): out_norm_f_* is external; stand-in = LayerNorm over the channel dim
    # (weight=1, bias=0), then relu, then 0.3*x + residual (as in the reference).
    mu = jnp.mean(dec, axis=-1, keepdims=True)
    var = jnp.mean((dec - mu) ** 2, axis=-1, keepdims=True)
    dn = (dec - mu) * jax.lax.rsqrt(var + eps)
    src = 0.3 * jnp.maximum(dn, 0.0) + avg                                # (TM, C)
    # input_proj: 1x1 Conv2d(C -> hidden); weight zero-padded to 128 output lanes so
    # the store is a full, unmasked lane-dense vreg store.
    o_ref[...] = (jnp.dot(src.astype(jnp.bfloat16), projw_ref[...],
                          preferred_element_type=jnp.float32)
                  + projb_ref[...]).astype(o_ref.dtype)


def _fusion_heads_kernel(x_ref, pos_ref, ctx_ref,
                         wf_ref, bf_ref, w1_ref, b1_ref, w2_ref, b2_ref,
                         w3_ref, b3_ref, o_ref):
    """Fused: (proj + pos + template-context) -> feature-fusion stand-in
    (linear+relu) -> fused class/bbox 3-layer MLPs.  The two heads share one set
    of wide matmuls (concat layer-1, block-diag layer-2, stacked layer-3); output
    is one lane-dense (TM, 128) slab: cols [0:2)=logits, [2:6)=raw boxes."""
    # TODO(synk): featurefusion_network (cross-attention transformer) is external;
    # stand-in mixes search tokens + pos enc + pooled template context, then linear+relu.
    x = (x_ref[...].astype(jnp.float32) + pos_ref[...]
         + ctx_ref[...]).astype(jnp.bfloat16)                             # (TM, 128)
    h = jnp.maximum(jnp.dot(x, wf_ref[...], preferred_element_type=jnp.float32)
                    + bf_ref[...], 0.0)                                   # (TM, 64)
    h1 = jnp.maximum(jnp.dot(h.astype(jnp.bfloat16), w1_ref[...],
                             preferred_element_type=jnp.float32) + b1_ref[...], 0.0)
    h2 = jnp.maximum(jnp.dot(h1.astype(jnp.bfloat16), w2_ref[...],
                             preferred_element_type=jnp.float32) + b2_ref[...], 0.0)
    o_ref[...] = (jnp.dot(h2.astype(jnp.bfloat16), w3_ref[...],
                          preferred_element_type=jnp.float32)
                  + b3_ref[...]).astype(o_ref.dtype)                      # (TM, 128)


# ------------------------------ kernel wrappers -------------------------------
def prefusion_both(tok_s, tok_t, bb_w, bb_b, avg_mat, dec_w, dec_b,
                   proj_w, proj_b, row_tile=ROW_TILE):
    """Both branches in ONE pallas_call.  Returns (proj_search, proj_template)."""
    Ms, K = tok_s.shape
    Mt, _ = tok_t.shape
    TM = row_tile
    nbs = pl.cdiv(Ms, TM)
    nbt = pl.cdiv(Mt, TM)
    Msp, Mtp = nbs * TM, nbt * TM
    tokens = jnp.concatenate(
        [jnp.pad(tok_s, ((0, Msp - Ms), (0, 0))),
         jnp.pad(tok_t, ((0, Mtp - Mt), (0, 0)))], axis=0)                # (Msp+Mtp, 15)
    K5C, C = dec_w.shape[1], dec_w.shape[2]
    DP = proj_w.shape[1]
    nb = nbs + nbt

    def branch(i):                       # block i < nbs -> search (dec_x), else template (dec_z)
        return (i >= nbs).astype(jnp.int32)

    const = lambda s: pl.BlockSpec(s, lambda i: (0,) * len(s))
    tile_bytes = TM * (K * 4 + DP * 2) * 2
    out = pl.pallas_call(
        functools.partial(_prefusion_kernel, eps=1e-5),
        out_shape=jax.ShapeDtypeStruct((Msp + Mtp, DP), jnp.bfloat16),
        grid=(nb,),
        in_specs=[
            pl.BlockSpec((TM, K), lambda i: (i, 0)),
            const(bb_w.shape), const(bb_b.shape), const(avg_mat.shape),
            pl.BlockSpec((None, K5C, C), lambda i: (branch(i), 0, 0)),
            pl.BlockSpec((None, 1, C), lambda i: (branch(i), 0, 0)),
            const(proj_w.shape), const(proj_b.shape),
        ],
        out_specs=pl.BlockSpec((TM, DP), lambda i: (i, 0)),
        compiler_params=pltpu.CompilerParams(
            dimension_semantics=("parallel",),
            vmem_limit_bytes=_vmem_budget(
                [bb_w, bb_b, avg_mat, dec_w, dec_b, proj_w, proj_b], tile_bytes)),
    )(tokens, bb_w, bb_b, avg_mat, dec_w, dec_b, proj_w, proj_b)
    return out[:Ms], out[Msp:Msp + Mt]


def fusion_and_heads(x, pos, ctx, wf, bf, w1, b1, w2, b2, w3, b3, row_tile=ROW_TILE):
    """x/pos: (B, Ns, D_PAD); ctx: (B, 1, D_PAD) -> lane-dense (B, Ns_pad, OUT_PAD)."""
    B, Ns, DP = x.shape
    TM = min(row_tile, _round_up(Ns, 8))
    nb = pl.cdiv(Ns, TM)
    Nsp = nb * TM
    x_p = jnp.pad(x, ((0, 0), (0, Nsp - Ns), (0, 0)))
    pos_p = jnp.pad(pos, ((0, 0), (0, Nsp - Ns), (0, 0)))

    const = lambda s: pl.BlockSpec(s, lambda b, i: (0,) * len(s))
    tile_bytes = TM * DP * (2 + 4) + TM * OUT_PAD * 4 + DP * 4
    return pl.pallas_call(
        _fusion_heads_kernel,
        out_shape=jax.ShapeDtypeStruct((B, Nsp, OUT_PAD), jnp.float32),
        grid=(B, nb),
        in_specs=[
            pl.BlockSpec((None, TM, DP), lambda b, i: (b, i, 0)),
            pl.BlockSpec((None, TM, DP), lambda b, i: (b, i, 0)),
            pl.BlockSpec((None, 1, DP), lambda b, i: (b, 0, 0)),
            const(wf.shape), const(bf.shape),
            const(w1.shape), const(b1.shape),
            const(w2.shape), const(b2.shape),
            const(w3.shape), const(b3.shape),
        ],
        out_specs=pl.BlockSpec((None, TM, OUT_PAD), lambda b, i: (b, i, 0)),
        compiler_params=pltpu.CompilerParams(
            dimension_semantics=("parallel", "parallel"),
            vmem_limit_bytes=_vmem_budget(
                [wf, bf, w1, b1, w2, b2, w3, b3], tile_bytes)),
    )(x_p, pos_p, ctx, wf, bf, w1, b1, w2, b2, w3, b3)


# ------------------------------ parameter init -------------------------------
def trunc_normal(key, shape, std=0.02):
    return std * jax.random.truncated_normal(key, -2.0, 2.0, shape, jnp.float32)


def init_params(key):
    ks = jax.random.split(key, 11)
    D, C = HIDDEN, C_FEAT
    p = {}
    # TODO(synk): backbone is an external module; stand-in = per-pixel 1x1 conv 3->C.
    p["backbone_w"] = trunc_normal(ks[0], (3, C))
    p["backbone_b"] = jnp.zeros((1, C), jnp.float32)
    # TODO(synk): decoder_f_z / decoder_f_x real architecture unknown;
    # stand-in = per-position channel-mixing linear 5C -> C.
    p["dec_z_w"] = trunc_normal(ks[1], (5 * C, C))
    p["dec_z_b"] = jnp.zeros((1, C), jnp.float32)
    p["dec_x_w"] = trunc_normal(ks[2], (5 * C, C))
    p["dec_x_b"] = jnp.zeros((1, C), jnp.float32)
    # input_proj: Conv2d(C_FEAT, HIDDEN, kernel_size=1) == per-pixel linear.
    p["proj_w"] = trunc_normal(ks[3], (C, D))
    p["proj_b"] = jnp.zeros((1, D), jnp.float32)
    # TODO(synk): featurefusion_network (transformer) is external;
    # stand-in = single linear+ReLU over the hidden dim.
    p["fusion_w"] = trunc_normal(ks[4], (D, D))
    p["fusion_b"] = jnp.zeros((1, D), jnp.float32)
    # class_embed / bbox_embed: MLP(hidden, hidden, out, 3)
    p["cls_w"] = [trunc_normal(ks[5], (D, D)), trunc_normal(ks[6], (D, D)),
                  trunc_normal(ks[7], (D, NUM_CLASSES + 1))]
    p["cls_b"] = [jnp.zeros((1, D), jnp.float32), jnp.zeros((1, D), jnp.float32),
                  jnp.zeros((1, NUM_CLASSES + 1), jnp.float32)]
    p["box_w"] = [trunc_normal(ks[8], (D, D)), trunc_normal(ks[9], (D, D)),
                  trunc_normal(ks[10], (D, 4))]
    p["box_b"] = [jnp.zeros((1, D), jnp.float32), jnp.zeros((1, D), jnp.float32),
                  jnp.zeros((1, 4), jnp.float32)]
    return p


# ------------------------------- forward glue ---------------------------------
def _block_diag5(w):
    """(3, C) -> block-diagonal (15, 5C): one 3->C projection per channel group."""
    z = jnp.zeros_like(w)
    rows = [jnp.concatenate([w if j == g else z for j in range(5)], axis=1)
            for g in range(5)]
    return jnp.concatenate(rows, axis=0)


def _pos_tokens(B, H, W, D):
    # TODO(synk): backbone positional encoder is external; deterministic sinusoid,
    # restricted to the first HIDDEN lanes (padded lanes stay exactly zero).
    yy = jnp.arange(H, dtype=jnp.float32)[:, None] / max(H, 1)
    xx = jnp.arange(W, dtype=jnp.float32)[None, :] / max(W, 1)
    ch = jnp.arange(D, dtype=jnp.float32)
    pos = jnp.sin((yy + xx).reshape(H * W, 1) * (ch[None, :] + 1.0))   # (HW, D)
    return jnp.broadcast_to(pos[None], (B, H * W, D))


def transt_forward(search, template, p):
    """search: [B, 15, Hs, Ws], template: [B, 15, Hz, Wz]  (NCHW, float32)."""
    B, _, Hs, Ws = search.shape
    _, _, Hz, Wz = template.shape
    Ns, Nz = Hs * Ws, Hz * Wz
    C, D = C_FEAT, HIDDEN
    NC1 = NUM_CLASSES + 1
    DH = HEAD_PAD
    bf16 = jnp.bfloat16

    # ---- derived / lane-dense weight layouts (trace-time glue, bf16 for the MXU) ----
    bb_w15 = _block_diag5(p["backbone_w"]).astype(bf16)                    # (15, 5C)
    bb_b5 = jnp.tile(p["backbone_b"], (1, 5))                              # (1, 5C) f32
    avg_mat = jnp.tile(jnp.eye(C, dtype=jnp.float32) / 5.0, (5, 1)).astype(bf16)  # (5C, C)
    dec_w = jnp.stack([p["dec_x_w"], p["dec_z_w"]]).astype(bf16)           # (2, 5C, C)
    dec_b = jnp.stack([p["dec_x_b"], p["dec_z_b"]])                        # (2, 1, C) f32
    proj_w = jnp.pad(p["proj_w"], ((0, 0), (0, D_PAD - D))).astype(bf16)   # (C, 128)
    proj_b = jnp.pad(p["proj_b"], ((0, 0), (0, D_PAD - D)))                # (1, 128) f32

    # fused feature-fusion + head weights: class head in lanes [0:D), bbox head in
    # lanes [DH:DH+D); final layer packs logits into cols [0:NC1), boxes [NC1:NC1+4).
    wf = (jnp.zeros((D_PAD, DH), jnp.float32)
          .at[:D, :D].set(p["fusion_w"])).astype(bf16)                     # (128, 64)
    bf = jnp.zeros((1, DH), jnp.float32).at[:, :D].set(p["fusion_b"])
    w1 = (jnp.zeros((DH, 2 * DH), jnp.float32)
          .at[:D, :D].set(p["cls_w"][0])
          .at[:D, DH:DH + D].set(p["box_w"][0])).astype(bf16)              # (64, 128)
    b1 = (jnp.zeros((1, 2 * DH), jnp.float32)
          .at[:, :D].set(p["cls_b"][0]).at[:, DH:DH + D].set(p["box_b"][0]))
    w2 = (jnp.zeros((2 * DH, 2 * DH), jnp.float32)
          .at[:D, :D].set(p["cls_w"][1])
          .at[DH:DH + D, DH:DH + D].set(p["box_w"][1])).astype(bf16)       # (128, 128)
    b2 = (jnp.zeros((1, 2 * DH), jnp.float32)
          .at[:, :D].set(p["cls_b"][1]).at[:, DH:DH + D].set(p["box_b"][1]))
    w3 = (jnp.zeros((2 * DH, OUT_PAD), jnp.float32)
          .at[:D, :NC1].set(p["cls_w"][2])
          .at[DH:DH + D, NC1:NC1 + 4].set(p["box_w"][2])).astype(bf16)     # (128, 128)
    b3 = (jnp.zeros((1, OUT_PAD), jnp.float32)
          .at[:, :NC1].set(p["cls_b"][2]).at[:, NC1:NC1 + 4].set(p["box_b"][2]))

    # nested_tensor_from_tensor_2 produces all-zero padding masks; the stand-in
    # featurefusion network (external module) ignores them.

    # canonical tokens-by-channels layout: (B*H*W, 15); group g -> lanes [3g, 3g+3)
    def to_tokens(img):
        Bx, Cx, H, W = img.shape
        return jnp.transpose(img, (0, 2, 3, 1)).reshape(Bx * H * W, Cx)

    search_tok = to_tokens(search)        # (B*Ns, 15)
    template_tok = to_tokens(template)    # (B*Nz, 15)

    # fused pre-fusion chain for BOTH branches in one pallas_call (branch-specific
    # decoder weights selected per block; shared input_proj weights).
    proj_s, proj_t = prefusion_both(search_tok, template_tok, bb_w15, bb_b5, avg_mat,
                                    dec_w, dec_b, proj_w, proj_b)

    # TODO(synk): featurefusion_network (cross-attention transformer) is external;
    # stand-in mixes search tokens + pos enc + mean-pooled template context.
    pos_s = jnp.pad(_pos_tokens(B, Hs, Ws, D), ((0, 0), (0, 0), (0, D_PAD - D)))  # (B, Ns, 128)
    ctx = jnp.mean(proj_t.reshape(B, Nz, D_PAD).astype(jnp.float32),
                   axis=1, keepdims=True)                                  # (B, 1, 128)

    head = fusion_and_heads(proj_s.reshape(B, Ns, D_PAD), pos_s, ctx,
                            wf, bf, w1, b1, w2, b2, w3, b3)                # (B, Ns_pad, 128)

    pred_logits = head[:, :Ns, :NC1]
    pred_boxes = jax.nn.sigmoid(head[:, :Ns, NC1:NC1 + 4])
    return {"pred_logits": pred_logits, "pred_boxes": pred_boxes}


# ---------------------------------- main --------------------------------------
if __name__ == "__main__":
    key = jax.random.PRNGKey(0)
    k_p, k_s, k_t = jax.random.split(key, 3)
    params = init_params(k_p)

    B = 2
    search = jax.random.normal(k_s, (B, 15, 16, 16), jnp.float32)    # [B, 15, Hs, Ws]
    template = jax.random.normal(k_t, (B, 15, 8, 8), jnp.float32)    # [B, 15, Hz, Wz]

    fwd = jax.jit(transt_forward)
    out = fwd(search, template, params)
    jax.block_until_ready(out)

    assert out["pred_logits"].shape == (B, 16 * 16, NUM_CLASSES + 1)
    assert out["pred_boxes"].shape == (B, 16 * 16, 4)
    assert bool(jnp.all(jnp.isfinite(out["pred_logits"])))
    assert bool(jnp.all(jnp.isfinite(out["pred_boxes"])))
    assert bool(jnp.all((out["pred_boxes"] >= 0.0) & (out["pred_boxes"] <= 1.0)))
    print("KERNEL_OK")
</pallas_src>

<mosaic_0001>
module attributes {stable_mosaic.version = 11 : i64} {
  func.func @_prefusion_kernel(%arg0: i32, %arg1: memref<256x15xf32, #tpu.memory_space<vmem>>, %arg2: memref<15x160xbf16, #tpu.memory_space<vmem>>, %arg3: memref<1x160xf32, #tpu.memory_space<vmem>>, %arg4: memref<160x32xbf16, #tpu.memory_space<vmem>>, %arg5: memref<1x160x32xbf16, #tpu.memory_space<vmem>>, %arg6: memref<1x1x32xf32, #tpu.memory_space<vmem>>, %arg7: memref<32x128xbf16, #tpu.memory_space<vmem>>, %arg8: memref<1x128xf32, #tpu.memory_space<vmem>>, %arg9: memref<256x128xbf16, #tpu.memory_space<vmem>>) attributes {dimension_semantics = [#tpu.dimension_semantics<parallel>], iteration_bounds = array<i64: 3>, scalar_prefetch = 0 : i64, scratch_operands = 0 : i64, tpu.core_type = #tpu.core_type<tc>, window_params = [{transform_indices = @transform_0, window_bounds = array<i64: 256, 15>}, {pipeline_mode = #tpu.pipeline_mode<synchronous>, transform_indices = @transform_1, window_bounds = array<i64: 15, 160>}, {pipeline_mode = #tpu.pipeline_mode<synchronous>, transform_indices = @transform_2, window_bounds = array<i64: 1, 160>}, {pipeline_mode = #tpu.pipeline_mode<synchronous>, transform_indices = @transform_3, window_bounds = array<i64: 160, 32>}, {transform_indices = @transform_4, window_bounds = array<i64: 1, 160, 32>}, {transform_indices = @transform_5, window_bounds = array<i64: 1, 1, 32>}, {pipeline_mode = #tpu.pipeline_mode<synchronous>, transform_indices = @transform_6, window_bounds = array<i64: 32, 128>}, {pipeline_mode = #tpu.pipeline_mode<synchronous>, transform_indices = @transform_7, window_bounds = array<i64: 1, 128>}, {transform_indices = @transform_8, window_bounds = array<i64: 256, 128>}]} {
    %c0 = arith.constant 0 : index
    %c0_0 = arith.constant 0 : index
    %0 = vector.load %arg1[%c0, %c0_0] : memref<256x15xf32, #tpu.memory_space<vmem>>, vector<256x15xf32>
    %1 = arith.truncf %0 : vector<256x15xf32> to vector<256x15xbf16>
    %c0_1 = arith.constant 0 : index
    %c0_2 = arith.constant 0 : index
    %2 = vector.load %arg2[%c0_1, %c0_2] : memref<15x160xbf16, #tpu.memory_space<vmem>>, vector<15x160xbf16>
    %cst = arith.constant dense<0.000000e+00> : vector<256x160xf32>
    %3 = tpu.matmul %1, %2, %cst {dimension_numbers = #tpu.dot_dimension_numbers<[1], [0], [0], [1], [0, 0, 1, 1], [], []>} : vector<256x15xbf16>, vector<15x160xbf16>, vector<256x160xf32> -> vector<256x160xf32>
    %c0_3 = arith.constant 0 : index
    %c0_4 = arith.constant 0 : index
    %4 = vector.load %arg3[%c0_3, %c0_4] : memref<1x160xf32, #tpu.memory_space<vmem>>, vector<1x160xf32>
    %5 = vector.broadcast %4 : vector<1x160xf32> to vector<256x160xf32>
    %6 = arith.addf %3, %5 : vector<256x160xf32>
    %cst_5 = arith.constant 0.000000e+00 : f32
    %7 = vector.broadcast %cst_5 : f32 to vector<256x160xf32>
    %8 = arith.maximumf %6, %7 : vector<256x160xf32>
    %9 = arith.truncf %8 : vector<256x160xf32> to vector<256x160xbf16>
    %c0_6 = arith.constant 0 : index
    %c0_7 = arith.constant 0 : index
    %10 = vector.load %arg4[%c0_6, %c0_7] : memref<160x32xbf16, #tpu.memory_space<vmem>>, vector<160x32xbf16>
    %cst_8 = arith.constant dense<0.000000e+00> : vector<256x32xf32>
    %11 = tpu.matmul %9, %10, %cst_8 {dimension_numbers = #tpu.dot_dimension_numbers<[1], [0], [0], [1], [0, 0, 1, 1], [], []>} : vector<256x160xbf16>, vector<160x32xbf16>, vector<256x32xf32> -> vector<256x32xf32>
    %c0_9 = arith.constant 0 : index
    %c0_10 = arith.constant 0 : index
    %c0_11 = arith.constant 0 : index
    %12 = vector.load %arg5[%c0_9, %c0_10, %c0_11] : memref<1x160x32xbf16, #tpu.memory_space<vmem>>, vector<1x160x32xbf16>
    %13 = vector.shape_cast %12 : vector<1x160x32xbf16> to vector<160x32xbf16>
    %cst_12 = arith.constant dense<0.000000e+00> : vector<256x32xf32>
    %14 = tpu.matmul %9, %13, %cst_12 {dimension_numbers = #tpu.dot_dimension_numbers<[1], [0], [0], [1], [0, 0, 1, 1], [], []>} : vector<256x160xbf16>, vector<160x32xbf16>, vector<256x32xf32> -> vector<256x32xf32>
    %c0_13 = arith.constant 0 : index
    %c0_14 = arith.constant 0 : index
    %c0_15 = arith.constant 0 : index
    %15 = vector.load %arg6[%c0_13, %c0_14, %c0_15] : memref<1x1x32xf32, #tpu.memory_space<vmem>>, vector<1x1x32xf32>
    %16 = vector.shape_cast %15 : vector<1x1x32xf32> to vector<1x32xf32>
    %17 = vector.broadcast %16 : vector<1x32xf32> to vector<256x32xf32>
    %18 = arith.addf %14, %17 : vector<256x32xf32>
    %cst_16 = arith.constant dense<0.000000e+00> : vector<256xf32>
    %19 = vector.multi_reduction <add>, %18, %cst_16 [1] : vector<256x32xf32> to vector<256xf32>
    %20 = vector.shape_cast %19 : vector<256xf32> to vector<256x1xf32>
    %cst_17 = arith.constant 3.200000e+01 : f32
    %21 = vector.broadcast %cst_17 : f32 to vector<256x1xf32>
    %22 = arith.divf %20, %21 : vector<256x1xf32>
    %23 = vector.broadcast %22 : vector<256x1xf32> to vector<256x32xf32>
    %24 = arith.subf %18, %23 : vector<256x32xf32>
    %25 = arith.mulf %24, %24 : vector<256x32xf32>
    %cst_18 = arith.constant dense<0.000000e+00> : vector<256xf32>
    %26 = vector.multi_reduction <add>, %25, %cst_18 [1] : vector<256x32xf32> to vector<256xf32>
    %27 = vector.shape_cast %26 : vector<256xf32> to vector<256x1xf32>
    %cst_19 = arith.constant 3.200000e+01 : f32
    %28 = vector.broadcast %cst_19 : f32 to vector<256x1xf32>
    %29 = arith.divf %27, %28 : vector<256x1xf32>
    %30 = vector.broadcast %22 : vector<256x1xf32> to vector<256x32xf32>
    %31 = arith.subf %18, %30 : vector<256x32xf32>
    %cst_20 = arith.constant 9.99999974E-6 : f32
    %32 = vector.broadcast %cst_20 : f32 to vector<256x1xf32>
    %33 = arith.addf %29, %32 : vector<256x1xf32>
    %34 = math.rsqrt %33 : vector<256x1xf32>
    %35 = vector.broadcast %34 : vector<256x1xf32> to vector<256x32xf32>
    %36 = arith.mulf %31, %35 : vector<256x32xf32>
    %cst_21 = arith.constant 0.000000e+00 : f32
    %37 = vector.broadcast %cst_21 : f32 to vector<256x32xf32>
    %38 = arith.maximumf %36, %37 : vector<256x32xf32>
    %cst_22 = arith.constant 3.000000e-01 : f32
    %39 = vector.broadcast %cst_22 : f32 to vector<256x32xf32>
    %40 = arith.mulf %39, %38 : vector<256x32xf32>
    %41 = arith.addf %40, %11 : vector<256x32xf32>
    %42 = arith.truncf %41 : vector<256x32xf32> to vector<256x32xbf16>
    %c0_23 = arith.constant 0 : index
    %c0_24 = arith.constant 0 : index
    %43 = vector.load %arg7[%c0_23, %c0_24] : memref<32x128xbf16, #tpu.memory_space<vmem>>, vector<32x128xbf16>
    %cst_25 = arith.constant dense<0.000000e+00> : vector<256x128xf32>
    %44 = tpu.matmul %42, %43, %cst_25 {dimension_numbers = #tpu.dot_dimension_numbers<[1], [0], [0], [1], [0, 0, 1, 1], [], []>} : vector<256x32xbf16>, vector<32x128xbf16>, vector<256x128xf32> -> vector<256x128xf32>
    %c0_26 = arith.constant 0 : index
    %c0_27 = arith.constant 0 : index
    %45 = vector.load %arg8[%c0_26, %c0_27] : memref<1x128xf32, #tpu.memory_space<vmem>>, vector<1x128xf32>
    %46 = vector.broadcast %45 : vector<1x128xf32> to vector<256x128xf32>
    %47 = arith.addf %44, %46 : vector<256x128xf32>
    %48 = arith.truncf %47 : vector<256x128xf32> to vector<256x128xbf16>
    %c0_28 = arith.constant 0 : index
    %c0_29 = arith.constant 0 : index
    %49 = vector.load %arg9[%c0_28, %c0_29] : memref<256x128xbf16, #tpu.memory_space<vmem>>, vector<256x128xbf16>
    tpu.vector_store %arg9[%c0_28, %c0_29], %48 {strides = array<i32>} : memref<256x128xbf16, #tpu.memory_space<vmem>>, vector<256x128xbf16>,
    return
  }
  func.func @transform_0(%arg0: i32) -> (i32, i32) {
    %c0_i32 = arith.constant 0 : i32
    %c0_i32_0 = arith.constant 0 : i32
    return %arg0, %c0_i32 : i32, i32
  }
  func.func @transform_1(%arg0: i32) -> (i32, i32) {
    %c0_i32 = arith.constant 0 : i32
    %c0_i32_0 = arith.constant 0 : i32
    %c0_i32_1 = arith.constant 0 : i32
    return %c0_i32, %c0_i32_0 : i32, i32
  }
  func.func @transform_2(%arg0: i32) -> (i32, i32) {
    %c0_i32 = arith.constant 0 : i32
    %c0_i32_0 = arith.constant 0 : i32
    %c0_i32_1 = arith.constant 0 : i32
    return %c0_i32, %c0_i32_0 : i32, i32
  }
  func.func @transform_3(%arg0: i32) -> (i32, i32) {
    %c0_i32 = arith.constant 0 : i32
    %c0_i32_0 = arith.constant 0 : i32
    %c0_i32_1 = arith.constant 0 : i32
    return %c0_i32, %c0_i32_0 : i32, i32
  }
  func.func @transform_4(%arg0: i32) -> (i32, i32, i32) {
    %c2_i32 = arith.constant 2 : i32
    %0 = arith.cmpi sge, %arg0, %c2_i32 : i32
    %1 = arith.extui %0 : i1 to i32
    %c0_i32 = arith.constant 0 : i32
    %c0_i32_0 = arith.constant 0 : i32
    %c0_i32_1 = arith.constant 0 : i32
    return %1, %c0_i32, %c0_i32_0 : i32, i32, i32
  }
  func.func @transform_5(%arg0: i32) -> (i32, i32, i32) {
    %c2_i32 = arith.constant 2 : i32
    %0 = arith.cmpi sge, %arg0, %c2_i32 : i32
    %1 = arith.extui %0 : i1 to i32
    %c0_i32 = arith.constant 0 : i32
    %c0_i32_0 = arith.constant 0 : i32
    %c0_i32_1 = arith.constant 0 : i32
    return %1, %c0_i32, %c0_i32_0 : i32, i32, i32
  }
  func.func @transform_6(%arg0: i32) -> (i32, i32) {
    %c0_i32 = arith.constant 0 : i32
    %c0_i32_0 = arith.constant 0 : i32
    %c0_i32_1 = arith.constant 0 : i32
    return %c0_i32, %c0_i32_0 : i32, i32
  }
  func.func @transform_7(%arg0: i32) -> (i32, i32) {
    %c0_i32 = arith.constant 0 : i32
    %c0_i32_0 = arith.constant 0 : i32
    %c0_i32_1 = arith.constant 0 : i32
    return %c0_i32, %c0_i32_0 : i32, i32
  }
  func.func @transform_8(%arg0: i32) -> (i32, i32) {
    %c0_i32 = arith.constant 0 : i32
    %c0_i32_0 = arith.constant 0 : i32
    return %arg0, %c0_i32 : i32, i32
  }
}

module attributes {stable_mosaic.version = 11 : i64} {
  func.func @_fusion_heads_kernel(%arg0: i32, %arg1: i32, %arg2: memref<1x256x128xbf16, #tpu.memory_space<vmem>>, %arg3: memref<1x256x128xf32, #tpu.memory_space<vmem>>, %arg4: memref<1x1x128xf32, #tpu.memory_space<vmem>>, %arg5: memref<128x64xbf16, #tpu.memory_space<vmem>>, %arg6: memref<1x64xf32, #tpu.memory_space<vmem>>, %arg7: memref<64x128xbf16, #tpu.memory_space<vmem>>, %arg8: memref<1x128xf32, #tpu.memory_space<vmem>>, %arg9: memref<128x128xbf16, #tpu.memory_space<vmem>>, %arg10: memref<1x128xf32, #tpu.memory_space<vmem>>, %arg11: memref<128x128xbf16, #tpu.memory_space<vmem>>, %arg12: memref<1x128xf32, #tpu.memory_space<vmem>>, %arg13: memref<1x256x128xf32, #tpu.memory_space<vmem>>) attributes {dimension_semantics = [#tpu.dimension_semantics<parallel>, #tpu.dimension_semantics<parallel>], iteration_bounds = array<i64: 2, 1>, scalar_prefetch = 0 : i64, scratch_operands = 0 : i64, tpu.core_type = #tpu.core_type<tc>, window_params = [{transform_indices = @transform_0, window_bounds = array<i64: 1, 256, 128>}, {transform_indices = @transform_1, window_bounds = array<i64: 1, 256, 128>}, {transform_indices = @transform_2, window_bounds = array<i64: 1, 1, 128>}, {pipeline_mode = #tpu.pipeline_mode<synchronous>, transform_indices = @transform_3, window_bounds = array<i64: 128, 64>}, {pipeline_mode = #tpu.pipeline_mode<synchronous>, transform_indices = @transform_4, window_bounds = array<i64: 1, 64>}, {pipeline_mode = #tpu.pipeline_mode<synchronous>, transform_indices = @transform_5, window_bounds = array<i64: 64, 128>}, {pipeline_mode = #tpu.pipeline_mode<synchronous>, transform_indices = @transform_6, window_bounds = array<i64: 1, 128>}, {pipeline_mode = #tpu.pipeline_mode<synchronous>, transform_indices = @transform_7, window_bounds = array<i64: 128, 128>}, {pipeline_mode = #tpu.pipeline_mode<synchronous>, transform_indices = @transform_8, window_bounds = array<i64: 1, 128>}, {pipeline_mode = #tpu.pipeline_mode<synchronous>, transform_indices = @transform_9, window_bounds = array<i64: 128, 128>}, {pipeline_mode = #tpu.pipeline_mode<synchronous>, transform_indices = @transform_10, window_bounds = array<i64: 1, 128>}, {transform_indices = @transform_11, window_bounds = array<i64: 1, 256, 128>}]} {
    %c0 = arith.constant 0 : index
    %c0_0 = arith.constant 0 : index
    %c0_1 = arith.constant 0 : index
    %0 = vector.load %arg2[%c0, %c0_0, %c0_1] : memref<1x256x128xbf16, #tpu.memory_space<vmem>>, vector<1x256x128xbf16>
    %1 = vector.shape_cast %0 : vector<1x256x128xbf16> to vector<256x128xbf16>
    %2 = arith.extf %1 : vector<256x128xbf16> to vector<256x128xf32>
    %c0_2 = arith.constant 0 : index
    %c0_3 = arith.constant 0 : index
    %c0_4 = arith.constant 0 : index
    %3 = vector.load %arg3[%c0_2, %c0_3, %c0_4] : memref<1x256x128xf32, #tpu.memory_space<vmem>>, vector<1x256x128xf32>
    %4 = vector.shape_cast %3 : vector<1x256x128xf32> to vector<256x128xf32>
    %5 = arith.addf %2, %4 : vector<256x128xf32>
    %c0_5 = arith.constant 0 : index
    %c0_6 = arith.constant 0 : index
    %c0_7 = arith.constant 0 : index
    %6 = vector.load %arg4[%c0_5, %c0_6, %c0_7] : memref<1x1x128xf32, #tpu.memory_space<vmem>>, vector<1x1x128xf32>
    %7 = vector.shape_cast %6 : vector<1x1x128xf32> to vector<1x128xf32>
    %8 = vector.broadcast %7 : vector<1x128xf32> to vector<256x128xf32>
    %9 = arith.addf %5, %8 : vector<256x128xf32>
    %10 = arith.truncf %9 : vector<256x128xf32> to vector<256x128xbf16>
    %c0_8 = arith.constant 0 : index
    %c0_9 = arith.constant 0 : index
    %11 = vector.load %arg5[%c0_8, %c0_9] : memref<128x64xbf16, #tpu.memory_space<vmem>>, vector<128x64xbf16>
    %cst = arith.constant dense<0.000000e+00> : vector<256x64xf32>
    %12 = tpu.matmul %10, %11, %cst {dimension_numbers = #tpu.dot_dimension_numbers<[1], [0], [0], [1], [0, 0, 1, 1], [], []>} : vector<256x128xbf16>, vector<128x64xbf16>, vector<256x64xf32> -> vector<256x64xf32>
    %c0_10 = arith.constant 0 : index
    %c0_11 = arith.constant 0 : index
    %13 = vector.load %arg6[%c0_10, %c0_11] : memref<1x64xf32, #tpu.memory_space<vmem>>, vector<1x64xf32>
    %14 = vector.broadcast %13 : vector<1x64xf32> to vector<256x64xf32>
    %15 = arith.addf %12, %14 : vector<256x64xf32>
    %cst_12 = arith.constant 0.000000e+00 : f32
    %16 = vector.broadcast %cst_12 : f32 to vector<256x64xf32>
    %17 = arith.maximumf %15, %16 : vector<256x64xf32>
    %18 = arith.truncf %17 : vector<256x64xf32> to vector<256x64xbf16>
    %c0_13 = arith.constant 0 : index
    %c0_14 = arith.constant 0 : index
    %19 = vector.load %arg7[%c0_13, %c0_14] : memref<64x128xbf16, #tpu.memory_space<vmem>>, vector<64x128xbf16>
    %cst_15 = arith.constant dense<0.000000e+00> : vector<256x128xf32>
    %20 = tpu.matmul %18, %19, %cst_15 {dimension_numbers = #tpu.dot_dimension_numbers<[1], [0], [0], [1], [0, 0, 1, 1], [], []>} : vector<256x64xbf16>, vector<64x128xbf16>, vector<256x128xf32> -> vector<256x128xf32>
    %c0_16 = arith.constant 0 : index
    %c0_17 = arith.constant 0 : index
    %21 = vector.load %arg8[%c0_16, %c0_17] : memref<1x128xf32, #tpu.memory_space<vmem>>, vector<1x128xf32>
    %22 = vector.broadcast %21 : vector<1x128xf32> to vector<256x128xf32>
    %23 = arith.addf %20, %22 : vector<256x128xf32>
    %cst_18 = arith.constant 0.000000e+00 : f32
    %24 = vector.broadcast %cst_18 : f32 to vector<256x128xf32>
    %25 = arith.maximumf %23, %24 : vector<256x128xf32>
    %26 = arith.truncf %25 : vector<256x128xf32> to vector<256x128xbf16>
    %c0_19 = arith.constant 0 : index
    %c0_20 = arith.constant 0 : index
    %27 = vector.load %arg9[%c0_19, %c0_20] : memref<128x128xbf16, #tpu.memory_space<vmem>>, vector<128x128xbf16>
    %cst_21 = arith.constant dense<0.000000e+00> : vector<256x128xf32>
    %28 = tpu.matmul %26, %27, %cst_21 {dimension_numbers = #tpu.dot_dimension_numbers<[1], [0], [0], [1], [0, 0, 1, 1], [], []>} : vector<256x128xbf16>, vector<128x128xbf16>, vector<256x128xf32> -> vector<256x128xf32>
    %c0_22 = arith.constant 0 : index
    %c0_23 = arith.constant 0 : index
    %29 = vector.load %arg10[%c0_22, %c0_23] : memref<1x128xf32, #tpu.memory_space<vmem>>, vector<1x128xf32>
    %30 = vector.broadcast %29 : vector<1x128xf32> to vector<256x128xf32>
    %31 = arith.addf %28, %30 : vector<256x128xf32>
    %cst_24 = arith.constant 0.000000e+00 : f32
    %32 = vector.broadcast %cst_24 : f32 to vector<256x128xf32>
    %33 = arith.maximumf %31, %32 : vector<256x128xf32>
    %34 = arith.truncf %33 : vector<256x128xf32> to vector<256x128xbf16>
    %c0_25 = arith.constant 0 : index
    %c0_26 = arith.constant 0 : index
    %35 = vector.load %arg11[%c0_25, %c0_26] : memref<128x128xbf16, #tpu.memory_space<vmem>>, vector<128x128xbf16>
    %cst_27 = arith.constant dense<0.000000e+00> : vector<256x128xf32>
    %36 = tpu.matmul %34, %35, %cst_27 {dimension_numbers = #tpu.dot_dimension_numbers<[1], [0], [0], [1], [0, 0, 1, 1], [], []>} : vector<256x128xbf16>, vector<128x128xbf16>, vector<256x128xf32> -> vector<256x128xf32>
    %c0_28 = arith.constant 0 : index
    %c0_29 = arith.constant 0 : index
    %37 = vector.load %arg12[%c0_28, %c0_29] : memref<1x128xf32, #tpu.memory_space<vmem>>, vector<1x128xf32>
    %38 = vector.broadcast %37 : vector<1x128xf32> to vector<256x128xf32>
    %39 = arith.addf %36, %38 : vector<256x128xf32>
    %c0_30 = arith.constant 0 : index
    %c0_31 = arith.constant 0 : index
    %c0_32 = arith.constant 0 : index
    %40 = vector.load %arg13[%c0_30, %c0_31, %c0_32] : memref<1x256x128xf32, #tpu.memory_space<vmem>>, vector<1x256x128xf32>
    %41 = vector.shape_cast %40 : vector<1x256x128xf32> to vector<256x128xf32>
    %42 = vector.shape_cast %39 : vector<256x128xf32> to vector<1x256x128xf32>
    tpu.vector_store %arg13[%c0_30, %c0_31, %c0_32], %42 {strides = array<i32>} : memref<1x256x128xf32, #tpu.memory_space<vmem>>, vector<1x256x128xf32>,
    return
  }
  func.func @transform_0(%arg0: i32, %arg1: i32) -> (i32, i32, i32) {
    %c0_i32 = arith.constant 0 : i32
    %c0_i32_0 = arith.constant 0 : i32
    return %arg0, %arg1, %c0_i32 : i32, i32, i32
  }
  func.func @transform_1(%arg0: i32, %arg1: i32) -> (i32, i32, i32) {
    %c0_i32 = arith.constant 0 : i32
    %c0_i32_0 = arith.constant 0 : i32
    return %arg0, %arg1, %c0_i32 : i32, i32, i32
  }
  func.func @transform_2(%arg0: i32, %arg1: i32) -> (i32, i32, i32) {
    %c0_i32 = arith.constant 0 : i32
    %c0_i32_0 = arith.constant 0 : i32
    %c0_i32_1 = arith.constant 0 : i32
    return %arg0, %c0_i32, %c0_i32_0 : i32, i32, i32
  }
  func.func @transform_3(%arg0: i32, %arg1: i32) -> (i32, i32) {
    %c0_i32 = arith.constant 0 : i32
    %c0_i32_0 = arith.constant 0 : i32
    %c0_i32_1 = arith.constant 0 : i32
    return %c0_i32, %c0_i32_0 : i32, i32
  }
  func.func @transform_4(%arg0: i32, %arg1: i32) -> (i32, i32) {
    %c0_i32 = arith.constant 0 : i32
    %c0_i32_0 = arith.constant 0 : i32
    %c0_i32_1 = arith.constant 0 : i32
    return %c0_i32, %c0_i32_0 : i32, i32
  }
  func.func @transform_5(%arg0: i32, %arg1: i32) -> (i32, i32) {
    %c0_i32 = arith.constant 0 : i32
    %c0_i32_0 = arith.constant 0 : i32
    %c0_i32_1 = arith.constant 0 : i32
    return %c0_i32, %c0_i32_0 : i32, i32
  }
  func.func @transform_6(%arg0: i32, %arg1: i32) -> (i32, i32) {
    %c0_i32 = arith.constant 0 : i32
    %c0_i32_0 = arith.constant 0 : i32
    %c0_i32_1 = arith.constant 0 : i32
    return %c0_i32, %c0_i32_0 : i32, i32
  }
  func.func @transform_7(%arg0: i32, %arg1: i32) -> (i32, i32) {
    %c0_i32 = arith.constant 0 : i32
    %c0_i32_0 = arith.constant 0 : i32
    %c0_i32_1 = arith.constant 0 : i32
    return %c0_i32, %c0_i32_0 : i32, i32
  }
  func.func @transform_8(%arg0: i32, %arg1: i32) -> (i32, i32) {
    %c0_i32 = arith.constant 0 : i32
    %c0_i32_0 = arith.constant 0 : i32
    %c0_i32_1 = arith.constant 0 : i32
    return %c0_i32, %c0_i32_0 : i32, i32
  }
  func.func @transform_9(%arg0: i32, %arg1: i32) -> (i32, i32) {
    %c0_i32 = arith.constant 0 : i32
    %c0_i32_0 = arith.constant 0 : i32
    %c0_i32_1 = arith.constant 0 : i32
    return %c0_i32, %c0_i32_0 : i32, i32
  }
  func.func @transform_10(%arg0: i32, %arg1: i32) -> (i32, i32) {
    %c0_i32 = arith.constant 0 : i32
    %c0_i32_0 = arith.constant 0 : i32
    %c0_i32_1 = arith.constant 0 : i32
    return %c0_i32, %c0_i32_0 : i32, i32
  }
  func.func @transform_11(%arg0: i32, %arg1: i32) -> (i32, i32, i32) {
    %c0_i32 = arith.constant 0 : i32
    %c0_i32_0 = arith.constant 0 : i32
    return %arg0, %arg1, %c0_i32 : i32, i32, i32
  }
}

</mosaic_0001>

<llo_original>
// kernel: transt_forward.2
$region0: #{transt_forward.2}
  #allocation0 [shape = 'u32[]', space=smem, size = 0x4, offset = 0x4, fixed_abs, tag = 'smem constant byte address 0x4 - core index']
  #allocation1 [shape = 'u32[144,128]{1,0:T(1,128)}', space=vmem, size = 0x12000, scoped, tag = 'internal scratch']
  %s0 = inlined_call_operand.vmem [shape: f32[768,15], index: 0, kind: input, shape index: {}]
  %s1 = inlined_call_operand.vmem [shape: bf16[15,160], index: 1, kind: input, shape index: {}]
  %s2 = inlined_call_operand.vmem [shape: f32[1,160], index: 2, kind: input, shape index: {}]
  %s3 = inlined_call_operand.vmem [shape: bf16[160,32], index: 3, kind: input, shape index: {}]
  %s4 = inlined_call_operand.vmem [shape: bf16[2,160,32], index: 4, kind: input, shape index: {}]
  %s5 = inlined_call_operand.vmem [shape: f32[2,1,32], index: 5, kind: input, shape index: {}]
  %s6 = inlined_call_operand.vmem [shape: bf16[32,128], index: 6, kind: input, shape index: {}]
  %s7 = inlined_call_operand.vmem [shape: f32[1,128], index: 7, kind: input, shape index: {}]
  %s8 = inlined_call_operand.vmem [shape: bf16[768,128], index: 8, kind: output, shape index: {}]
  %s9 = sld [smem:[#allocation0]]
  $region65: #{transt_forward.2} parent=0
    _
  %s11 = ssub.s32 1, %s9
  %s12 = scalar_select 0, %s11, %s9
  loop: start=0, step=1, limit=5
  $region2: #{transt_forward.2} parent=0 // loop_pre_header
    _
  $region3: #{transt_forward.2} parent=0 // loop_header
    %s14 = sphi 0, %s18
    %p15 = scmp.ge.s32.totalorder %s14, 5
    %s24 = sphi 0, %s26
    %s27 = sphi 0, %s24
    %s28 = sphi 0, %s27
    %s44 = sphi 0, %s28
    %s48 = sphi 0, %s48
    %s50 = sphi 0, %s48
    %s51 = sphi 0, %s50
    %s65 = sphi 0, %s51
    %s69 = sphi 0, %s69
    %s71 = sphi 0, %s69
    %s72 = sphi 0, %s71
    %s86 = sphi 0, %s72
    %s90 = sphi 0, %s90
    %s92 = sphi 0, %s90
    %s93 = sphi 0, %s92
    %s107 = sphi 0, %s93
    %s117 = sphi 0, %s119
    %s120 = sphi 0, %s117
    %s121 = sphi 0, %s120
    %s137 = sphi 0, %s121
    %s147 = sphi 0, %s149
    %s150 = sphi 0, %s147
    %s151 = sphi 0, %s150
    %s167 = sphi 0, %s151
    %s171 = sphi 0, %s171
    %s173 = sphi 0, %s171
    %s174 = sphi 0, %s173
    %s188 = sphi 0, %s174
    %s192 = sphi 0, %s192
    %s194 = sphi 0, %s192
    %s195 = sphi 0, %s194
    %s209 = sphi 0, %s195
    %s215 = sphi 0, %s217
    %s218 = sphi 0, %s215
    %s219 = sphi 0, %s218
    %s235 = sphi 0, %s219
  $region4: #{transt_forward.2} parent=0 // loop_header_branch
    %17 = sbr.rel (%p15) target = $region8
  $region5: #{transt_forward.2} parent=0 // loop_body
    %s19 = ssub.s32 %s14, 1
    %s20 = ssub.s32 %s14, 2
    %s21 = sadd.s32 %s14, 1
    %s22 = ssub.s32 %s14, %s21
    %p23 = scmp.eq.s32.totalorder %s22, 0
    %s25 = sadd.s32 %s24, 1
    %s26 = scalar_select %p23, %s24, %s25
    %p29 = pneg %p23
    %p30 = scmp.eq.s32.totalorder %s14, 2
    %p31 = por %p29, %p30
    %p32 = scmp.ne.s32.totalorder %s24, %s27
    %p33 = scmp.eq.s32.totalorder %s14, 0
    %p34 = por %p32, %p33
    %p35 = scmp.ne.s32.totalorder %s24, %s27
    %p36 = scmp.eq.s32.totalorder %s19, 2
    %p37 = por %p35, %p36
    %p38 = scmp.ne.s32.totalorder %s27, %s28
    %p39 = scmp.eq.s32.totalorder %s19, 0
    %p40 = por %p38, %p39
    %p41 = scmp.ne.s32.totalorder %s27, %s28
    %p42 = scmp.eq.s32.totalorder %s20, 2
    %p43 = por %p41, %p42
    %p45 = scmp.ne.s32.totalorder %s28, %s44
    %p46 = scmp.eq.s32.totalorder %s20, 0
    %p47 = por %p45, %p46
    %s49 = sadd.s32 %s48, 1
    %p52 = scmp.eq.s32.totalorder %s14, 2
    %p53 = scmp.ne.s32.totalorder %s48, %s50
    %p54 = scmp.eq.s32.totalorder %s14, 0
    %p55 = por %p53, %p54
    %p56 = scmp.ne.s32.totalorder %s48, %s50
    %p57 = scmp.eq.s32.totalorder %s19, 2
    %p58 = por %p56, %p57
    %p59 = scmp.ne.s32.totalorder %s50, %s51
    %p60 = scmp.eq.s32.totalorder %s19, 0
    %p61 = por %p59, %p60
    %p62 = scmp.ne.s32.totalorder %s50, %s51
    %p63 = scmp.eq.s32.totalorder %s20, 2
    %p64 = por %p62, %p63
    %p66 = scmp.ne.s32.totalorder %s51, %s65
    %p67 = scmp.eq.s32.totalorder %s20, 0
    %p68 = por %p66, %p67
    %s70 = sadd.s32 %s69, 1
    %p73 = scmp.eq.s32.totalorder %s14, 2
    %p74 = scmp.ne.s32.totalorder %s69, %s71
    %p75 = scmp.eq.s32.totalorder %s14, 0
    %p76 = por %p74, %p75
    %p77 = scmp.ne.s32.totalorder %s69, %s71
    %p78 = scmp.eq.s32.totalorder %s19, 2
    %p79 = por %p77, %p78
    %p80 = scmp.ne.s32.totalorder %s71, %s72
    %p81 = scmp.eq.s32.totalorder %s19, 0
    %p82 = por %p80, %p81
    %p83 = scmp.ne.s32.totalorder %s71, %s72
    %p84 = scmp.eq.s32.totalorder %s20, 2
    %p85 = por %p83, %p84
    %p87 = scmp.ne.s32.totalorder %s72, %s86
    %p88 = scmp.eq.s32.totalorder %s20, 0
    %p89 = por %p87, %p88
    %s91 = sadd.s32 %s90, 1
    %p94 = scmp.eq.s32.totalorder %s14, 2
    %p95 = scmp.ne.s32.totalorder %s90, %s92
    %p96 = scmp.eq.s32.totalorder %s14, 0
    %p97 = por %p95, %p96
    %p98 = scmp.ne.s32.totalorder %s90, %s92
    %p99 = scmp.eq.s32.totalorder %s19, 2
    %p100 = por %p98, %p99
    %p101 = scmp.ne.s32.totalorder %s92, %s93
    %p102 = scmp.eq.s32.totalorder %s19, 0
    %p103 = por %p101, %p102
    %p104 = scmp.ne.s32.totalorder %s92, %s93
    %p105 = scmp.eq.s32.totalorder %s20, 2
    %p106 = por %p104, %p105
    %p108 = scmp.ne.s32.totalorder %s93, %s107
    %p109 = scmp.eq.s32.totalorder %s20, 0
    %p110 = por %p108, %p109
    %p111 = scmp.ge.s32.totalorder %s14, 2
    %s112 = scalar_select %p111, 1, 0
    %p113 = scmp.ge.s32.totalorder %s21, 2
    %s114 = scalar_select %p113, 1, 0
    %s115 = ssub.s32 %s112, %s114
    %p116 = scmp.eq.s32.totalorder %s115, 0
    %s118 = sadd.s32 %s117, 1
    %s119 = scalar_select %p116, %s117, %s118
    %p122 = pneg %p116
    %p123 = scmp.eq.s32.totalorder %s14, 2
    %p124 = por %p122, %p123
    %p125 = scmp.ne.s32.totalorder %s117, %s120
    %p126 = scmp.eq.s32.totalorder %s14, 0
    %p127 = por %p125, %p126
    %p128 = scmp.ne.s32.totalorder %s117, %s120
    %p129 = scmp.eq.s32.totalorder %s19, 2
    %p130 = por %p128, %p129
    %p131 = scmp.ne.s32.totalorder %s120, %s121
    %p132 = scmp.eq.s32.totalorder %s19, 0
    %p133 = por %p131, %p132
    %p134 = scmp.ne.s32.totalorder %s120, %s121
    %p135 = scmp.eq.s32.totalorder %s20, 2
    %p136 = por %p134, %p135
    %p138 = scmp.ne.s32.totalorder %s121, %s137
    %p139 = scmp.eq.s32.totalorder %s20, 0
    %p140 = por %p138, %p139
    %p141 = scmp.ge.s32.totalorder %s14, 2
    %s142 = scalar_select %p141, 1, 0
    %p143 = scmp.ge.s32.totalorder %s21, 2
    %s144 = scalar_select %p143, 1, 0
    %s145 = ssub.s32 %s142, %s144
    %p146 = scmp.eq.s32.totalorder %s145, 0
    %s148 = sadd.s32 %s147, 1
    %s149 = scalar_select %p146, %s147, %s148
    %p152 = pneg %p146
    %p153 = scmp.eq.s32.totalorder %s14, 2
    %p154 = por %p152, %p153
    %p155 = scmp.ne.s32.totalorder %s147, %s150
    %p156 = scmp.eq.s32.totalorder %s14, 0
    %p157 = por %p155, %p156
    %p158 = scmp.ne.s32.totalorder %s147, %s150
    %p159 = scmp.eq.s32.totalorder %s19, 2
    %p160 = por %p158, %p159
    %p161 = scmp.ne.s32.totalorder %s150, %s151
    %p162 = scmp.eq.s32.totalorder %s19, 0
    %p163 = por %p161, %p162
    %p164 = scmp.ne.s32.totalorder %s150, %s151
    %p165 = scmp.eq.s32.totalorder %s20, 2
    %p166 = por %p164, %p165
    %p168 = scmp.ne.s32.totalorder %s151, %s167
    %p169 = scmp.eq.s32.totalorder %s20, 0
    %p170 = por %p168, %p169
    %s172 = sadd.s32 %s171, 1
    %p175 = scmp.eq.s32.totalorder %s14, 2
    %p176 = scmp.ne.s32.totalorder %s171, %s173
    %p177 = scmp.eq.s32.totalorder %s14, 0
    %p178 = por %p176, %p177
    %p179 = scmp.ne.s32.totalorder %s171, %s173
    %p180 = scmp.eq.s32.totalorder %s19, 2
    %p181 = por %p179, %p180
    %p182 = scmp.ne.s32.totalorder %s173, %s174
    %p183 = scmp.eq.s32.totalorder %s19, 0
    %p184 = por %p182, %p183
    %p185 = scmp.ne.s32.totalorder %s173, %s174
    %p186 = scmp.eq.s32.totalorder %s20, 2
    %p187 = por %p185, %p186
    %p189 = scmp.ne.s32.totalorder %s174, %s188
    %p190 = scmp.eq.s32.totalorder %s20, 0
    %p191 = por %p189, %p190
    %s193 = sadd.s32 %s192, 1
    %p196 = scmp.eq.s32.totalorder %s14, 2
    %p197 = scmp.ne.s32.totalorder %s192, %s194
    %p198 = scmp.eq.s32.totalorder %s14, 0
    %p199 = por %p197, %p198
    %p200 = scmp.ne.s32.totalorder %s192, %s194
    %p201 = scmp.eq.s32.totalorder %s19, 2
    %p202 = por %p200, %p201
    %p203 = scmp.ne.s32.totalorder %s194, %s195
    %p204 = scmp.eq.s32.totalorder %s19, 0
    %p205 = por %p203, %p204
    %p206 = scmp.ne.s32.totalorder %s194, %s195
    %p207 = scmp.eq.s32.totalorder %s20, 2
    %p208 = por %p206, %p207
    %p210 = scmp.ne.s32.totalorder %s195, %s209
    %p211 = scmp.eq.s32.totalorder %s20, 0
    %p212 = por %p210, %p211
    %s213 = ssub.s32 %s14, %s21
    %p214 = scmp.eq.s32.totalorder %s213, 0
    %s216 = sadd.s32 %s215, 1
    %s217 = scalar_select %p214, %s215, %s216
    %p220 = pneg %p214
    %p221 = scmp.eq.s32.totalorder %s14, 2
    %p222 = por %p220, %p221
    %p223 = scmp.ne.s32.totalorder %s215, %s218
    %p224 = scmp.eq.s32.totalorder %s14, 0
    %p225 = por %p223, %p224
    %p226 = scmp.ne.s32.totalorder %s215, %s218
    %p227 = scmp.eq.s32.totalorder %s19, 2
    %p228 = por %p226, %p227
    %p229 = scmp.ne.s32.totalorder %s218, %s219
    %p230 = scmp.eq.s32.totalorder %s19, 0
    %p231 = por %p229, %p230
    %p232 = scmp.ne.s32.totalorder %s218, %s219
    %p233 = scmp.eq.s32.totalorder %s20, 2
    %p234 = por %p232, %p233
    %p236 = scmp.ne.s32.totalorder %s219, %s235
    %p237 = scmp.eq.s32.totalorder %s20, 0
    %p238 = por %p236, %p237
    %p239 = scmp.le.s32.totalorder 1, %s14
    %p240 = scmp.lt.s32.totalorder %s14, 4
    %p241 = pnand %p239, %p240
    %p242 = pneg %p241
    // Predicated region
    $region9: #{transt_forward.2} parent=5 // pred_check
      _
    $region10: #{transt_forward.2} parent=5 // pred_check_branch
      %244 = sbr.rel (%p241) target = $region12
    $region11: #{transt_forward.2} parent=5 // pred_region
      %s245 = ssub.s32 %s14, 1
      // Predicated region
      $region13: #{transt_forward.2} parent=11 // pred_check
        %p246 = pneg %p61
      $region14: #{transt_forward.2} parent=11 // pred_check_branch
        %248 = sbr.rel (%p246) target = $region16
      $region15: #{transt_forward.2} parent=11 // pred_region
        _
      $region16: #{transt_forward.2} parent=11 // pred_fallthru
        _
      // Predicated region
      $region17: #{transt_forward.2} parent=11 // pred_check
        %p249 = pneg %p82
      $region18: #{transt_forward.2} parent=11 // pred_check_branch
        %251 = sbr.rel (%p249) target = $region20
      $region19: #{transt_forward.2} parent=11 // pred_region
        _
      $region20: #{transt_forward.2} parent=11 // pred_fallthru
        _
      // Predicated region
      $region21: #{transt_forward.2} parent=11 // pred_check
        %p252 = pneg %p103
      $region22: #{transt_forward.2} parent=11 // pred_check_branch
        %254 = sbr.rel (%p252) target = $region24
      $region23: #{transt_forward.2} parent=11 // pred_region
        _
      $region24: #{transt_forward.2} parent=11 // pred_fallthru
        _
      // Predicated region
      $region25: #{transt_forward.2} parent=11 // pred_check
        %p255 = pneg %p184
      $region26: #{transt_forward.2} parent=11 // pred_check_branch
        %257 = sbr.rel (%p255) target = $region28
      $region27: #{transt_forward.2} parent=11 // pred_region
        _
      $region28: #{transt_forward.2} parent=11 // pred_fallthru
        _
      // Predicated region
      $region29: #{transt_forward.2} parent=11 // pred_check
        %p258 = pneg %p205
      $region30: #{transt_forward.2} parent=11 // pred_check_branch
        %260 = sbr.rel (%p258) target = $region32
      $region31: #{transt_forward.2} parent=11 // pred_region
        _
      $region32: #{transt_forward.2} parent=11 // pred_fallthru
        _
    $region12: #{transt_forward.2} parent=5 // pred_fallthru
      _
    %p261 = scmp.lt.s32.totalorder %s14, 3
    // Predicated region
    $region33: #{transt_forward.2} parent=5 // pred_check
      %p262 = pneg %p261
    $region34: #{transt_forward.2} parent=5 // pred_check_branch
      %264 = sbr.rel (%p262) target = $region36
    $region35: #{transt_forward.2} parent=5 // pred_region
      // Predicated region
      $region37: #{transt_forward.2} parent=35 // pred_check
        %p265 = pneg %p34
      $region38: #{transt_forward.2} parent=35 // pred_check_branch
        %267 = sbr.rel (%p265) target = $region40
      $region39: #{transt_forward.2} parent=35 // pred_region
        %s268 = smul.u32 32, %s14
        %p269 = scmp.lt.s32.totalorder %s268, 95
        %s270 = scalar_select %p269, %s268, 95
        %s271 = smul.addr %s270, 8
        %s272 = scalar_lea.vmem %s0, %s271
        %s273 = smul.u32 32, %s14
      $region40: #{transt_forward.2} parent=35 // pred_fallthru
        _
      // Predicated region
      $region41: #{transt_forward.2} parent=35 // pred_check
        %p274 = pneg %p127
      $region42: #{transt_forward.2} parent=35 // pred_check_branch
        %276 = sbr.rel (%p274) target = $region44
      $region43: #{transt_forward.2} parent=35 // pred_region
        %p277 = scmp.ge.s32.totalorder %s14, 2
        %s278 = scalar_select %p277, 1, 0
        %p279 = scmp.lt.s32.totalorder %s278, 1
        %s280 = scalar_select %p279, %s278, 1
        %s281 = smul.addr %s280, 20
        %s282 = smul.addr %s281, 4
        %s283 = scalar_lea.vmem %s4, %s282
        %p284 = scmp.ge.s32.totalorder %s14, 2
        %s285 = scalar_select %p284, 1, 0
      $region44: #{transt_forward.2} parent=35 // pred_fallthru
        _
      // Predicated region
      $region45: #{transt_forward.2} parent=35 // pred_check
        %p286 = pneg %p157
      $region46: #{transt_forward.2} parent=35 // pred_check_branch
        %288 = sbr.rel (%p286) target = $region48
      $region47: #{transt_forward.2} parent=35 // pred_region
        %p289 = scmp.ge.s32.totalorder %s14, 2
        %s290 = scalar_select %p289, 1, 0
        %p291 = scmp.lt.s32.totalorder %s290, 1
        %s292 = scalar_select %p291, %s290, 1
        %s293 = scalar_lea.vmem %s5, %s292
        %p294 = scmp.ge.s32.totalorder %s14, 2
        %s295 = scalar_select %p294, 1, 0
      $region48: #{transt_forward.2} parent=35 // pred_fallthru
        _
    $region36: #{transt_forward.2} parent=5 // pred_fallthru
      _
    %p296 = scmp.le.s32.totalorder 1, %s14
    %p297 = scmp.lt.s32.totalorder %s14, 4
    %p298 = pnand %p296, %p297
    %p299 = pneg %p298
    // Predicated region
    $region49: #{transt_forward.2} parent=5 // pred_check
      _
    $region50: #{transt_forward.2} parent=5 // pred_check_branch
      %301 = sbr.rel (%p298) target = $region52
    $region51: #{transt_forward.2} parent=5 // pred_region
      %s302 = ssub.s32 %s14, 1
      %s303 = smul.u32 32, %s19
      %p304 = scmp.lt.s32.totalorder %s303, 95
      %s305 = scalar_select %p304, %s303, 95
      %s306 = smul.addr %s305, 8
      %s307 = scalar_lea.vmem %s0, %s306
      %p308 = pneg %p40
      %p309 = pneg %p37
      %p310 = pneg %p61
      %p311 = pneg %p58
      %p312 = pneg %p82
      %p313 = pneg %p79
      %p314 = pneg %p103
      %p315 = pneg %p100
      %p316 = scmp.ge.s32.totalorder %s19, 2
      %s317 = scalar_select %p316, 1, 0
      %p318 = scmp.lt.s32.totalorder %s317, 1
      %s319 = scalar_select %p318, %s317, 1
      %s320 = smul.addr %s319, 20
      %s321 = smul.addr %s320, 4
      %s322 = scalar_lea.vmem %s4, %s321
      %p323 = pneg %p133
      %p324 = pneg %p130
      %p325 = scmp.ge.s32.totalorder %s19, 2
      %s326 = scalar_select %p325, 1, 0
      %p327 = scmp.lt.s32.totalorder %s326, 1
      %s328 = scalar_select %p327, %s326, 1
      %s329 = scalar_lea.vmem %s5, %s328
      %p330 = pneg %p163
      %p331 = pneg %p160
      %p332 = pneg %p184
      %p333 = pneg %p181
      %p334 = pneg %p205
      %p335 = pneg %p202
      %p336 = pneg %p231
      %p337 = pneg %p228
      %s338 = smul.u32 32, %s19
      %p339 = scmp.lt.s32.totalorder %s338, 95
      %s340 = scalar_select %p339, %s338, 95
      %s341 = smul.addr %s340, 4
      %s342 = scalar_lea.vmem %s8, %s341
      %s343 = smul.u32 32, %s19
      %p344 = scmp.lt.s32.totalorder %s343, 95
      %s345 = scalar_select %p344, %s343, 95
      %s346 = smul.addr %s345, 8
      %s347 = scalar_lea.vmem %s0, %s346
      %s348 = smul.u32 32, %s19
      %p349 = scmp.ge.s32.totalorder %s19, 2
      %s350 = scalar_select %p349, 1, 0
      %p351 = scmp.lt.s32.totalorder %s350, 1
      %s352 = scalar_select %p351, %s350, 1
      %s353 = smul.addr %s352, 20
      %s354 = smul.addr %s353, 4
      %s355 = scalar_lea.vmem %s4, %s354
      %p356 = scmp.ge.s32.totalorder %s19, 2
      %s357 = scalar_select %p356, 1, 0
      %p358 = scmp.ge.s32.totalorder %s19, 2
      %s359 = scalar_select %p358, 1, 0
      %p360 = scmp.lt.s32.totalorder %s359, 1
      %s361 = scalar_select %p360, %s359, 1
      %s362 = scalar_lea.vmem %s5, %s361
      %p363 = scmp.ge.s32.totalorder %s19, 2
      %s364 = scalar_select %p363, 1, 0
      %s365 = smul.u32 32, %s19
      %p366 = scmp.lt.s32.totalorder %s365, 95
      %s367 = scalar_select %p366, %s365, 95
      %s368 = smul.addr %s367, 4
      %s369 = scalar_lea.vmem %s8, %s368
      %s370 = smul.u32 32, %s19
      %v372 = vld [vmem:[%s347] sm:$0xff]
      %v373 = vld [vmem:[%s347 + $0x8] sm:$0xff]
      %v374 = vld [vmem:[%s347 + $0x10] sm:$0xff]
      %v375 = vld [vmem:[%s347 + $0x18] sm:$0xff]
      %v376 = vld [vmem:[%s347 + $0x20] sm:$0xff]
      %v377 = vld [vmem:[%s347 + $0x28] sm:$0xff]
      %v378 = vld [vmem:[%s347 + $0x30] sm:$0xff]
      %v379 = vld [vmem:[%s347 + $0x38] sm:$0xff]
      %v380 = vld [vmem:[%s347 + $0x40] sm:$0xff]
      %v381 = vld [vmem:[%s347 + $0x48] sm:$0xff]
      %v382 = vld [vmem:[%s347 + $0x50] sm:$0xff]
      %v383 = vld [vmem:[%s347 + $0x58] sm:$0xff]
      %v384 = vld [vmem:[%s347 + $0x60] sm:$0xff]
      %v385 = vld [vmem:[%s347 + $0x68] sm:$0xff]
      %v386 = vld [vmem:[%s347 + $0x70] sm:$0xff]
      %v387 = vld [vmem:[%s347 + $0x78] sm:$0xff]
      %v388 = vld [vmem:[%s347 + $0x80] sm:$0xff]
      %v389 = vld [vmem:[%s347 + $0x88] sm:$0xff]
      %v390 = vld [vmem:[%s347 + $0x90] sm:$0xff]
      %v391 = vld [vmem:[%s347 + $0x98] sm:$0xff]
      %v392 = vld [vmem:[%s347 + $0xa0] sm:$0xff]
      %v393 = vld [vmem:[%s347 + $0xa8] sm:$0xff]
      %v394 = vld [vmem:[%s347 + $0xb0] sm:$0xff]
      %v395 = vld [vmem:[%s347 + $0xb8] sm:$0xff]
      %v396 = vld [vmem:[%s347 + $0xc0] sm:$0xff]
      %v397 = vld [vmem:[%s347 + $0xc8] sm:$0xff]
      %v398 = vld [vmem:[%s347 + $0xd0] sm:$0xff]
      %v399 = vld [vmem:[%s347 + $0xd8] sm:$0xff]
      %v400 = vld [vmem:[%s347 + $0xe0] sm:$0xff]
      %v401 = vld [vmem:[%s347 + $0xe8] sm:$0xff]
      %v402 = vld [vmem:[%s347 + $0xf0] sm:$0xff]
      %v403 = vld [vmem:[%s347 + $0xf8] sm:$0xff]
      %v404 = vpack.c.bf16 %v373, %v372
      %v405 = vpack.c.bf16 %v375, %v374
      %v406 = vpack.c.bf16 %v377, %v376
      %v407 = vpack.c.bf16 %v379, %v378
      %v408 = vpack.c.bf16 %v381, %v380
      %v409 = vpack.c.bf16 %v383, %v382
      %v410 = vpack.c.bf16 %v385, %v384
      %v411 = vpack.c.bf16 %v387, %v386
      %v412 = vpack.c.bf16 %v389, %v388
      %v413 = vpack.c.bf16 %v391, %v390
      %v414 = vpack.c.bf16 %v393, %v392
      %v415 = vpack.c.bf16 %v395, %v394
      %v416 = vpack.c.bf16 %v397, %v396
      %v417 = vpack.c.bf16 %v399, %v398
      %v418 = vpack.c.bf16 %v401, %v400
      %v419 = vpack.c.bf16 %v403, %v402
      %v420 = vld [vmem:[%s1] sm:$0xff]
      %v421 = vld [vmem:[%s1 + $0x8] sm:$0xff]
      %v422 = vld [vmem:[%s2] sm:$0x3]
      %v424 = vlaneseq
      %v425 = vshrl.u32 %v424, 7
      %v426 = vsub.s32 0, %v425
      %v427 = vrot.slane %v422, %v426
      %v428 = vlaneseq
      %v429 = vshrl.u32 %v428, 7
      %v430 = vsub.s32 1, %v429
      %v431 = vrot.slane %v422, %v430
      %v436 = vunpack.c.l.b16 %v420
      %v437 = vunpack.c.h.b16 %v420
      %v438 = vunpack.c.l.b16 %v421
      %v439 = vunpack.c.h.b16 %v421
      %v440 = vpack.c.b16 %v438, %v436
      %v441 = vpack.c.b16 %v439, %v437
      %vm442 = vcmask 121856
      %v444 = vsel %vm442, %v404, 0
      %v447 = vsel %vm442, %v405, 0
      %v450 = vsel %vm442, %v406, 0
      %v453 = vsel %vm442, %v407, 0
      %v456 = vsel %vm442, %v408, 0
      %v459 = vsel %vm442, %v409, 0
      %v462 = vsel %vm442, %v410, 0
      %v465 = vsel %vm442, %v411, 0
      %v468 = vsel %vm442, %v412, 0
      %v471 = vsel %vm442, %v413, 0
      %v474 = vsel %vm442, %v414, 0
      %v477 = vsel %vm442, %v415, 0
      %v480 = vsel %vm442, %v416, 0
      %v483 = vsel %vm442, %v417, 0
      %v486 = vsel %vm442, %v418, 0
      %v489 = vsel %vm442, %v419, 0
      %vm491 = vcmask 1046528
      %vm492 = vcmask 1047552
      %v493 = vsel %vm491, 4294967295, 65535
      %v494 = vsel %vm492, %v493, 0
      %v496 = vand.u32 %v440, %v494
      %v499 = vand.u32 %v441, %v494
      %501 = vmatprep.subr.bf16.mxu0 %v499
      %502 = vmatpush1.bf16.msra.mxu0 %v496
      %503 = vmatprep.subr.bf16.mxu0 0
      %504 = vmatpush1.bf16.msra.mxu0 0
      %505 = vmatprep.subr.bf16.mxu0 0
      %506 = vmatpush1.bf16.msra.mxu0 0
      %507 = vmatprep.subr.bf16.mxu0 0
      %508 = vmatpush1.bf16.msra.mxu0 0
      %509 = vmatprep.subr.bf16.mxu0 0
      %510 = vmatpush1.bf16.msra.mxu0 0
      %511 = vmatprep.subr.bf16.mxu0 0
      %512 = vmatpush1.bf16.msra.mxu0 0
      %513 = vmatprep.subr.bf16.mxu0 0
      %514 = vmatpush1.bf16.msra.mxu0 0
      %515 = vmatprep.subr.bf16.mxu0 0
      %516 = vmatpush1.bf16.msra.mxu0 0
      %517 = vmatprep.subr.bf16.mxu0 0
      %518 = vmatpush1.bf16.msra.mxu0 0
      %519 = vmatprep.subr.bf16.mxu0 0
      %520 = vmatpush1.bf16.msra.mxu0 0
      %521 = vmatprep.subr.bf16.mxu0 0
      %522 = vmatpush1.bf16.msra.mxu0 0
      %523 = vmatprep.subr.bf16.mxu0 0
      %524 = vmatpush1.bf16.msra.mxu0 0
      %525 = vmatprep.subr.bf16.mxu0 0
      %526 = vmatpush1.bf16.msra.mxu0 0
      %527 = vmatprep.subr.bf16.mxu0 0
      %528 = vmatpush1.bf16.msra.mxu0 0
      %529 = vmatprep.subr.bf16.mxu0 0
      %530 = vmatpush1.bf16.msra.mxu0 0
      %531 = vmatprep.subr.bf16.mxu0 0
      %532 = vmatpush1.bf16.msra.mxu0 0
      %533 = vmatprep.mubr.bf16.mxu0 0
      %534 = vmatmul.mubr.bf16.gmra.mrb[0].mxu0 %v444
      %v535 = vpop.f32.mrb[0].mxu0
      %v536 = vadd.f32 %v427, %v535
      %v537 = vpop.f32.mrb[0].mxu0
      %v538 = vadd.f32 %v431, %v537
      %v539 = vpop.f32.mrb[0].mxu0
      %v540 = vadd.f32 %v427, %v539
      %v541 = vpop.f32.mrb[0].mxu0
      %v542 = vadd.f32 %v431, %v541
      %543 = vmatprep.mubr.bf16.mxu0 0
      %544 = vmatmul.mubr.bf16.gmra.mrb[0].mxu0 %v447
      %v545 = vpop.f32.mrb[0].mxu0
      %v546 = vadd.f32 %v427, %v545
      %v547 = vpop.f32.mrb[0].mxu0
      %v548 = vadd.f32 %v431, %v547
      %v549 = vpop.f32.mrb[0].mxu0
      %v550 = vadd.f32 %v427, %v549
      %v551 = vpop.f32.mrb[0].mxu0
      %v552 = vadd.f32 %v431, %v551
      %553 = vmatprep.mubr.bf16.mxu0 0
      %554 = vmatmul.mubr.bf16.gmra.mrb[0].mxu0 %v450
      %v555 = vpop.f32.mrb[0].mxu0
      %v556 = vadd.f32 %v427, %v555
      %v557 = vpop.f32.mrb[0].mxu0
      %v558 = vadd.f32 %v431, %v557
      %v559 = vpop.f32.mrb[0].mxu0
      %v560 = vadd.f32 %v427, %v559
      %v561 = vpop.f32.mrb[0].mxu0
      %v562 = vadd.f32 %v431, %v561
      %563 = vmatprep.mubr.bf16.mxu0 0
      %564 = vmatmul.mubr.bf16.gmra.mrb[0].mxu0 %v453
      %v565 = vpop.f32.mrb[0].mxu0
      %v566 = vadd.f32 %v427, %v565
      %v567 = vpop.f32.mrb[0].mxu0
      %v568 = vadd.f32 %v431, %v567
      %v569 = vpop.f32.mrb[0].mxu0
      %v570 = vadd.f32 %v427, %v569
      %v571 = vpop.f32.mrb[0].mxu0
      %v572 = vadd.f32 %v431, %v571
      %573 = vmatprep.mubr.bf16.mxu0 0
      %574 = vmatmul.mubr.bf16.gmra.mrb[0].mxu0 %v456
      %v575 = vpop.f32.mrb[0].mxu0
      %v576 = vadd.f32 %v427, %v575
      %v577 = vpop.f32.mrb[0].mxu0
      %v578 = vadd.f32 %v431, %v577
      %v579 = vpop.f32.mrb[0].mxu0
      %v580 = vadd.f32 %v427, %v579
      %v581 = vpop.f32.mrb[0].mxu0
      %v582 = vadd.f32 %v431, %v581
      %583 = vmatprep.mubr.bf16.mxu0 0
      %584 = vmatmul.mubr.bf16.gmra.mrb[0].mxu0 %v459
      %v585 = vpop.f32.mrb[0].mxu0
      %v586 = vadd.f32 %v427, %v585
      %v587 = vpop.f32.mrb[0].mxu0
      %v588 = vadd.f32 %v431, %v587
      %v589 = vpop.f32.mrb[0].mxu0
      %v590 = vadd.f32 %v427, %v589
      %v591 = vpop.f32.mrb[0].mxu0
      %v592 = vadd.f32 %v431, %v591
      %593 = vmatprep.mubr.bf16.mxu0 0
      %594 = vmatmul.mubr.bf16.gmra.mrb[0].mxu0 %v462
      %v595 = vpop.f32.mrb[0].mxu0
      %v596 = vadd.f32 %v427, %v595
      %v597 = vpop.f32.mrb[0].mxu0
      %v598 = vadd.f32 %v431, %v597
      %v599 = vpop.f32.mrb[0].mxu0
      %v600 = vadd.f32 %v427, %v599
      %v601 = vpop.f32.mrb[0].mxu0
      %v602 = vadd.f32 %v431, %v601
      %603 = vmatprep.mubr.bf16.mxu0 0
      %604 = vmatmul.mubr.bf16.gmra.mrb[0].mxu0 %v465
      %v605 = vpop.f32.mrb[0].mxu0
      %v606 = vadd.f32 %v427, %v605
      %v607 = vpop.f32.mrb[0].mxu0
      %v608 = vadd.f32 %v431, %v607
      %v609 = vpop.f32.mrb[0].mxu0
      %v610 = vadd.f32 %v427, %v609
      %v611 = vpop.f32.mrb[0].mxu0
      %v612 = vadd.f32 %v431, %v611
      %613 = vmatprep.mubr.bf16.mxu0 0
      %614 = vmatmul.mubr.bf16.gmra.mrb[0].mxu0 %v468
      %v615 = vpop.f32.mrb[0].mxu0
      %v616 = vadd.f32 %v427, %v615
      %v617 = vpop.f32.mrb[0].mxu0
      %v618 = vadd.f32 %v431, %v617
      %v619 = vpop.f32.mrb[0].mxu0
      %v620 = vadd.f32 %v427, %v619
      %v621 = vpop.f32.mrb[0].mxu0
      %v622 = vadd.f32 %v431, %v621
      %623 = vmatprep.mubr.bf16.mxu0 0
      %624 = vmatmul.mubr.bf16.gmra.mrb[0].mxu0 %v471
      %v625 = vpop.f32.mrb[0].mxu0
      %v626 = vadd.f32 %v427, %v625
      %v627 = vpop.f32.mrb[0].mxu0
      %v628 = vadd.f32 %v431, %v627
      %v629 = vpop.f32.mrb[0].mxu0
      %v630 = vadd.f32 %v427, %v629
      %v631 = vpop.f32.mrb[0].mxu0
      %v632 = vadd.f32 %v431, %v631
      %633 = vmatprep.mubr.bf16.mxu0 0
      %634 = vmatmul.mubr.bf16.gmra.mrb[0].mxu0 %v474
      %v635 = vpop.f32.mrb[0].mxu0
      %v636 = vadd.f32 %v427, %v635
      %v637 = vpop.f32.mrb[0].mxu0
      %v638 = vadd.f32 %v431, %v637
      %v639 = vpop.f32.mrb[0].mxu0
      %v640 = vadd.f32 %v427, %v639
      %v641 = vpop.f32.mrb[0].mxu0
      %v642 = vadd.f32 %v431, %v641
      %643 = vmatprep.mubr.bf16.mxu0 0
      %644 = vmatmul.mubr.bf16.gmra.mrb[0].mxu0 %v477
      %v645 = vpop.f32.mrb[0].mxu0
      %v646 = vadd.f32 %v427, %v645
      %v647 = vpop.f32.mrb[0].mxu0
      %v648 = vadd.f32 %v431, %v647
      %v649 = vpop.f32.mrb[0].mxu0
      %v650 = vadd.f32 %v427, %v649
      %v651 = vpop.f32.mrb[0].mxu0
      %v652 = vadd.f32 %v431, %v651
      %653 = vmatprep.mubr.bf16.mxu0 0
      %654 = vmatmul.mubr.bf16.gmra.mrb[0].mxu0 %v480
      %v655 = vpop.f32.mrb[0].mxu0
      %v656 = vadd.f32 %v427, %v655
      %v657 = vpop.f32.mrb[0].mxu0
      %v658 = vadd.f32 %v431, %v657
      %v659 = vpop.f32.mrb[0].mxu0
      %v660 = vadd.f32 %v427, %v659
      %v661 = vpop.f32.mrb[0].mxu0
      %v662 = vadd.f32 %v431, %v661
      %663 = vmatprep.mubr.bf16.mxu0 0
      %664 = vmatmul.mubr.bf16.gmra.mrb[0].mxu0 %v483
      %v665 = vpop.f32.mrb[0].mxu0
      %v666 = vadd.f32 %v427, %v665
      %v667 = vpop.f32.mrb[0].mxu0
      %v668 = vadd.f32 %v431, %v667
      %v669 = vpop.f32.mrb[0].mxu0
      %v670 = vadd.f32 %v427, %v669
      %v671 = vpop.f32.mrb[0].mxu0
      %v672 = vadd.f32 %v431, %v671
      %673 = vmatprep.mubr.bf16.mxu0 0
      %674 = vmatmul.mubr.bf16.gmra.mrb[0].mxu0 %v486
      %v675 = vpop.f32.mrb[0].mxu0
      %v676 = vadd.f32 %v427, %v675
      %v677 = vpop.f32.mrb[0].mxu0
      %v678 = vadd.f32 %v431, %v677
      %v679 = vpop.f32.mrb[0].mxu0
      %v680 = vadd.f32 %v427, %v679
      %v681 = vpop.f32.mrb[0].mxu0
      %v682 = vadd.f32 %v431, %v681
      %683 = vmatprep.mubr.bf16.mxu0 0
      %684 = vmatmul.mubr.bf16.gmra.mrb[0].mxu0 %v489
      %v685 = vpop.f32.mrb[0].mxu0
      %v686 = vadd.f32 %v427, %v685
      %v687 = vpop.f32.mrb[0].mxu0
      %v688 = vadd.f32 %v431, %v687
      %v689 = vpop.f32.mrb[0].mxu0
      %v690 = vadd.f32 %v427, %v689
      %v691 = vpop.f32.mrb[0].mxu0
      %v692 = vadd.f32 %v431, %v691
      %693 = vdwg.mxu0
      %v694 = vmax.f32 %v536, 0.0
      %v695 = vmax.f32 %v538, 0.0
      %v696 = vmax.f32 %v540, 0.0
      %v697 = vmax.f32 %v542, 0.0
      %v698 = vmax.f32 %v546, 0.0
      %v699 = vmax.f32 %v548, 0.0
      %v700 = vmax.f32 %v550, 0.0
      %v701 = vmax.f32 %v552, 0.0
      %v702 = vmax.f32 %v556, 0.0
      %v703 = vmax.f32 %v558, 0.0
      %v704 = vmax.f32 %v560, 0.0
      %v705 = vmax.f32 %v562, 0.0
      %v706 = vmax.f32 %v566, 0.0
      %v707 = vmax.f32 %v568, 0.0
      %v708 = vmax.f32 %v570, 0.0
      %v709 = vmax.f32 %v572, 0.0
      %v710 = vmax.f32 %v576, 0.0
      %v711 = vmax.f32 %v578, 0.0
      %v712 = vmax.f32 %v580, 0.0
      %v713 = vmax.f32 %v582, 0.0
      %v714 = vmax.f32 %v586, 0.0
      %v715 = vmax.f32 %v588, 0.0
      %v716 = vmax.f32 %v590, 0.0
      %v717 = vmax.f32 %v592, 0.0
      %v718 = vmax.f32 %v596, 0.0
      %v719 = vmax.f32 %v598, 0.0
      %v720 = vmax.f32 %v600, 0.0
      %v721 = vmax.f32 %v602, 0.0
      %v722 = vmax.f32 %v606, 0.0
      %v723 = vmax.f32 %v608, 0.0
      %v724 = vmax.f32 %v610, 0.0
      %v725 = vmax.f32 %v612, 0.0
      %v726 = vmax.f32 %v616, 0.0
      %v727 = vmax.f32 %v618, 0.0
      %v728 = vmax.f32 %v620, 0.0
      %v729 = vmax.f32 %v622, 0.0
      %v730 = vmax.f32 %v626, 0.0
      %v731 = vmax.f32 %v628, 0.0
      %v732 = vmax.f32 %v630, 0.0
      %v733 = vmax.f32 %v632, 0.0
      %v734 = vmax.f32 %v636, 0.0
      %v735 = vmax.f32 %v638, 0.0
      %v736 = vmax.f32 %v640, 0.0
      %v737 = vmax.f32 %v642, 0.0
      %v738 = vmax.f32 %v646, 0.0
      %v739 = vmax.f32 %v648, 0.0
      %v740 = vmax.f32 %v650, 0.0
      %v741 = vmax.f32 %v652, 0.0
      %v742 = vmax.f32 %v656, 0.0
      %v743 = vmax.f32 %v658, 0.0
      %v744 = vmax.f32 %v660, 0.0
      %v745 = vmax.f32 %v662, 0.0
      %v746 = vmax.f32 %v666, 0.0
      %v747 = vmax.f32 %v668, 0.0
      %v748 = vmax.f32 %v670, 0.0
      %v749 = vmax.f32 %v672, 0.0
      %v750 = vmax.f32 %v676, 0.0
      %v751 = vmax.f32 %v678, 0.0
      %v752 = vmax.f32 %v680, 0.0
      %v753 = vmax.f32 %v682, 0.0
      %v754 = vmax.f32 %v686, 0.0
      %v755 = vmax.f32 %v688, 0.0
      %v756 = vmax.f32 %v690, 0.0
      %v757 = vmax.f32 %v692, 0.0
      %v758 = vpack.c.bf16 %v696, %v694
      %v759 = vpack.c.bf16 %v697, %v695
      %v760 = vpack.c.bf16 %v700, %v698
      %v761 = vpack.c.bf16 %v701, %v699
      %v762 = vpack.c.bf16 %v704, %v702
      %v763 = vpack.c.bf16 %v705, %v703
      %v764 = vpack.c.bf16 %v708, %v706
      %v765 = vpack.c.bf16 %v709, %v707
      %v766 = vpack.c.bf16 %v712, %v710
      %v767 = vpack.c.bf16 %v713, %v711
      %v768 = vpack.c.bf16 %v716, %v714
      %v769 = vpack.c.bf16 %v717, %v715
      %v770 = vpack.c.bf16 %v720, %v718
      %v771 = vpack.c.bf16 %v721, %v719
      %v772 = vpack.c.bf16 %v724, %v722
      %v773 = vpack.c.bf16 %v725, %v723
      %v774 = vpack.c.bf16 %v728, %v726
      %v775 = vpack.c.bf16 %v729, %v727
      %v776 = vpack.c.bf16 %v732, %v730
      %v777 = vpack.c.bf16 %v733, %v731
      %v778 = vpack.c.bf16 %v736, %v734
      %v779 = vpack.c.bf16 %v737, %v735
      %v780 = vpack.c.bf16 %v740, %v738
      %v781 = vpack.c.bf16 %v741, %v739
      %v782 = vpack.c.bf16 %v744, %v742
      %v783 = vpack.c.bf16 %v745, %v743
      %v784 = vpack.c.bf16 %v748, %v746
      %v785 = vpack.c.bf16 %v749, %v747
      %v786 = vpack.c.bf16 %v752, %v750
      %v787 = vpack.c.bf16 %v753, %v751
      %v788 = vpack.c.bf16 %v756, %v754
      %v789 = vpack.c.bf16 %v757, %v755
      %v790 = vld [vmem:[%s3] sm:$0xf]
      %v791 = vld [vmem:[%s3 + $0x4] sm:$0xf]
      %v792 = vld [vmem:[%s3 + $0x8] sm:$0xf]
      %v793 = vld [vmem:[%s3 + $0xc] sm:$0xf]
      %v794 = vld [vmem:[%s3 + $0x10] sm:$0xf]
      %v795 = vld [vmem:[%s3 + $0x14] sm:$0xf]
      %v796 = vld [vmem:[%s3 + $0x18] sm:$0xf]
      %v797 = vld [vmem:[%s3 + $0x1c] sm:$0xf]
      %v798 = vld [vmem:[%s3 + $0x20] sm:$0xf]
      %v799 = vld [vmem:[%s3 + $0x24] sm:$0xf]
      %v800 = vld [vmem:[%s3 + $0x28] sm:$0xf]
      %v801 = vld [vmem:[%s3 + $0x2c] sm:$0xf]
      %v802 = vld [vmem:[%s3 + $0x30] sm:$0xf]
      %v803 = vld [vmem:[%s3 + $0x34] sm:$0xf]
      %v804 = vld [vmem:[%s3 + $0x38] sm:$0xf]
      %v805 = vld [vmem:[%s3 + $0x3c] sm:$0xf]
      %v806 = vld [vmem:[%s3 + $0x40] sm:$0xf]
      %v807 = vld [vmem:[%s3 + $0x44] sm:$0xf]
      %v808 = vld [vmem:[%s3 + $0x48] sm:$0xf]
      %v809 = vld [vmem:[%s3 + $0x4c] sm:$0xf]
      %v830 = vunpack.c.l.b16 %v790
      %v831 = vunpack.c.l.b16 %v791
      %v832 = vunpack.c.l.b16 %v792
      %v833 = vunpack.c.l.b16 %v793
      %v834 = vunpack.c.l.b16 %v794
      %v835 = vunpack.c.l.b16 %v795
      %v836 = vunpack.c.l.b16 %v796
      %v837 = vunpack.c.l.b16 %v797
      %v838 = vunpack.c.l.b16 %v798
      %v839 = vunpack.c.l.b16 %v799
      %v840 = vunpack.c.l.b16 %v800
      %v841 = vunpack.c.l.b16 %v801
      %v842 = vunpack.c.l.b16 %v802
      %v843 = vunpack.c.l.b16 %v803
      %v844 = vunpack.c.l.b16 %v804
      %v845 = vunpack.c.l.b16 %v805
      %v846 = vunpack.c.l.b16 %v806
      %v847 = vunpack.c.l.b16 %v807
      %v848 = vunpack.c.l.b16 %v808
      %v849 = vunpack.c.l.b16 %v809
      %v850 = vpack.c.b16 %v831, %v830
      %v851 = vpack.c.b16 %v833, %v832
      %v852 = vpack.c.b16 %v835, %v834
      %v853 = vpack.c.b16 %v837, %v836
      %v854 = vpack.c.b16 %v839, %v838
      %v855 = vpack.c.b16 %v841, %v840
      %v856 = vpack.c.b16 %v843, %v842
      %v857 = vpack.c.b16 %v845, %v844
      %v858 = vpack.c.b16 %v847, %v846
      %v859 = vpack.c.b16 %v849, %v848
      %vm870 = vcmask 261120
      %v872 = vsel %vm870, %v759, 0
      %v875 = vsel %vm870, %v761, 0
      %v878 = vsel %vm870, %v763, 0
      %v881 = vsel %vm870, %v765, 0
      %v884 = vsel %vm870, %v767, 0
      %v887 = vsel %vm870, %v769, 0
      %v890 = vsel %vm870, %v771, 0
      %v893 = vsel %vm870, %v773, 0
      %v896 = vsel %vm870, %v775, 0
      %v899 = vsel %vm870, %v777, 0
      %v902 = vsel %vm870, %v779, 0
      %v905 = vsel %vm870, %v781, 0
      %v908 = vsel %vm870, %v783, 0
      %v911 = vsel %vm870, %v785, 0
      %v914 = vsel %vm870, %v787, 0
      %v917 = vsel %vm870, %v789, 0
      %919 = vmatprep.subr.bf16.mxu0 0
      %920 = vmatpush1.bf16.msra.mxu0 %v850
      %921 = vmatprep.subr.bf16.mxu0 0
      %922 = vmatpush1.bf16.msra.mxu0 %v851
      %923 = vmatprep.subr.bf16.mxu0 0
      %924 = vmatpush1.bf16.msra.mxu0 %v852
      %925 = vmatprep.subr.bf16.mxu0 0
      %926 = vmatpush1.bf16.msra.mxu0 %v853
      %927 = vmatprep.subr.bf16.mxu0 0
      %928 = vmatpush1.bf16.msra.mxu0 %v854
      %929 = vmatprep.subr.bf16.mxu0 0
      %930 = vmatpush1.bf16.msra.mxu0 %v855
      %931 = vmatprep.subr.bf16.mxu0 0
      %932 = vmatpush1.bf16.msra.mxu0 %v856
      %933 = vmatprep.subr.bf16.mxu0 0
      %934 = vmatpush1.bf16.msra.mxu0 %v857
      %935 = vmatprep.subr.bf16.mxu0 0
      %936 = vmatpush1.bf16.msra.mxu0 %v858
      %937 = vmatprep.subr.bf16.mxu0 0
      %938 = vmatpush1.bf16.msra.mxu0 %v859
      %939 = vmatprep.subr.bf16.mxu0 0
      %940 = vmatpush1.bf16.msra.mxu0 0
      %941 = vmatprep.subr.bf16.mxu0 0
      %942 = vmatpush1.bf16.msra.mxu0 0
      %943 = vmatprep.subr.bf16.mxu0 0
      %944 = vmatpush1.bf16.msra.mxu0 0
      %945 = vmatprep.subr.bf16.mxu0 0
      %946 = vmatpush1.bf16.msra.mxu0 0
      %947 = vmatprep.subr.bf16.mxu0 0
      %948 = vmatpush1.bf16.msra.mxu0 0
      %949 = vmatprep.subr.bf16.mxu0 0
      %950 = vmatpush1.bf16.msra.mxu0 0
      %951 = vmatprep.mubr.bf16.mxu0 %v872
      %952 = vmatmul.mubr.bf16.gmra.mrb[0].mxu0 %v758
      %v953 = vpop.f32.mrb[0].mxu0
      %v954 = vadd.f32 0.0, %v953
      %v955 = vpop.f32.mrb[0].mxu0
      %v956 = vpop.f32.mrb[0].mxu0
      %v957 = vadd.f32 0.0, %v956
      %v958 = vpop.f32.mrb[0].mxu0
      %959 = vmatprep.mubr.bf16.mxu0 %v875
      %960 = vmatmul.mubr.bf16.gmra.mrb[0].mxu0 %v760
      %v961 = vpop.f32.mrb[0].mxu0
      %v962 = vadd.f32 0.0, %v961
      %v963 = vpop.f32.mrb[0].mxu0
      %v964 = vpop.f32.mrb[0].mxu0
      %v965 = vadd.f32 0.0, %v964
      %v966 = vpop.f32.mrb[0].mxu0
      %967 = vmatprep.mubr.bf16.mxu0 %v878
      %968 = vmatmul.mubr.bf16.gmra.mrb[0].mxu0 %v762
      %v969 = vpop.f32.mrb[0].mxu0
      %v970 = vadd.f32 0.0, %v969
      %v971 = vpop.f32.mrb[0].mxu0
      %v972 = vpop.f32.mrb[0].mxu0
      %v973 = vadd.f32 0.0, %v972
      %v974 = vpop.f32.mrb[0].mxu0
      %975 = vmatprep.mubr.bf16.mxu0 %v881
      %976 = vmatmul.mubr.bf16.gmra.mrb[0].mxu0 %v764
      %v977 = vpop.f32.mrb[0].mxu0
      %v978 = vadd.f32 0.0, %v977
      %v979 = vpop.f32.mrb[0].mxu0
      %v980 = vpop.f32.mrb[0].mxu0
      %v981 = vadd.f32 0.0, %v980
      %v982 = vpop.f32.mrb[0].mxu0
      %983 = vmatprep.mubr.bf16.mxu0 %v884
      %984 = vmatmul.mubr.bf16.gmra.mrb[0].mxu0 %v766
      %v985 = vpop.f32.mrb[0].mxu0
      %v986 = vadd.f32 0.0, %v985
      %v987 = vpop.f32.mrb[0].mxu0
      %v988 = vpop.f32.mrb[0].mxu0
      %v989 = vadd.f32 0.0, %v988
      %v990 = vpop.f32.mrb[0].mxu0
      %991 = vmatprep.mubr.bf16.mxu0 %v887
      %992 = vmatmul.mubr.bf16.gmra.mrb[0].mxu0 %v768
      %v993 = vpop.f32.mrb[0].mxu0
      %v994 = vadd.f32 0.0, %v993
      %v995 = vpop.f32.mrb[0].mxu0
      %v996 = vpop.f32.mrb[0].mxu0
      %v997 = vadd.f32 0.0, %v996
      %v998 = vpop.f32.mrb[0].mxu0
      %999 = vmatprep.mubr.bf16.mxu0 %v890
      %1000 = vmatmul.mubr.bf16.gmra.mrb[0].mxu0 %v770
      %v1001 = vpop.f32.mrb[0].mxu0
      %v1002 = vadd.f32 0.0, %v1001
      %v1003 = vpop.f32.mrb[0].mxu0
      %v1004 = vpop.f32.mrb[0].mxu0
      %v1005 = vadd.f32 0.0, %v1004
      %v1006 = vpop.f32.mrb[0].mxu0
      %1007 = vmatprep.mubr.bf16.mxu0 %v893
      %1008 = vmatmul.mubr.bf16.gmra.mrb[0].mxu0 %v772
      %v1009 = vpop.f32.mrb[0].mxu0
      %v1010 = vadd.f32 0.0, %v1009
      %v1011 = vpop.f32.mrb[0].mxu0
      %v1012 = vpop.f32.mrb[0].mxu0
      %v1013 = vadd.f32 0.0, %v1012
      %v1014 = vpop.f32.mrb[0].mxu0
      %1015 = vmatprep.mubr.bf16.mxu0 %v896
      %1016 = vmatmul.mubr.bf16.gmra.mrb[0].mxu0 %v774
      %v1017 = vpop.f32.mrb[0].mxu0
      %v1018 = vadd.f32 0.0, %v1017
      %v1019 = vpop.f32.mrb[0].mxu0
      %v1020 = vpop.f32.mrb[0].mxu0
      %v1021 = vadd.f32 0.0, %v1020
      %v1022 = vpop.f32.mrb[0].mxu0
      %1023 = vmatprep.mubr.bf16.mxu0 %v899
      %1024 = vmatmul.mubr.bf16.gmra.mrb[0].mxu0 %v776
      %v1025 = vpop.f32.mrb[0].mxu0
      %v1026 = vadd.f32 0.0, %v1025
      %v1027 = vpop.f32.mrb[0].mxu0
      %v1028 = vpop.f32.mrb[0].mxu0
      %v1029 = vadd.f32 0.0, %v1028
      %v1030 = vpop.f32.mrb[0].mxu0
      %1031 = vmatprep.mubr.bf16.mxu0 %v902
      %1032 = vmatmul.mubr.bf16.gmra.mrb[0].mxu0 %v778
      %v1033 = vpop.f32.mrb[0].mxu0
      %v1034 = vadd.f32 0.0, %v1033
      %v1035 = vpop.f32.mrb[0].mxu0
      %v1036 = vpop.f32.mrb[0].mxu0
      %v1037 = vadd.f32 0.0, %v1036
      %v1038 = vpop.f32.mrb[0].mxu0
      %1039 = vmatprep.mubr.bf16.mxu0 %v905
      %1040 = vmatmul.mubr.bf16.gmra.mrb[0].mxu0 %v780
      %v1041 = vpop.f32.mrb[0].mxu0
      %v1042 = vadd.f32 0.0, %v1041
      %v1043 = vpop.f32.mrb[0].mxu0
      %v1044 = vpop.f32.mrb[0].mxu0
      %v1045 = vadd.f32 0.0, %v1044
      %v1046 = vpop.f32.mrb[0].mxu0
      %1047 = vmatprep.mubr.bf16.mxu0 %v908
      %1048 = vmatmul.mubr.bf16.gmra.mrb[0].mxu0 %v782
      %v1049 = vpop.f32.mrb[0].mxu0
      %v1050 = vadd.f32 0.0, %v1049
      %v1051 = vpop.f32.mrb[0].mxu0
      %v1052 = vpop.f32.mrb[0].mxu0
      %v1053 = vadd.f32 0.0, %v1052
      %v1054 = vpop.f32.mrb[0].mxu0
      %1055 = vmatprep.mubr.bf16.mxu0 %v911
      %1056 = vmatmul.mubr.bf16.gmra.mrb[0].mxu0 %v784
      %v1057 = vpop.f32.mrb[0].mxu0
      %v1058 = vadd.f32 0.0, %v1057
      %v1059 = vpop.f32.mrb[0].mxu0
      %v1060 = vpop.f32.mrb[0].mxu0
      %v1061 = vadd.f32 0.0, %v1060
      %v1062 = vpop.f32.mrb[0].mxu0
      %1063 = vmatprep.mubr.bf16.mxu0 %v914
      %1064 = vmatmul.mubr.bf16.gmra.mrb[0].mxu0 %v786
      %v1065 = vpop.f32.mrb[0].mxu0
      %v1066 = vadd.f32 0.0, %v1065
      %v1067 = vpop.f32.mrb[0].mxu0
      %v1068 = vpop.f32.mrb[0].mxu0
      %v1069 = vadd.f32 0.0, %v1068
      %v1070 = vpop.f32.mrb[0].mxu0
      %1071 = vmatprep.mubr.bf16.mxu0 %v917
      %1072 = vmatmul.mubr.bf16.gmra.mrb[0].mxu0 %v788
      %v1073 = vpop.f32.mrb[0].mxu0
      %v1074 = vadd.f32 0.0, %v1073
      %v1075 = vpop.f32.mrb[0].mxu0
      %v1076 = vpop.f32.mrb[0].mxu0
      %v1077 = vadd.f32 0.0, %v1076
      %v1078 = vpop.f32.mrb[0].mxu0
      %1079 = vdwg.mxu0
      %v1080 = vld [vmem:[%s355] sm:$0xf]
      %v1081 = vld [vmem:[%s355 + $0x4] sm:$0xf]
      %v1082 = vld [vmem:[%s355 + $0x8] sm:$0xf]
      %v1083 = vld [vmem:[%s355 + $0xc] sm:$0xf]
      %v1084 = vld [vmem:[%s355 + $0x10] sm:$0xf]
      %v1085 = vld [vmem:[%s355 + $0x14] sm:$0xf]
      %v1086 = vld [vmem:[%s355 + $0x18] sm:$0xf]
      %v1087 = vld [vmem:[%s355 + $0x1c] sm:$0xf]
      %v1088 = vld [vmem:[%s355 + $0x20] sm:$0xf]
      %v1089 = vld [vmem:[%s355 + $0x24] sm:$0xf]
      %v1090 = vld [vmem:[%s355 + $0x28] sm:$0xf]
      %v1091 = vld [vmem:[%s355 + $0x2c] sm:$0xf]
      %v1092 = vld [vmem:[%s355 + $0x30] sm:$0xf]
      %v1093 = vld [vmem:[%s355 + $0x34] sm:$0xf]
      %v1094 = vld [vmem:[%s355 + $0x38] sm:$0xf]
      %v1095 = vld [vmem:[%s355 + $0x3c] sm:$0xf]
      %v1096 = vld [vmem:[%s355 + $0x40] sm:$0xf]
      %v1097 = vld [vmem:[%s355 + $0x44] sm:$0xf]
      %v1098 = vld [vmem:[%s355 + $0x48] sm:$0xf]
      %v1099 = vld [vmem:[%s355 + $0x4c] sm:$0xf]
      %v1100 = vld [vmem:[%s362] sm:$0x1]
      %v1102 = vlaneseq
      %v1103 = vshrl.u32 %v1102, 7
      %v1104 = vsub.s32 0, %v1103
      %v1105 = vrot.slane %v1100, %v1104
      %v1127 = vunpack.c.l.b16 %v1080
      %v1128 = vunpack.c.l.b16 %v1081
      %v1129 = vunpack.c.l.b16 %v1082
      %v1130 = vunpack.c.l.b16 %v1083
      %v1131 = vunpack.c.l.b16 %v1084
      %v1132 = vunpack.c.l.b16 %v1085
      %v1133 = vunpack.c.l.b16 %v1086
      %v1134 = vunpack.c.l.b16 %v1087
      %v1135 = vunpack.c.l.b16 %v1088
      %v1136 = vunpack.c.l.b16 %v1089
      %v1137 = vunpack.c.l.b16 %v1090
      %v1138 = vunpack.c.l.b16 %v1091
      %v1139 = vunpack.c.l.b16 %v1092
      %v1140 = vunpack.c.l.b16 %v1093
      %v1141 = vunpack.c.l.b16 %v1094
      %v1142 = vunpack.c.l.b16 %v1095
      %v1143 = vunpack.c.l.b16 %v1096
      %v1144 = vunpack.c.l.b16 %v1097
      %v1145 = vunpack.c.l.b16 %v1098
      %v1146 = vunpack.c.l.b16 %v1099
      %v1147 = vpack.c.b16 %v1128, %v1127
      %v1148 = vpack.c.b16 %v1130, %v1129
      %v1149 = vpack.c.b16 %v1132, %v1131
      %v1150 = vpack.c.b16 %v1134, %v1133
      %v1151 = vpack.c.b16 %v1136, %v1135
      %v1152 = vpack.c.b16 %v1138, %v1137
      %v1153 = vpack.c.b16 %v1140, %v1139
      %v1154 = vpack.c.b16 %v1142, %v1141
      %v1155 = vpack.c.b16 %v1144, %v1143
      %v1156 = vpack.c.b16 %v1146, %v1145
      %1167 = vmatprep.subr.bf16.mxu0 0
      %1168 = vmatpush1.bf16.msra.mxu0 %v1147
      %1169 = vmatprep.subr.bf16.mxu0 0
      %1170 = vmatpush1.bf16.msra.mxu0 %v1148
      %1171 = vmatprep.subr.bf16.mxu0 0
      %1172 = vmatpush1.bf16.msra.mxu0 %v1149
      %1173 = vmatprep.subr.bf16.mxu0 0
      %1174 = vmatpush1.bf16.msra.mxu0 %v1150
      %1175 = vmatprep.subr.bf16.mxu0 0
      %1176 = vmatpush1.bf16.msra.mxu0 %v1151
      %1177 = vmatprep.subr.bf16.mxu0 0
      %1178 = vmatpush1.bf16.msra.mxu0 %v1152
      %1179 = vmatprep.subr.bf16.mxu0 0
      %1180 = vmatpush1.bf16.msra.mxu0 %v1153
      %1181 = vmatprep.subr.bf16.mxu0 0
      %1182 = vmatpush1.bf16.msra.mxu0 %v1154
      %1183 = vmatprep.subr.bf16.mxu0 0
      %1184 = vmatpush1.bf16.msra.mxu0 %v1155
      %1185 = vmatprep.subr.bf16.mxu0 0
      %1186 = vmatpush1.bf16.msra.mxu0 %v1156
      %1187 = vmatprep.subr.bf16.mxu0 0
      %1188 = vmatpush1.bf16.msra.mxu0 0
      %1189 = vmatprep.subr.bf16.mxu0 0
      %1190 = vmatpush1.bf16.msra.mxu0 0
      %1191 = vmatprep.subr.bf16.mxu0 0
      %1192 = vmatpush1.bf16.msra.mxu0 0
      %1193 = vmatprep.subr.bf16.mxu0 0
      %1194 = vmatpush1.bf16.msra.mxu0 0
      %1195 = vmatprep.subr.bf16.mxu0 0
      %1196 = vmatpush1.bf16.msra.mxu0 0
      %1197 = vmatprep.subr.bf16.mxu0 0
      %1198 = vmatpush1.bf16.msra.mxu0 0
      %1199 = vmatprep.mubr.bf16.mxu0 %v872
      %1200 = vmatmul.mubr.bf16.gmra.mrb[0].mxu0 %v758
      %v1201 = vpop.f32.mrb[0].mxu0
      %v1202 = vadd.f32 %v1105, %v1201
      %v1203 = vpop.f32.mrb[0].mxu0
      %v1204 = vpop.f32.mrb[0].mxu0
      %v1205 = vadd.f32 %v1105, %v1204
      %v1206 = vpop.f32.mrb[0].mxu0
      %1207 = vmatprep.mubr.bf16.mxu0 %v875
      %1208 = vmatmul.mubr.bf16.gmra.mrb[0].mxu0 %v760
      %v1209 = vpop.f32.mrb[0].mxu0
      %v1210 = vadd.f32 %v1105, %v1209
      %v1211 = vpop.f32.mrb[0].mxu0
      %v1212 = vpop.f32.mrb[0].mxu0
      %v1213 = vadd.f32 %v1105, %v1212
      %v1214 = vpop.f32.mrb[0].mxu0
      %1215 = vmatprep.mubr.bf16.mxu0 %v878
      %1216 = vmatmul.mubr.bf16.gmra.mrb[0].mxu0 %v762
      %v1217 = vpop.f32.mrb[0].mxu0
      %v1218 = vadd.f32 %v1105, %v1217
      %v1219 = vpop.f32.mrb[0].mxu0
      %v1220 = vpop.f32.mrb[0].mxu0
      %v1221 = vadd.f32 %v1105, %v1220
      %v1222 = vpop.f32.mrb[0].mxu0
      %1223 = vmatprep.mubr.bf16.mxu0 %v881
      %1224 = vmatmul.mubr.bf16.gmra.mrb[0].mxu0 %v764
      %v1225 = vpop.f32.mrb[0].mxu0
      %v1226 = vadd.f32 %v1105, %v1225
      %v1227 = vpop.f32.mrb[0].mxu0
      %v1228 = vpop.f32.mrb[0].mxu0
      %v1229 = vadd.f32 %v1105, %v1228
      %v1230 = vpop.f32.mrb[0].mxu0
      %1231 = vmatprep.mubr.bf16.mxu0 %v884
      %1232 = vmatmul.mubr.bf16.gmra.mrb[0].mxu0 %v766
      %v1233 = vpop.f32.mrb[0].mxu0
      %v1234 = vadd.f32 %v1105, %v1233
      %v1235 = vpop.f32.mrb[0].mxu0
      %v1236 = vpop.f32.mrb[0].mxu0
      %v1237 = vadd.f32 %v1105, %v1236
      %v1238 = vpop.f32.mrb[0].mxu0
      %1239 = vmatprep.mubr.bf16.mxu0 %v887
      %1240 = vmatmul.mubr.bf16.gmra.mrb[0].mxu0 %v768
      %v1241 = vpop.f32.mrb[0].mxu0
      %v1242 = vadd.f32 %v1105, %v1241
      %v1243 = vpop.f32.mrb[0].mxu0
      %v1244 = vpop.f32.mrb[0].mxu0
      %v1245 = vadd.f32 %v1105, %v1244
      %v1246 = vpop.f32.mrb[0].mxu0
      %1247 = vmatprep.mubr.bf16.mxu0 %v890
      %1248 = vmatmul.mubr.bf16.gmra.mrb[0].mxu0 %v770
      %v1249 = vpop.f32.mrb[0].mxu0
      %v1250 = vadd.f32 %v1105, %v1249
      %v1251 = vpop.f32.mrb[0].mxu0
      %v1252 = vpop.f32.mrb[0].mxu0
      %v1253 = vadd.f32 %v1105, %v1252
      %v1254 = vpop.f32.mrb[0].mxu0
      %1255 = vmatprep.mubr.bf16.mxu0 %v893
      %1256 = vmatmul.mubr.bf16.gmra.mrb[0].mxu0 %v772
      %v1257 = vpop.f32.mrb[0].mxu0
      %v1258 = vadd.f32 %v1105, %v1257
      %v1259 = vpop.f32.mrb[0].mxu0
      %v1260 = vpop.f32.mrb[0].mxu0
      %v1261 = vadd.f32 %v1105, %v1260
      %v1262 = vpop.f32.mrb[0].mxu0
      %1263 = vmatprep.mubr.bf16.mxu0 %v896
      %1264 = vmatmul.mubr.bf16.gmra.mrb[0].mxu0 %v774
      %v1265 = vpop.f32.mrb[0].mxu0
      %v1266 = vadd.f32 %v1105, %v1265
      %v1267 = vpop.f32.mrb[0].mxu0
      %v1268 = vpop.f32.mrb[0].mxu0
      %v1269 = vadd.f32 %v1105, %v1268
      %v1270 = vpop.f32.mrb[0].mxu0
      %1271 = vmatprep.mubr.bf16.mxu0 %v899
      %1272 = vmatmul.mubr.bf16.gmra.mrb[0].mxu0 %v776
      %v1273 = vpop.f32.mrb[0].mxu0
      %v1274 = vadd.f32 %v1105, %v1273
      %v1275 = vpop.f32.mrb[0].mxu0
      %v1276 = vpop.f32.mrb[0].mxu0
      %v1277 = vadd.f32 %v1105, %v1276
      %v1278 = vpop.f32.mrb[0].mxu0
      %1279 = vmatprep.mubr.bf16.mxu0 %v902
      %1280 = vmatmul.mubr.bf16.gmra.mrb[0].mxu0 %v778
      %v1281 = vpop.f32.mrb[0].mxu0
      %v1282 = vadd.f32 %v1105, %v1281
      %v1283 = vpop.f32.mrb[0].mxu0
      %v1284 = vpop.f32.mrb[0].mxu0
      %v1285 = vadd.f32 %v1105, %v1284
      %v1286 = vpop.f32.mrb[0].mxu0
      %1287 = vmatprep.mubr.bf16.mxu0 %v905
      %1288 = vmatmul.mubr.bf16.gmra.mrb[0].mxu0 %v780
      %v1289 = vpop.f32.mrb[0].mxu0
      %v1290 = vadd.f32 %v1105, %v1289
      %v1291 = vpop.f32.mrb[0].mxu0
      %v1292 = vpop.f32.mrb[0].mxu0
      %v1293 = vadd.f32 %v1105, %v1292
      %v1294 = vpop.f32.mrb[0].mxu0
      %1295 = vmatprep.mubr.bf16.mxu0 %v908
      %1296 = vmatmul.mubr.bf16.gmra.mrb[0].mxu0 %v782
      %v1297 = vpop.f32.mrb[0].mxu0
      %v1298 = vadd.f32 %v1105, %v1297
      %v1299 = vpop.f32.mrb[0].mxu0
      %v1300 = vpop.f32.mrb[0].mxu0
      %v1301 = vadd.f32 %v1105, %v1300
      %v1302 = vpop.f32.mrb[0].mxu0
      %1303 = vmatprep.mubr.bf16.mxu0 %v911
      %1304 = vmatmul.mubr.bf16.gmra.mrb[0].mxu0 %v784
      %v1305 = vpop.f32.mrb[0].mxu0
      %v1306 = vadd.f32 %v1105, %v1305
      %v1307 = vpop.f32.mrb[0].mxu0
      %v1308 = vpop.f32.mrb[0].mxu0
      %v1309 = vadd.f32 %v1105, %v1308
      %v1310 = vpop.f32.mrb[0].mxu0
      %1311 = vmatprep.mubr.bf16.mxu0 %v914
      %1312 = vmatmul.mubr.bf16.gmra.mrb[0].mxu0 %v786
      %v1313 = vpop.f32.mrb[0].mxu0
      %v1314 = vadd.f32 %v1105, %v1313
      %v1315 = vpop.f32.mrb[0].mxu0
      %v1316 = vpop.f32.mrb[0].mxu0
      %v1317 = vadd.f32 %v1105, %v1316
      %v1318 = vpop.f32.mrb[0].mxu0
      %1319 = vmatprep.mubr.bf16.mxu0 %v917
      %1320 = vmatmul.mubr.bf16.gmra.mrb[0].mxu0 %v788
      %v1321 = vpop.f32.mrb[0].mxu0
      %v1322 = vadd.f32 %v1105, %v1321
      %v1323 = vpop.f32.mrb[0].mxu0
      %v1324 = vpop.f32.mrb[0].mxu0
      %v1325 = vadd.f32 %v1105, %v1324
      %v1326 = vpop.f32.mrb[0].mxu0
      %1327 = vdwg.mxu0
      %v1328 = vsel %vm870, %v1202, 0.0
      %1329 = vadd.xlane.f32.xlu0 %v1328
      %v1330 = vpop.xlane.xlu0 %1329
      %v1331 = vsel %vm870, %v1205, 0.0
      %1332 = vadd.xlane.f32.xlu0 %v1331
      %v1333 = vpop.xlane.xlu0 %1332
      %v1334 = vsel %vm870, %v1210, 0.0
      %1335 = vadd.xlane.f32.xlu0 %v1334
      %v1336 = vpop.xlane.xlu0 %1335
      %v1337 = vsel %vm870, %v1213, 0.0
      %1338 = vadd.xlane.f32.xlu0 %v1337
      %v1339 = vpop.xlane.xlu0 %1338
      %v1340 = vsel %vm870, %v1218, 0.0
      %1341 = vadd.xlane.f32.xlu0 %v1340
      %v1342 = vpop.xlane.xlu0 %1341
      %v1343 = vsel %vm870, %v1221, 0.0
      %1344 = vadd.xlane.f32.xlu0 %v1343
      %v1345 = vpop.xlane.xlu0 %1344
      %v1346 = vsel %vm870, %v1226, 0.0
      %1347 = vadd.xlane.f32.xlu0 %v1346
      %v1348 = vpop.xlane.xlu0 %1347
      %v1349 = vsel %vm870, %v1229, 0.0
      %1350 = vadd.xlane.f32.xlu0 %v1349
      %v1351 = vpop.xlane.xlu0 %1350
      %v1352 = vsel %vm870, %v1234, 0.0
      %1353 = vadd.xlane.f32.xlu0 %v1352
      %v1354 = vpop.xlane.xlu0 %1353
      %v1355 = vsel %vm870, %v1237, 0.0
      %1356 = vadd.xlane.f32.xlu0 %v1355
      %v1357 = vpop.xlane.xlu0 %1356
      %v1358 = vsel %vm870, %v1242, 0.0
      %1359 = vadd.xlane.f32.xlu0 %v1358
      %v1360 = vpop.xlane.xlu0 %1359
      %v1361 = vsel %vm870, %v1245, 0.0
      %1362 = vadd.xlane.f32.xlu0 %v1361
      %v1363 = vpop.xlane.xlu0 %1362
      %v1364 = vsel %vm870, %v1250, 0.0
      %1365 = vadd.xlane.f32.xlu0 %v1364
      %v1366 = vpop.xlane.xlu0 %1365
      %v1367 = vsel %vm870, %v1253, 0.0
      %1368 = vadd.xlane.f32.xlu0 %v1367
      %v1369 = vpop.xlane.xlu0 %1368
      %v1370 = vsel %vm870, %v1258, 0.0
      %1371 = vadd.xlane.f32.xlu0 %v1370
      %v1372 = vpop.xlane.xlu0 %1371
      %v1373 = vsel %vm870, %v1261, 0.0
      %1374 = vadd.xlane.f32.xlu0 %v1373
      %v1375 = vpop.xlane.xlu0 %1374
      %v1376 = vsel %vm870, %v1266, 0.0
      %1377 = vadd.xlane.f32.xlu0 %v1376
      %v1378 = vpop.xlane.xlu0 %1377
      %v1379 = vsel %vm870, %v1269, 0.0
      %1380 = vadd.xlane.f32.xlu0 %v1379
      %v1381 = vpop.xlane.xlu0 %1380
      %v1382 = vsel %vm870, %v1274, 0.0
      %1383 = vadd.xlane.f32.xlu0 %v1382
      %v1384 = vpop.xlane.xlu0 %1383
      %v1385 = vsel %vm870, %v1277, 0.0
      %1386 = vadd.xlane.f32.xlu0 %v1385
      %v1387 = vpop.xlane.xlu0 %1386
      %v1388 = vsel %vm870, %v1282, 0.0
      %1389 = vadd.xlane.f32.xlu0 %v1388
      %v1390 = vpop.xlane.xlu0 %1389
      %v1391 = vsel %vm870, %v1285, 0.0
      %1392 = vadd.xlane.f32.xlu0 %v1391
      %v1393 = vpop.xlane.xlu0 %1392
      %v1394 = vsel %vm870, %v1290, 0.0
      %1395 = vadd.xlane.f32.xlu0 %v1394
      %v1396 = vpop.xlane.xlu0 %1395
      %v1397 = vsel %vm870, %v1293, 0.0
      %1398 = vadd.xlane.f32.xlu0 %v1397
      %v1399 = vpop.xlane.xlu0 %1398
      %v1400 = vsel %vm870, %v1298, 0.0
      %1401 = vadd.xlane.f32.xlu0 %v1400
      %v1402 = vpop.xlane.xlu0 %1401
      %v1403 = vsel %vm870, %v1301, 0.0
      %1404 = vadd.xlane.f32.xlu0 %v1403
      %v1405 = vpop.xlane.xlu0 %1404
      %v1406 = vsel %vm870, %v1306, 0.0
      %1407 = vadd.xlane.f32.xlu0 %v1406
      %v1408 = vpop.xlane.xlu0 %1407
      %v1409 = vsel %vm870, %v1309, 0.0
      %1410 = vadd.xlane.f32.xlu0 %v1409
      %v1411 = vpop.xlane.xlu0 %1410
      %v1412 = vsel %vm870, %v1314, 0.0
      %1413 = vadd.xlane.f32.xlu0 %v1412
      %v1414 = vpop.xlane.xlu0 %1413
      %v1415 = vsel %vm870, %v1317, 0.0
      %1416 = vadd.xlane.f32.xlu0 %v1415
      %v1417 = vpop.xlane.xlu0 %1416
      %v1418 = vsel %vm870, %v1322, 0.0
      %1419 = vadd.xlane.f32.xlu0 %v1418
      %v1420 = vpop.xlane.xlu0 %1419
      %v1421 = vsel %vm870, %v1325, 0.0
      %1422 = vadd.xlane.f32.xlu0 %v1421
      %v1423 = vpop.xlane.xlu0 %1422
      %v1424 = vrcp.pop 32.0
      %v1425 = vmul.f32 %v1330, %v1424
      %v1426 = vmul.f32 %v1333, %v1424
      %v1427 = vmul.f32 %v1336, %v1424
      %v1428 = vmul.f32 %v1339, %v1424
      %v1429 = vmul.f32 %v1342, %v1424
      %v1430 = vmul.f32 %v1345, %v1424
      %v1431 = vmul.f32 %v1348, %v1424
      %v1432 = vmul.f32 %v1351, %v1424
      %v1433 = vmul.f32 %v1354, %v1424
      %v1434 = vmul.f32 %v1357, %v1424
      %v1435 = vmul.f32 %v1360, %v1424
      %v1436 = vmul.f32 %v1363, %v1424
      %v1437 = vmul.f32 %v1366, %v1424
      %v1438 = vmul.f32 %v1369, %v1424
      %v1439 = vmul.f32 %v1372, %v1424
      %v1440 = vmul.f32 %v1375, %v1424
      %v1441 = vmul.f32 %v1378, %v1424
      %v1442 = vmul.f32 %v1381, %v1424
      %v1443 = vmul.f32 %v1384, %v1424
      %v1444 = vmul.f32 %v1387, %v1424
      %v1445 = vmul.f32 %v1390, %v1424
      %v1446 = vmul.f32 %v1393, %v1424
      %v1447 = vmul.f32 %v1396, %v1424
      %v1448 = vmul.f32 %v1399, %v1424
      %v1449 = vmul.f32 %v1402, %v1424
      %v1450 = vmul.f32 %v1405, %v1424
      %v1451 = vmul.f32 %v1408, %v1424
      %v1452 = vmul.f32 %v1411, %v1424
      %v1453 = vmul.f32 %v1414, %v1424
      %v1454 = vmul.f32 %v1417, %v1424
      %v1455 = vmul.f32 %v1420, %v1424
      %v1456 = vmul.f32 %v1423, %v1424
      %v1457 = vsub.f32 %v1202, %v1425
      %v1458 = vsub.f32 %v1205, %v1426
      %v1459 = vsub.f32 %v1210, %v1427
      %v1460 = vsub.f32 %v1213, %v1428
      %v1461 = vsub.f32 %v1218, %v1429
      %v1462 = vsub.f32 %v1221, %v1430
      %v1463 = vsub.f32 %v1226, %v1431
      %v1464 = vsub.f32 %v1229, %v1432
      %v1465 = vsub.f32 %v1234, %v1433
      %v1466 = vsub.f32 %v1237, %v1434
      %v1467 = vsub.f32 %v1242, %v1435
      %v1468 = vsub.f32 %v1245, %v1436
      %v1469 = vsub.f32 %v1250, %v1437
      %v1470 = vsub.f32 %v1253, %v1438
      %v1471 = vsub.f32 %v1258, %v1439
      %v1472 = vsub.f32 %v1261, %v1440
      %v1473 = vsub.f32 %v1266, %v1441
      %v1474 = vsub.f32 %v1269, %v1442
      %v1475 = vsub.f32 %v1274, %v1443
      %v1476 = vsub.f32 %v1277, %v1444
      %v1477 = vsub.f32 %v1282, %v1445
      %v1478 = vsub.f32 %v1285, %v1446
      %v1479 = vsub.f32 %v1290, %v1447
      %v1480 = vsub.f32 %v1293, %v1448
      %v1481 = vsub.f32 %v1298, %v1449
      %v1482 = vsub.f32 %v1301, %v1450
      %v1483 = vsub.f32 %v1306, %v1451
      %v1484 = vsub.f32 %v1309, %v1452
      %v1485 = vsub.f32 %v1314, %v1453
      %v1486 = vsub.f32 %v1317, %v1454
      %v1487 = vsub.f32 %v1322, %v1455
      %v1488 = vsub.f32 %v1325, %v1456
      %v1489 = vmul.f32 %v1457, %v1457
      %v1490 = vmul.f32 %v1458, %v1458
      %v1491 = vmul.f32 %v1459, %v1459
      %v1492 = vmul.f32 %v1460, %v1460
      %v1493 = vmul.f32 %v1461, %v1461
      %v1494 = vmul.f32 %v1462, %v1462
      %v1495 = vmul.f32 %v1463, %v1463
      %v1496 = vmul.f32 %v1464, %v1464
      %v1497 = vmul.f32 %v1465, %v1465
      %v1498 = vmul.f32 %v1466, %v1466
      %v1499 = vmul.f32 %v1467, %v1467
      %v1500 = vmul.f32 %v1468, %v1468
      %v1501 = vmul.f32 %v1469, %v1469
      %v1502 = vmul.f32 %v1470, %v1470
      %v1503 = vmul.f32 %v1471, %v1471
      %v1504 = vmul.f32 %v1472, %v1472
      %v1505 = vmul.f32 %v1473, %v1473
      %v1506 = vmul.f32 %v1474, %v1474
      %v1507 = vmul.f32 %v1475, %v1475
      %v1508 = vmul.f32 %v1476, %v1476
      %v1509 = vmul.f32 %v1477, %v1477
      %v1510 = vmul.f32 %v1478, %v1478
      %v1511 = vmul.f32 %v1479, %v1479
      %v1512 = vmul.f32 %v1480, %v1480
      %v1513 = vmul.f32 %v1481, %v1481
      %v1514 = vmul.f32 %v1482, %v1482
      %v1515 = vmul.f32 %v1483, %v1483
      %v1516 = vmul.f32 %v1484, %v1484
      %v1517 = vmul.f32 %v1485, %v1485
      %v1518 = vmul.f32 %v1486, %v1486
      %v1519 = vmul.f32 %v1487, %v1487
      %v1520 = vmul.f32 %v1488, %v1488
      %v1521 = vsel %vm870, %v1489, 0.0
      %1522 = vadd.xlane.f32.xlu0 %v1521
      %v1523 = vpop.xlane.xlu0 %1522
      %v1524 = vsel %vm870, %v1490, 0.0
      %1525 = vadd.xlane.f32.xlu0 %v1524
      %v1526 = vpop.xlane.xlu0 %1525
      %v1527 = vsel %vm870, %v1491, 0.0
      %1528 = vadd.xlane.f32.xlu0 %v1527
      %v1529 = vpop.xlane.xlu0 %1528
      %v1530 = vsel %vm870, %v1492, 0.0
      %1531 = vadd.xlane.f32.xlu0 %v1530
      %v1532 = vpop.xlane.xlu0 %1531
      %v1533 = vsel %vm870, %v1493, 0.0
      %1534 = vadd.xlane.f32.xlu0 %v1533
      %v1535 = vpop.xlane.xlu0 %1534
      %v1536 = vsel %vm870, %v1494, 0.0
      %1537 = vadd.xlane.f32.xlu0 %v1536
      %v1538 = vpop.xlane.xlu0 %1537
      %v1539 = vsel %vm870, %v1495, 0.0
      %1540 = vadd.xlane.f32.xlu0 %v1539
      %v1541 = vpop.xlane.xlu0 %1540
      %v1542 = vsel %vm870, %v1496, 0.0
      %1543 = vadd.xlane.f32.xlu0 %v1542
      %v1544 = vpop.xlane.xlu0 %1543
      %v1545 = vsel %vm870, %v1497, 0.0
      %1546 = vadd.xlane.f32.xlu0 %v1545
      %v1547 = vpop.xlane.xlu0 %1546
      %v1548 = vsel %vm870, %v1498, 0.0
      %1549 = vadd.xlane.f32.xlu0 %v1548
      %v1550 = vpop.xlane.xlu0 %1549
      %v1551 = vsel %vm870, %v1499, 0.0
      %1552 = vadd.xlane.f32.xlu0 %v1551
      %v1553 = vpop.xlane.xlu0 %1552
      %v1554 = vsel %vm870, %v1500, 0.0
      %1555 = vadd.xlane.f32.xlu0 %v1554
      %v1556 = vpop.xlane.xlu0 %1555
      %v1557 = vsel %vm870, %v1501, 0.0
      %1558 = vadd.xlane.f32.xlu0 %v1557
      %v1559 = vpop.xlane.xlu0 %1558
      %v1560 = vsel %vm870, %v1502, 0.0
      %1561 = vadd.xlane.f32.xlu0 %v1560
      %v1562 = vpop.xlane.xlu0 %1561
      %v1563 = vsel %vm870, %v1503, 0.0
      %1564 = vadd.xlane.f32.xlu0 %v1563
      %v1565 = vpop.xlane.xlu0 %1564
      %v1566 = vsel %vm870, %v1504, 0.0
      %1567 = vadd.xlane.f32.xlu0 %v1566
      %v1568 = vpop.xlane.xlu0 %1567
      %v1569 = vsel %vm870, %v1505, 0.0
      %1570 = vadd.xlane.f32.xlu0 %v1569
      %v1571 = vpop.xlane.xlu0 %1570
      %v1572 = vsel %vm870, %v1506, 0.0
      %1573 = vadd.xlane.f32.xlu0 %v1572
      %v1574 = vpop.xlane.xlu0 %1573
      %v1575 = vsel %vm870, %v1507, 0.0
      %1576 = vadd.xlane.f32.xlu0 %v1575
      %v1577 = vpop.xlane.xlu0 %1576
      %v1578 = vsel %vm870, %v1508, 0.0
      %1579 = vadd.xlane.f32.xlu0 %v1578
      %v1580 = vpop.xlane.xlu0 %1579
      %v1581 = vsel %vm870, %v1509, 0.0
      %1582 = vadd.xlane.f32.xlu0 %v1581
      %v1583 = vpop.xlane.xlu0 %1582
      %v1584 = vsel %vm870, %v1510, 0.0
      %1585 = vadd.xlane.f32.xlu0 %v1584
      %v1586 = vpop.xlane.xlu0 %1585
      %v1587 = vsel %vm870, %v1511, 0.0
      %1588 = vadd.xlane.f32.xlu0 %v1587
      %v1589 = vpop.xlane.xlu0 %1588
      %v1590 = vsel %vm870, %v1512, 0.0
      %1591 = vadd.xlane.f32.xlu0 %v1590
      %v1592 = vpop.xlane.xlu0 %1591
      %v1593 = vsel %vm870, %v1513, 0.0
      %1594 = vadd.xlane.f32.xlu0 %v1593
      %v1595 = vpop.xlane.xlu0 %1594
      %v1596 = vsel %vm870, %v1514, 0.0
      %1597 = vadd.xlane.f32.xlu0 %v1596
      %v1598 = vpop.xlane.xlu0 %1597
      %v1599 = vsel %vm870, %v1515, 0.0
      %1600 = vadd.xlane.f32.xlu0 %v1599
      %v1601 = vpop.xlane.xlu0 %1600
      %v1602 = vsel %vm870, %v1516, 0.0
      %1603 = vadd.xlane.f32.xlu0 %v1602
      %v1604 = vpop.xlane.xlu0 %1603
      %v1605 = vsel %vm870, %v1517, 0.0
      %1606 = vadd.xlane.f32.xlu0 %v1605
      %v1607 = vpop.xlane.xlu0 %1606
      %v1608 = vsel %vm870, %v1518, 0.0
      %1609 = vadd.xlane.f32.xlu0 %v1608
      %v1610 = vpop.xlane.xlu0 %1609
      %v1611 = vsel %vm870, %v1519, 0.0
      %1612 = vadd.xlane.f32.xlu0 %v1611
      %v1613 = vpop.xlane.xlu0 %1612
      %v1614 = vsel %vm870, %v1520, 0.0
      %1615 = vadd.xlane.f32.xlu0 %v1614
      %v1616 = vpop.xlane.xlu0 %1615
      %v1617 = vmul.f32 %v1523, %v1424
      %v1618 = vmul.f32 %v1526, %v1424
      %v1619 = vmul.f32 %v1529, %v1424
      %v1620 = vmul.f32 %v1532, %v1424
      %v1621 = vmul.f32 %v1535, %v1424
      %v1622 = vmul.f32 %v1538, %v1424
      %v1623 = vmul.f32 %v1541, %v1424
      %v1624 = vmul.f32 %v1544, %v1424
      %v1625 = vmul.f32 %v1547, %v1424
      %v1626 = vmul.f32 %v1550, %v1424
      %v1627 = vmul.f32 %v1553, %v1424
      %v1628 = vmul.f32 %v1556, %v1424
      %v1629 = vmul.f32 %v1559, %v1424
      %v1630 = vmul.f32 %v1562, %v1424
      %v1631 = vmul.f32 %v1565, %v1424
      %v1632 = vmul.f32 %v1568, %v1424
      %v1633 = vmul.f32 %v1571, %v1424
      %v1634 = vmul.f32 %v1574, %v1424
      %v1635 = vmul.f32 %v1577, %v1424
      %v1636 = vmul.f32 %v1580, %v1424
      %v1637 = vmul.f32 %v1583, %v1424
      %v1638 = vmul.f32 %v1586, %v1424
      %v1639 = vmul.f32 %v1589, %v1424
      %v1640 = vmul.f32 %v1592, %v1424
      %v1641 = vmul.f32 %v1595, %v1424
      %v1642 = vmul.f32 %v1598, %v1424
      %v1643 = vmul.f32 %v1601, %v1424
      %v1644 = vmul.f32 %v1604, %v1424
      %v1645 = vmul.f32 %v1607, %v1424
      %v1646 = vmul.f32 %v1610, %v1424
      %v1647 = vmul.f32 %v1613, %v1424
      %v1648 = vmul.f32 %v1616, %v1424
      %v1649 = vadd.f32 %v1617, 1e-05
      %v1650 = vadd.f32 %v1618, 1e-05
      %v1651 = vadd.f32 %v1619, 1e-05
      %v1652 = vadd.f32 %v1620, 1e-05
      %v1653 = vadd.f32 %v1621, 1e-05
      %v1654 = vadd.f32 %v1622, 1e-05
      %v1655 = vadd.f32 %v1623, 1e-05
      %v1656 = vadd.f32 %v1624, 1e-05
      %v1657 = vadd.f32 %v1625, 1e-05
      %v1658 = vadd.f32 %v1626, 1e-05
      %v1659 = vadd.f32 %v1627, 1e-05
      %v1660 = vadd.f32 %v1628, 1e-05
      %v1661 = vadd.f32 %v1629, 1e-05
      %v1662 = vadd.f32 %v1630, 1e-05
      %v1663 = vadd.f32 %v1631, 1e-05
      %v1664 = vadd.f32 %v1632, 1e-05
      %v1665 = vadd.f32 %v1633, 1e-05
      %v1666 = vadd.f32 %v1634, 1e-05
      %v1667 = vadd.f32 %v1635, 1e-05
      %v1668 = vadd.f32 %v1636, 1e-05
      %v1669 = vadd.f32 %v1637, 1e-05
      %v1670 = vadd.f32 %v1638, 1e-05
      %v1671 = vadd.f32 %v1639, 1e-05
      %v1672 = vadd.f32 %v1640, 1e-05
      %v1673 = vadd.f32 %v1641, 1e-05
      %v1674 = vadd.f32 %v1642, 1e-05
      %v1675 = vadd.f32 %v1643, 1e-05
      %v1676 = vadd.f32 %v1644, 1e-05
      %v1677 = vadd.f32 %v1645, 1e-05
      %v1678 = vadd.f32 %v1646, 1e-05
      %v1679 = vadd.f32 %v1647, 1e-05
      %v1680 = vadd.f32 %v1648, 1e-05
      %v1681 = vrsqrt.pop %v1649
      %v1682 = vrsqrt.pop %v1650
      %v1683 = vrsqrt.pop %v1651
      %v1684 = vrsqrt.pop %v1652
      %v1685 = vrsqrt.pop %v1653
      %v1686 = vrsqrt.pop %v1654
      %v1687 = vrsqrt.pop %v1655
      %v1688 = vrsqrt.pop %v1656
      %v1689 = vrsqrt.pop %v1657
      %v1690 = vrsqrt.pop %v1658
      %v1691 = vrsqrt.pop %v1659
      %v1692 = vrsqrt.pop %v1660
      %v1693 = vrsqrt.pop %v1661
      %v1694 = vrsqrt.pop %v1662
      %v1695 = vrsqrt.pop %v1663
      %v1696 = vrsqrt.pop %v1664
      %v1697 = vrsqrt.pop %v1665
      %v1698 = vrsqrt.pop %v1666
      %v1699 = vrsqrt.pop %v1667
      %v1700 = vrsqrt.pop %v1668
      %v1701 = vrsqrt.pop %v1669
      %v1702 = vrsqrt.pop %v1670
      %v1703 = vrsqrt.pop %v1671
      %v1704 = vrsqrt.pop %v1672
      %v1705 = vrsqrt.pop %v1673
      %v1706 = vrsqrt.pop %v1674
      %v1707 = vrsqrt.pop %v1675
      %v1708 = vrsqrt.pop %v1676
      %v1709 = vrsqrt.pop %v1677
      %v1710 = vrsqrt.pop %v1678
      %v1711 = vrsqrt.pop %v1679
      %v1712 = vrsqrt.pop %v1680
      %v1713 = vmul.f32 %v1457, %v1681
      %v1714 = vmul.f32 %v1458, %v1682
      %v1715 = vmul.f32 %v1459, %v1683
      %v1716 = vmul.f32 %v1460, %v1684
      %v1717 = vmul.f32 %v1461, %v1685
      %v1718 = vmul.f32 %v1462, %v1686
      %v1719 = vmul.f32 %v1463, %v1687
      %v1720 = vmul.f32 %v1464, %v1688
      %v1721 = vmul.f32 %v1465, %v1689
      %v1722 = vmul.f32 %v1466, %v1690
      %v1723 = vmul.f32 %v1467, %v1691
      %v1724 = vmul.f32 %v1468, %v1692
      %v1725 = vmul.f32 %v1469, %v1693
      %v1726 = vmul.f32 %v1470, %v1694
      %v1727 = vmul.f32 %v1471, %v1695
      %v1728 = vmul.f32 %v1472, %v1696
      %v1729 = vmul.f32 %v1473, %v1697
      %v1730 = vmul.f32 %v1474, %v1698
      %v1731 = vmul.f32 %v1475, %v1699
      %v1732 = vmul.f32 %v1476, %v1700
      %v1733 = vmul.f32 %v1477, %v1701
      %v1734 = vmul.f32 %v1478, %v1702
      %v1735 = vmul.f32 %v1479, %v1703
      %v1736 = vmul.f32 %v1480, %v1704
      %v1737 = vmul.f32 %v1481, %v1705
      %v1738 = vmul.f32 %v1482, %v1706
      %v1739 = vmul.f32 %v1483, %v1707
      %v1740 = vmul.f32 %v1484, %v1708
      %v1741 = vmul.f32 %v1485, %v1709
      %v1742 = vmul.f32 %v1486, %v1710
      %v1743 = vmul.f32 %v1487, %v1711
      %v1744 = vmul.f32 %v1488, %v1712
      %v1745 = vmax.f32 %v1713, 0.0
      %v1746 = vmax.f32 %v1714, 0.0
      %v1747 = vmax.f32 %v1715, 0.0
      %v1748 = vmax.f32 %v1716, 0.0
      %v1749 = vmax.f32 %v1717, 0.0
      %v1750 = vmax.f32 %v1718, 0.0
      %v1751 = vmax.f32 %v1719, 0.0
      %v1752 = vmax.f32 %v1720, 0.0
      %v1753 = vmax.f32 %v1721, 0.0
      %v1754 = vmax.f32 %v1722, 0.0
      %v1755 = vmax.f32 %v1723, 0.0
      %v1756 = vmax.f32 %v1724, 0.0
      %v1757 = vmax.f32 %v1725, 0.0
      %v1758 = vmax.f32 %v1726, 0.0
      %v1759 = vmax.f32 %v1727, 0.0
      %v1760 = vmax.f32 %v1728, 0.0
      %v1761 = vmax.f32 %v1729, 0.0
      %v1762 = vmax.f32 %v1730, 0.0
      %v1763 = vmax.f32 %v1731, 0.0
      %v1764 = vmax.f32 %v1732, 0.0
      %v1765 = vmax.f32 %v1733, 0.0
      %v1766 = vmax.f32 %v1734, 0.0
      %v1767 = vmax.f32 %v1735, 0.0
      %v1768 = vmax.f32 %v1736, 0.0
      %v1769 = vmax.f32 %v1737, 0.0
      %v1770 = vmax.f32 %v1738, 0.0
      %v1771 = vmax.f32 %v1739, 0.0
      %v1772 = vmax.f32 %v1740, 0.0
      %v1773 = vmax.f32 %v1741, 0.0
      %v1774 = vmax.f32 %v1742, 0.0
      %v1775 = vmax.f32 %v1743, 0.0
      %v1776 = vmax.f32 %v1744, 0.0
      %v1777 = vmul.f32 %v1745, 0.3
      %v1778 = vmul.f32 %v1746, 0.3
      %v1779 = vmul.f32 %v1747, 0.3
      %v1780 = vmul.f32 %v1748, 0.3
      %v1781 = vmul.f32 %v1749, 0.3
      %v1782 = vmul.f32 %v1750, 0.3
      %v1783 = vmul.f32 %v1751, 0.3
      %v1784 = vmul.f32 %v1752, 0.3
      %v1785 = vmul.f32 %v1753, 0.3
      %v1786 = vmul.f32 %v1754, 0.3
      %v1787 = vmul.f32 %v1755, 0.3
      %v1788 = vmul.f32 %v1756, 0.3
      %v1789 = vmul.f32 %v1757, 0.3
      %v1790 = vmul.f32 %v1758, 0.3
      %v1791 = vmul.f32 %v1759, 0.3
      %v1792 = vmul.f32 %v1760, 0.3
      %v1793 = vmul.f32 %v1761, 0.3
      %v1794 = vmul.f32 %v1762, 0.3
      %v1795 = vmul.f32 %v1763, 0.3
      %v1796 = vmul.f32 %v1764, 0.3
      %v1797 = vmul.f32 %v1765, 0.3
      %v1798 = vmul.f32 %v1766, 0.3
      %v1799 = vmul.f32 %v1767, 0.3
      %v1800 = vmul.f32 %v1768, 0.3
      %v1801 = vmul.f32 %v1769, 0.3
      %v1802 = vmul.f32 %v1770, 0.3
      %v1803 = vmul.f32 %v1771, 0.3
      %v1804 = vmul.f32 %v1772, 0.3
      %v1805 = vmul.f32 %v1773, 0.3
      %v1806 = vmul.f32 %v1774, 0.3
      %v1807 = vmul.f32 %v1775, 0.3
      %v1808 = vmul.f32 %v1776, 0.3
      %v1809 = vadd.f32 %v1777, %v954
      %v1810 = vadd.f32 %v1778, %v957
      %v1811 = vadd.f32 %v1779, %v962
      %v1812 = vadd.f32 %v1780, %v965
      %v1813 = vadd.f32 %v1781, %v970
      %v1814 = vadd.f32 %v1782, %v973
      %v1815 = vadd.f32 %v1783, %v978
      %v1816 = vadd.f32 %v1784, %v981
      %v1817 = vadd.f32 %v1785, %v986
      %v1818 = vadd.f32 %v1786, %v989
      %v1819 = vadd.f32 %v1787, %v994
      %v1820 = vadd.f32 %v1788, %v997
      %v1821 = vadd.f32 %v1789, %v1002
      %v1822 = vadd.f32 %v1790, %v1005
      %v1823 = vadd.f32 %v1791, %v1010
      %v1824 = vadd.f32 %v1792, %v1013
      %v1825 = vadd.f32 %v1793, %v1018
      %v1826 = vadd.f32 %v1794, %v1021
      %v1827 = vadd.f32 %v1795, %v1026
      %v1828 = vadd.f32 %v1796, %v1029
      %v1829 = vadd.f32 %v1797, %v1034
      %v1830 = vadd.f32 %v1798, %v1037
      %v1831 = vadd.f32 %v1799, %v1042
      %v1832 = vadd.f32 %v1800, %v1045
      %v1833 = vadd.f32 %v1801, %v1050
      %v1834 = vadd.f32 %v1802, %v1053
      %v1835 = vadd.f32 %v1803, %v1058
      %v1836 = vadd.f32 %v1804, %v1061
      %v1837 = vadd.f32 %v1805, %v1066
      %v1838 = vadd.f32 %v1806, %v1069
      %v1839 = vadd.f32 %v1807, %v1074
      %v1840 = vadd.f32 %v1808, %v1077
      %v1841 = vpack.c.bf16 %v1810, %v1809
      %v1842 = vpack.c.bf16 %v1812, %v1811
      %v1843 = vpack.c.bf16 %v1814, %v1813
      %v1844 = vpack.c.bf16 %v1816, %v1815
      %v1845 = vpack.c.bf16 %v1818, %v1817
      %v1846 = vpack.c.bf16 %v1820, %v1819
      %v1847 = vpack.c.bf16 %v1822, %v1821
      %v1848 = vpack.c.bf16 %v1824, %v1823
      %v1849 = vpack.c.bf16 %v1826, %v1825
      %v1850 = vpack.c.bf16 %v1828, %v1827
      %v1851 = vpack.c.bf16 %v1830, %v1829
      %v1852 = vpack.c.bf16 %v1832, %v1831
      %v1853 = vpack.c.bf16 %v1834, %v1833
      %v1854 = vpack.c.bf16 %v1836, %v1835
      %v1855 = vpack.c.bf16 %v1838, %v1837
      %v1856 = vpack.c.bf16 %v1840, %v1839
      %v1857 = vld [vmem:[%s6] sm:$0xf]
      %v1858 = vld [vmem:[%s6 + $0x4] sm:$0xf]
      %v1859 = vld [vmem:[%s6 + $0x8] sm:$0xf]
      %v1860 = vld [vmem:[%s6 + $0xc] sm:$0xf]
      %v1861 = vld [vmem:[%s7] sm:$0x1]
      %v1863 = vlaneseq
      %v1864 = vshrl.u32 %v1863, 7
      %v1865 = vsub.s32 0, %v1864
      %v1866 = vrot.slane %v1861, %v1865
      %v1872 = vunpack.c.l.b16 %v1857
      %v1873 = vunpack.c.l.b16 %v1858
      %v1874 = vunpack.c.l.b16 %v1859
      %v1875 = vunpack.c.l.b16 %v1860
      %v1876 = vpack.c.b16 %v1873, %v1872
      %v1877 = vpack.c.b16 %v1875, %v1874
      %v1881 = vsel %vm870, %v1841, 0
      %v1884 = vsel %vm870, %v1842, 0
      %v1887 = vsel %vm870, %v1843, 0
      %v1890 = vsel %vm870, %v1844, 0
      %v1893 = vsel %vm870, %v1845, 0
      %v1896 = vsel %vm870, %v1846, 0
      %v1899 = vsel %vm870, %v1847, 0
      %v1902 = vsel %vm870, %v1848, 0
      %v1905 = vsel %vm870, %v1849, 0
      %v1908 = vsel %vm870, %v1850, 0
      %v1911 = vsel %vm870, %v1851, 0
      %v1914 = vsel %vm870, %v1852, 0
      %v1917 = vsel %vm870, %v1853, 0
      %v1920 = vsel %vm870, %v1854, 0
      %v1923 = vsel %vm870, %v1855, 0
      %v1926 = vsel %vm870, %v1856, 0
      %1928 = vmatprep.subr.bf16.mxu0 0
      %1929 = vmatpush1.bf16.msra.mxu0 %v1876
      %1930 = vmatprep.subr.bf16.mxu0 0
      %1931 = vmatpush1.bf16.msra.mxu0 %v1877
      %1932 = vmatprep.subr.bf16.mxu0 0
      %1933 = vmatpush1.bf16.msra.mxu0 0
      %1934 = vmatprep.subr.bf16.mxu0 0
      %1935 = vmatpush1.bf16.msra.mxu0 0
      %1936 = vmatprep.subr.bf16.mxu0 0
      %1937 = vmatpush1.bf16.msra.mxu0 0
      %1938 = vmatprep.subr.bf16.mxu0 0
      %1939 = vmatpush1.bf16.msra.mxu0 0
      %1940 = vmatprep.subr.bf16.mxu0 0
      %1941 = vmatpush1.bf16.msra.mxu0 0
      %1942 = vmatprep.subr.bf16.mxu0 0
      %1943 = vmatpush1.bf16.msra.mxu0 0
      %1944 = vmatprep.subr.bf16.mxu0 0
      %1945 = vmatpush1.bf16.msra.mxu0 0
      %1946 = vmatprep.subr.bf16.mxu0 0
      %1947 = vmatpush1.bf16.msra.mxu0 0
      %1948 = vmatprep.subr.bf16.mxu0 0
      %1949 = vmatpush1.bf16.msra.mxu0 0
      %1950 = vmatprep.subr.bf16.mxu0 0
      %1951 = vmatpush1.bf16.msra.mxu0 0
      %1952 = vmatprep.subr.bf16.mxu0 0
      %1953 = vmatpush1.bf16.msra.mxu0 0
      %1954 = vmatprep.subr.bf16.mxu0 0
      %1955 = vmatpush1.bf16.msra.mxu0 0
      %1956 = vmatprep.subr.bf16.mxu0 0
      %1957 = vmatpush1.bf16.msra.mxu0 0
      %1958 = vmatprep.subr.bf16.mxu0 0
      %1959 = vmatpush1.bf16.msra.mxu0 0
      %1960 = vmatprep.mubr.bf16.mxu0 0
      %1961 = vmatmul.mubr.bf16.gmra.mrb[0].mxu0 %v1881
      %v1962 = vpop.f32.mrb[0].mxu0
      %v1963 = vadd.f32 %v1866, %v1962
      %v1964 = vpop.f32.mrb[0].mxu0
      %v1965 = vpop.f32.mrb[0].mxu0
      %v1966 = vadd.f32 %v1866, %v1965
      %v1967 = vpop.f32.mrb[0].mxu0
      %1968 = vmatprep.mubr.bf16.mxu0 0
      %1969 = vmatmul.mubr.bf16.gmra.mrb[0].mxu0 %v1884
      %v1970 = vpop.f32.mrb[0].mxu0
      %v1971 = vadd.f32 %v1866, %v1970
      %v1972 = vpop.f32.mrb[0].mxu0
      %v1973 = vpop.f32.mrb[0].mxu0
      %v1974 = vadd.f32 %v1866, %v1973
      %v1975 = vpop.f32.mrb[0].mxu0
      %1976 = vmatprep.mubr.bf16.mxu0 0
      %1977 = vmatmul.mubr.bf16.gmra.mrb[0].mxu0 %v1887
      %v1978 = vpop.f32.mrb[0].mxu0
      %v1979 = vadd.f32 %v1866, %v1978
      %v1980 = vpop.f32.mrb[0].mxu0
      %v1981 = vpop.f32.mrb[0].mxu0
      %v1982 = vadd.f32 %v1866, %v1981
      %v1983 = vpop.f32.mrb[0].mxu0
      %1984 = vmatprep.mubr.bf16.mxu0 0
      %1985 = vmatmul.mubr.bf16.gmra.mrb[0].mxu0 %v1890
      %v1986 = vpop.f32.mrb[0].mxu0
      %v1987 = vadd.f32 %v1866, %v1986
      %v1988 = vpop.f32.mrb[0].mxu0
      %v1989 = vpop.f32.mrb[0].mxu0
      %v1990 = vadd.f32 %v1866, %v1989
      %v1991 = vpop.f32.mrb[0].mxu0
      %1992 = vmatprep.mubr.bf16.mxu0 0
      %1993 = vmatmul.mubr.bf16.gmra.mrb[0].mxu0 %v1893
      %v1994 = vpop.f32.mrb[0].mxu0
      %v1995 = vadd.f32 %v1866, %v1994
      %v1996 = vpop.f32.mrb[0].mxu0
      %v1997 = vpop.f32.mrb[0].mxu0
      %v1998 = vadd.f32 %v1866, %v1997
      %v1999 = vpop.f32.mrb[0].mxu0
      %2000 = vmatprep.mubr.bf16.mxu0 0
      %2001 = vmatmul.mubr.bf16.gmra.mrb[0].mxu0 %v1896
      %v2002 = vpop.f32.mrb[0].mxu0
      %v2003 = vadd.f32 %v1866, %v2002
      %v2004 = vpop.f32.mrb[0].mxu0
      %v2005 = vpop.f32.mrb[0].mxu0
      %v2006 = vadd.f32 %v1866, %v2005
      %v2007 = vpop.f32.mrb[0].mxu0
      %2008 = vmatprep.mubr.bf16.mxu0 0
      %2009 = vmatmul.mubr.bf16.gmra.mrb[0].mxu0 %v1899
      %v2010 = vpop.f32.mrb[0].mxu0
      %v2011 = vadd.f32 %v1866, %v2010
      %v2012 = vpop.f32.mrb[0].mxu0
      %v2013 = vpop.f32.mrb[0].mxu0
      %v2014 = vadd.f32 %v1866, %v2013
      %v2015 = vpop.f32.mrb[0].mxu0
      %2016 = vmatprep.mubr.bf16.mxu0 0
      %2017 = vmatmul.mubr.bf16.gmra.mrb[0].mxu0 %v1902
      %v2018 = vpop.f32.mrb[0].mxu0
      %v2019 = vadd.f32 %v1866, %v2018
      %v2020 = vpop.f32.mrb[0].mxu0
      %v2021 = vpop.f32.mrb[0].mxu0
      %v2022 = vadd.f32 %v1866, %v2021
      %v2023 = vpop.f32.mrb[0].mxu0
      %2024 = vmatprep.mubr.bf16.mxu0 0
      %2025 = vmatmul.mubr.bf16.gmra.mrb[0].mxu0 %v1905
      %v2026 = vpop.f32.mrb[0].mxu0
      %v2027 = vadd.f32 %v1866, %v2026
      %v2028 = vpop.f32.mrb[0].mxu0
      %v2029 = vpop.f32.mrb[0].mxu0
      %v2030 = vadd.f32 %v1866, %v2029
      %v2031 = vpop.f32.mrb[0].mxu0
      %2032 = vmatprep.mubr.bf16.mxu0 0
      %2033 = vmatmul.mubr.bf16.gmra.mrb[0].mxu0 %v1908
      %v2034 = vpop.f32.mrb[0].mxu0
      %v2035 = vadd.f32 %v1866, %v2034
      %v2036 = vpop.f32.mrb[0].mxu0
      %v2037 = vpop.f32.mrb[0].mxu0
      %v2038 = vadd.f32 %v1866, %v2037
      %v2039 = vpop.f32.mrb[0].mxu0
      %2040 = vmatprep.mubr.bf16.mxu0 0
      %2041 = vmatmul.mubr.bf16.gmra.mrb[0].mxu0 %v1911
      %v2042 = vpop.f32.mrb[0].mxu0
      %v2043 = vadd.f32 %v1866, %v2042
      %v2044 = vpop.f32.mrb[0].mxu0
      %v2045 = vpop.f32.mrb[0].mxu0
      %v2046 = vadd.f32 %v1866, %v2045
      %v2047 = vpop.f32.mrb[0].mxu0
      %2048 = vmatprep.mubr.bf16.mxu0 0
      %2049 = vmatmul.mubr.bf16.gmra.mrb[0].mxu0 %v1914
      %v2050 = vpop.f32.mrb[0].mxu0
      %v2051 = vadd.f32 %v1866, %v2050
      %v2052 = vpop.f32.mrb[0].mxu0
      %v2053 = vpop.f32.mrb[0].mxu0
      %v2054 = vadd.f32 %v1866, %v2053
      %v2055 = vpop.f32.mrb[0].mxu0
      %2056 = vmatprep.mubr.bf16.mxu0 0
      %2057 = vmatmul.mubr.bf16.gmra.mrb[0].mxu0 %v1917
      %v2058 = vpop.f32.mrb[0].mxu0
      %v2059 = vadd.f32 %v1866, %v2058
      %v2060 = vpop.f32.mrb[0].mxu0
      %v2061 = vpop.f32.mrb[0].mxu0
      %v2062 = vadd.f32 %v1866, %v2061
      %v2063 = vpop.f32.mrb[0].mxu0
      %2064 = vmatprep.mubr.bf16.mxu0 0
      %2065 = vmatmul.mubr.bf16.gmra.mrb[0].mxu0 %v1920
      %v2066 = vpop.f32.mrb[0].mxu0
      %v2067 = vadd.f32 %v1866, %v2066
      %v2068 = vpop.f32.mrb[0].mxu0
      %v2069 = vpop.f32.mrb[0].mxu0
      %v2070 = vadd.f32 %v1866, %v2069
      %v2071 = vpop.f32.mrb[0].mxu0
      %2072 = vmatprep.mubr.bf16.mxu0 0
      %2073 = vmatmul.mubr.bf16.gmra.mrb[0].mxu0 %v1923
      %v2074 = vpop.f32.mrb[0].mxu0
      %v2075 = vadd.f32 %v1866, %v2074
      %v2076 = vpop.f32.mrb[0].mxu0
      %v2077 = vpop.f32.mrb[0].mxu0
      %v2078 = vadd.f32 %v1866, %v2077
      %v2079 = vpop.f32.mrb[0].mxu0
      %2080 = vmatprep.mubr.bf16.mxu0 0
      %2081 = vmatmul.mubr.bf16.gmra.mrb[0].mxu0 %v1926
      %v2082 = vpop.f32.mrb[0].mxu0
      %v2083 = vadd.f32 %v1866, %v2082
      %v2084 = vpop.f32.mrb[0].mxu0
      %v2085 = vpop.f32.mrb[0].mxu0
      %v2086 = vadd.f32 %v1866, %v2085
      %v2087 = vpop.f32.mrb[0].mxu0
      %2088 = vdwg.mxu0
      %v2089 = vpack.c.bf16 %v1966, %v1963
      %v2090 = vpack.c.bf16 %v1974, %v1971
      %v2091 = vpack.c.bf16 %v1982, %v1979
      %v2092 = vpack.c.bf16 %v1990, %v1987
      %v2093 = vpack.c.bf16 %v1998, %v1995
      %v2094 = vpack.c.bf16 %v2006, %v2003
      %v2095 = vpack.c.bf16 %v2014, %v2011
      %v2096 = vpack.c.bf16 %v2022, %v2019
      %v2097 = vpack.c.bf16 %v2030, %v2027
      %v2098 = vpack.c.bf16 %v2038, %v2035
      %v2099 = vpack.c.bf16 %v2046, %v2043
      %v2100 = vpack.c.bf16 %v2054, %v2051
      %v2101 = vpack.c.bf16 %v2062, %v2059
      %v2102 = vpack.c.bf16 %v2070, %v2067
      %v2103 = vpack.c.bf16 %v2078, %v2075
      %v2104 = vpack.c.bf16 %v2086, %v2083
      %v2121 = vunpack.c.l.b16 %v2089
      %v2122 = vunpack.c.h.b16 %v2089
      %v2123 = vunpack.c.l.b16 %v2090
      %v2124 = vunpack.c.h.b16 %v2090
      %v2125 = vunpack.c.l.b16 %v2091
      %v2126 = vunpack.c.h.b16 %v2091
      %v2127 = vunpack.c.l.b16 %v2092
      %v2128 = vunpack.c.h.b16 %v2092
      %v2129 = vunpack.c.l.b16 %v2093
      %v2130 = vunpack.c.h.b16 %v2093
      %v2131 = vunpack.c.l.b16 %v2094
      %v2132 = vunpack.c.h.b16 %v2094
      %v2133 = vunpack.c.l.b16 %v2095
      %v2134 = vunpack.c.h.b16 %v2095
      %v2135 = vunpack.c.l.b16 %v2096
      %v2136 = vunpack.c.h.b16 %v2096
      %v2137 = vunpack.c.l.b16 %v2097
      %v2138 = vunpack.c.h.b16 %v2097
      %v2139 = vunpack.c.l.b16 %v2098
      %v2140 = vunpack.c.h.b16 %v2098
      %v2141 = vunpack.c.l.b16 %v2099
      %v2142 = vunpack.c.h.b16 %v2099
      %v2143 = vunpack.c.l.b16 %v2100
      %v2144 = vunpack.c.h.b16 %v2100
      %v2145 = vunpack.c.l.b16 %v2101
      %v2146 = vunpack.c.h.b16 %v2101
      %v2147 = vunpack.c.l.b16 %v2102
      %v2148 = vunpack.c.h.b16 %v2102
      %v2149 = vunpack.c.l.b16 %v2103
      %v2150 = vunpack.c.h.b16 %v2103
      %v2151 = vunpack.c.l.b16 %v2104
      %v2152 = vunpack.c.h.b16 %v2104
      %v2153 = vpack.c.b16 %v2121, %v2121
      %v2154 = vpack.c.b16 %v2122, %v2122
      %v2155 = vpack.c.b16 %v2123, %v2123
      %v2156 = vpack.c.b16 %v2124, %v2124
      %v2157 = vpack.c.b16 %v2125, %v2125
      %v2158 = vpack.c.b16 %v2126, %v2126
      %v2159 = vpack.c.b16 %v2127, %v2127
      %v2160 = vpack.c.b16 %v2128, %v2128
      %v2161 = vpack.c.b16 %v2129, %v2129
      %v2162 = vpack.c.b16 %v2130, %v2130
      %v2163 = vpack.c.b16 %v2131, %v2131
      %v2164 = vpack.c.b16 %v2132, %v2132
      %v2165 = vpack.c.b16 %v2133, %v2133
      %v2166 = vpack.c.b16 %v2134, %v2134
      %v2167 = vpack.c.b16 %v2135, %v2135
      %v2168 = vpack.c.b16 %v2136, %v2136
      %v2169 = vpack.c.b16 %v2137, %v2137
      %v2170 = vpack.c.b16 %v2138, %v2138
      %v2171 = vpack.c.b16 %v2139, %v2139
      %v2172 = vpack.c.b16 %v2140, %v2140
      %v2173 = vpack.c.b16 %v2141, %v2141
      %v2174 = vpack.c.b16 %v2142, %v2142
      %v2175 = vpack.c.b16 %v2143, %v2143
      %v2176 = vpack.c.b16 %v2144, %v2144
      %v2177 = vpack.c.b16 %v2145, %v2145
      %v2178 = vpack.c.b16 %v2146, %v2146
      %v2179 = vpack.c.b16 %v2147, %v2147
      %v2180 = vpack.c.b16 %v2148, %v2148
      %v2181 = vpack.c.b16 %v2149, %v2149
      %v2182 = vpack.c.b16 %v2150, %v2150
      %v2183 = vpack.c.b16 %v2151, %v2151
      %v2184 = vpack.c.b16 %v2152, %v2152
      %2217 = vst [vmem:[%s369] sm:$0xf] %v2153
      %2218 = vst [vmem:[%s369 + $0x4] sm:$0xf] %v2154
      %2219 = vst [vmem:[%s369 + $0x8] sm:$0xf] %v2155
      %2220 = vst [vmem:[%s369 + $0xc] sm:$0xf] %v2156
      %2221 = vst [vmem:[%s369 + $0x10] sm:$0xf] %v2157
      %2222 = vst [vmem:[%s369 + $0x14] sm:$0xf] %v2158
      %2223 = vst [vmem:[%s369 + $0x18] sm:$0xf] %v2159
      %2224 = vst [vmem:[%s369 + $0x1c] sm:$0xf] %v2160
      %2225 = vst [vmem:[%s369 + $0x20] sm:$0xf] %v2161
      %2226 = vst [vmem:[%s369 + $0x24] sm:$0xf] %v2162
      %2227 = vst [vmem:[%s369 + $0x28] sm:$0xf] %v2163
      %2228 = vst [vmem:[%s369 + $0x2c] sm:$0xf] %v2164
      %2229 = vst [vmem:[%s369 + $0x30] sm:$0xf] %v2165
      %2230 = vst [vmem:[%s369 + $0x34] sm:$0xf] %v2166
      %2231 = vst [vmem:[%s369 + $0x38] sm:$0xf] %v2167
      %2232 = vst [vmem:[%s369 + $0x3c] sm:$0xf] %v2168
      %2233 = vst [vmem:[%s369 + $0x40] sm:$0xf] %v2169
      %2234 = vst [vmem:[%s369 + $0x44] sm:$0xf] %v2170
      %2235 = vst [vmem:[%s369 + $0x48] sm:$0xf] %v2171
      %2236 = vst [vmem:[%s369 + $0x4c] sm:$0xf] %v2172
      %2237 = vst [vmem:[%s369 + $0x50] sm:$0xf] %v2173
      %2238 = vst [vmem:[%s369 + $0x54] sm:$0xf] %v2174
      %2239 = vst [vmem:[%s369 + $0x58] sm:$0xf] %v2175
      %2240 = vst [vmem:[%s369 + $0x5c] sm:$0xf] %v2176
      %2241 = vst [vmem:[%s369 + $0x60] sm:$0xf] %v2177
      %2242 = vst [vmem:[%s369 + $0x64] sm:$0xf] %v2178
      %2243 = vst [vmem:[%s369 + $0x68] sm:$0xf] %v2179
      %2244 = vst [vmem:[%s369 + $0x6c] sm:$0xf] %v2180
      %2245 = vst [vmem:[%s369 + $0x70] sm:$0xf] %v2181
      %2246 = vst [vmem:[%s369 + $0x74] sm:$0xf] %v2182
      %2247 = vst [vmem:[%s369 + $0x78] sm:$0xf] %v2183
      %2248 = vst [vmem:[%s369 + $0x7c] sm:$0xf] %v2184
      %s2249 = smul.u32 32, %s19
      %p2250 = scmp.lt.s32.totalorder %s2249, 95
      %s2251 = scalar_select %p2250, %s2249, 95
      %s2252 = smul.addr %s2251, 4
      %s2253 = scalar_lea.vmem %s8, %s2252
      // Predicated region
      $region53: #{transt_forward.2} parent=51 // pred_check
        %p2254 = pneg %p228
      $region54: #{transt_forward.2} parent=51 // pred_check_branch
        %2256 = sbr.rel (%p2254) target = $region56
      $region55: #{transt_forward.2} parent=51 // pred_region
        %s2257 = smul.u32 32, %s19
      $region56: #{transt_forward.2} parent=51 // pred_fallthru
        _
    $region52: #{transt_forward.2} parent=5 // pred_fallthru
      _
    %p2258 = scmp.le.s32.totalorder 2, %s14
    // Predicated region
    $region57: #{transt_forward.2} parent=5 // pred_check
      %p2259 = pneg %p2258
    $region58: #{transt_forward.2} parent=5 // pred_check_branch
      %2261 = sbr.rel (%p2259) target = $region60
    $region59: #{transt_forward.2} parent=5 // pred_region
      %s2262 = ssub.s32 %s14, 2
      // Predicated region
      $region61: #{transt_forward.2} parent=59 // pred_check
        %p2263 = pneg %p234
      $region62: #{transt_forward.2} parent=59 // pred_check_branch
        %2265 = sbr.rel (%p2263) target = $region64
      $region63: #{transt_forward.2} parent=59 // pred_region
        %s2266 = smul.u32 32, %s20
        %p2267 = scmp.lt.s32.totalorder %s2266, 95
        %s2268 = scalar_select %p2267, %s2266, 95
        %s2269 = smul.addr %s2268, 4
        %s2270 = scalar_lea.vmem %s8, %s2269
      $region64: #{transt_forward.2} parent=59 // pred_fallthru
        _
    $region60: #{transt_forward.2} parent=5 // pred_fallthru
      _
  $region6: #{transt_forward.2} parent=0 // loop_footer
    %s18 = sadd.s32 1, %s14
  $region7: #{transt_forward.2} parent=0 // loop_footer_branch
    %13 = sbr.rel target = $region3
  $region8: #{transt_forward.2} parent=0 // loop_exit
    _

// kernel: transt_forward.3
$region0: #{transt_forward.3}
  #allocation0 [shape = 'u32[]', space=smem, size = 0x4, offset = 0x4, fixed_abs, tag = 'smem constant byte address 0x4 - core index']
  #allocation1 [shape = 'u32[144,128]{1,0:T(1,128)}', space=vmem, size = 0x12000, scoped, tag = 'internal scratch']
  %s0 = inlined_call_operand.vmem [shape: bf16[2,256,128], index: 0, kind: input, shape index: {}]
  %s1 = inlined_call_operand.vmem [shape: f32[2,256,128], index: 1, kind: input, shape index: {}]
  %s2 = inlined_call_operand.vmem [shape: f32[2,1,128], index: 2, kind: input, shape index: {}]
  %s3 = inlined_call_operand.vmem [shape: bf16[128,64], index: 3, kind: input, shape index: {}]
  %s4 = inlined_call_operand.vmem [shape: f32[1,64], index: 4, kind: input, shape index: {}]
  %s5 = inlined_call_operand.vmem [shape: bf16[64,128], index: 5, kind: input, shape index: {}]
  %s6 = inlined_call_operand.vmem [shape: f32[1,128], index: 6, kind: input, shape index: {}]
  %s7 = inlined_call_operand.vmem [shape: bf16[128,128], index: 7, kind: input, shape index: {}]
  %s8 = inlined_call_operand.vmem [shape: f32[1,128], index: 8, kind: input, shape index: {}]
  %s9 = inlined_call_operand.vmem [shape: bf16[128,128], index: 9, kind: input, shape index: {}]
  %s10 = inlined_call_operand.vmem [shape: f32[1,128], index: 10, kind: input, shape index: {}]
  %s11 = inlined_call_operand.vmem [shape: f32[2,256,128], index: 11, kind: output, shape index: {}]
  %s12 = sld [smem:[#allocation0]]
  $region77: #{transt_forward.3} parent=0
    _
  %s14 = ssub.s32 1, %s12
  %s15 = scalar_select 0, %s14, %s12
  loop: start=0, step=1, limit=4
  $region2: #{transt_forward.3} parent=0 // loop_pre_header
    _
  $region3: #{transt_forward.3} parent=0 // loop_header
    %s17 = sphi 0, %s21
    %p18 = scmp.ge.s32.totalorder %s17, 4
    %s24 = sphi 0, %s36
    %s25 = sphi 0, %s32
    %s26 = sphi 0, %s24
    %s27 = sphi 0, %s25
    %s28 = sphi 0, %s26
    %s29 = sphi 0, %s27
    %s41 = sphi 0, %s43
    %s44 = sphi 0, %s41
    %s45 = sphi 0, %s44
    %s61 = sphi 0, %s45
    %s69 = sphi 0, %s71
    %s72 = sphi 0, %s69
    %s73 = sphi 0, %s72
    %s89 = sphi 0, %s73
    %s95 = sphi 0, %s97
    %s98 = sphi 0, %s95
    %s99 = sphi 0, %s98
    %s115 = sphi 0, %s99
    %s119 = sphi 0, %s119
    %s121 = sphi 0, %s119
    %s122 = sphi 0, %s121
    %s136 = sphi 0, %s122
    %s140 = sphi 0, %s140
    %s142 = sphi 0, %s140
    %s143 = sphi 0, %s142
    %s157 = sphi 0, %s143
    %s161 = sphi 0, %s161
    %s163 = sphi 0, %s161
    %s164 = sphi 0, %s163
    %s178 = sphi 0, %s164
    %s182 = sphi 0, %s182
    %s184 = sphi 0, %s182
    %s185 = sphi 0, %s184
    %s199 = sphi 0, %s185
    %s203 = sphi 0, %s203
    %s205 = sphi 0, %s203
    %s206 = sphi 0, %s205
    %s220 = sphi 0, %s206
    %s224 = sphi 0, %s224
    %s226 = sphi 0, %s224
    %s227 = sphi 0, %s226
    %s241 = sphi 0, %s227
    %s245 = sphi 0, %s245
    %s247 = sphi 0, %s245
    %s248 = sphi 0, %s247
    %s262 = sphi 0, %s248
    %s266 = sphi 0, %s266
    %s268 = sphi 0, %s266
    %s269 = sphi 0, %s268
    %s283 = sphi 0, %s269
    %s291 = sphi 0, %s293
    %s294 = sphi 0, %s291
    %s295 = sphi 0, %s294
    %s311 = sphi 0, %s295
  $region4: #{transt_forward.3} parent=0 // loop_header_branch
    %20 = sbr.rel (%p18) target = $region8
  $region5: #{transt_forward.3} parent=0 // loop_body
    %s22 = ssub.s32 %s17, 1
    %s23 = ssub.s32 %s17, 2
    %s30 = sadd.s32 1, %s25
    %p31 = scmp.ge.s32.totalorder %s30, 1
    %s32 = scalar_select %p31, 0, %s30
    %s33 = sadd.s32 1, %s24
    %s34 = scalar_select %p31, %s33, %s24
    %p35 = scmp.ge.s32.totalorder %s34, 2
    %s36 = scalar_select %p35, 0, %s34
    %s37 = ssub.s32 %s24, %s36
    %s38 = ssub.s32 %s25, %s32
    %s39 = sor.u32 %s37, %s38
    %p40 = scmp.eq.s32.totalorder %s39, 0
    %s42 = sadd.s32 %s41, 1
    %s43 = scalar_select %p40, %s41, %s42
    %p46 = pneg %p40
    %p47 = scmp.eq.s32.totalorder %s17, 1
    %p48 = por %p46, %p47
    %p49 = scmp.ne.s32.totalorder %s41, %s44
    %p50 = scmp.eq.s32.totalorder %s17, 0
    %p51 = por %p49, %p50
    %p52 = scmp.ne.s32.totalorder %s41, %s44
    %p53 = scmp.eq.s32.totalorder %s22, 1
    %p54 = por %p52, %p53
    %p55 = scmp.ne.s32.totalorder %s44, %s45
    %p56 = scmp.eq.s32.totalorder %s22, 0
    %p57 = por %p55, %p56
    %p58 = scmp.ne.s32.totalorder %s44, %s45
    %p59 = scmp.eq.s32.totalorder %s23, 1
    %p60 = por %p58, %p59
    %p62 = scmp.ne.s32.totalorder %s45, %s61
    %p63 = scmp.eq.s32.totalorder %s23, 0
    %p64 = por %p62, %p63
    %s65 = ssub.s32 %s24, %s36
    %s66 = ssub.s32 %s25, %s32
    %s67 = sor.u32 %s65, %s66
    %p68 = scmp.eq.s32.totalorder %s67, 0
    %s70 = sadd.s32 %s69, 1
    %s71 = scalar_select %p68, %s69, %s70
    %p74 = pneg %p68
    %p75 = scmp.eq.s32.totalorder %s17, 1
    %p76 = por %p74, %p75
    %p77 = scmp.ne.s32.totalorder %s69, %s72
    %p78 = scmp.eq.s32.totalorder %s17, 0
    %p79 = por %p77, %p78
    %p80 = scmp.ne.s32.totalorder %s69, %s72
    %p81 = scmp.eq.s32.totalorder %s22, 1
    %p82 = por %p80, %p81
    %p83 = scmp.ne.s32.totalorder %s72, %s73
    %p84 = scmp.eq.s32.totalorder %s22, 0
    %p85 = por %p83, %p84
    %p86 = scmp.ne.s32.totalorder %s72, %s73
    %p87 = scmp.eq.s32.totalorder %s23, 1
    %p88 = por %p86, %p87
    %p90 = scmp.ne.s32.totalorder %s73, %s89
    %p91 = scmp.eq.s32.totalorder %s23, 0
    %p92 = por %p90, %p91
    %s93 = ssub.s32 %s24, %s36
    %p94 = scmp.eq.s32.totalorder %s93, 0
    %s96 = sadd.s32 %s95, 1
    %s97 = scalar_select %p94, %s95, %s96
    %p100 = pneg %p94
    %p101 = scmp.eq.s32.totalorder %s17, 1
    %p102 = por %p100, %p101
    %p103 = scmp.ne.s32.totalorder %s95, %s98
    %p104 = scmp.eq.s32.totalorder %s17, 0
    %p105 = por %p103, %p104
    %p106 = scmp.ne.s32.totalorder %s95, %s98
    %p107 = scmp.eq.s32.totalorder %s22, 1
    %p108 = por %p106, %p107
    %p109 = scmp.ne.s32.totalorder %s98, %s99
    %p110 = scmp.eq.s32.totalorder %s22, 0
    %p111 = por %p109, %p110
    %p112 = scmp.ne.s32.totalorder %s98, %s99
    %p113 = scmp.eq.s32.totalorder %s23, 1
    %p114 = por %p112, %p113
    %p116 = scmp.ne.s32.totalorder %s99, %s115
    %p117 = scmp.eq.s32.totalorder %s23, 0
    %p118 = por %p116, %p117
    %s120 = sadd.s32 %s119, 1
    %p123 = scmp.eq.s32.totalorder %s17, 1
    %p124 = scmp.ne.s32.totalorder %s119, %s121
    %p125 = scmp.eq.s32.totalorder %s17, 0
    %p126 = por %p124, %p125
    %p127 = scmp.ne.s32.totalorder %s119, %s121
    %p128 = scmp.eq.s32.totalorder %s22, 1
    %p129 = por %p127, %p128
    %p130 = scmp.ne.s32.totalorder %s121, %s122
    %p131 = scmp.eq.s32.totalorder %s22, 0
    %p132 = por %p130, %p131
    %p133 = scmp.ne.s32.totalorder %s121, %s122
    %p134 = scmp.eq.s32.totalorder %s23, 1
    %p135 = por %p133, %p134
    %p137 = scmp.ne.s32.totalorder %s122, %s136
    %p138 = scmp.eq.s32.totalorder %s23, 0
    %p139 = por %p137, %p138
    %s141 = sadd.s32 %s140, 1
    %p144 = scmp.eq.s32.totalorder %s17, 1
    %p145 = scmp.ne.s32.totalorder %s140, %s142
    %p146 = scmp.eq.s32.totalorder %s17, 0
    %p147 = por %p145, %p146
    %p148 = scmp.ne.s32.totalorder %s140, %s142
    %p149 = scmp.eq.s32.totalorder %s22, 1
    %p150 = por %p148, %p149
    %p151 = scmp.ne.s32.totalorder %s142, %s143
    %p152 = scmp.eq.s32.totalorder %s22, 0
    %p153 = por %p151, %p152
    %p154 = scmp.ne.s32.totalorder %s142, %s143
    %p155 = scmp.eq.s32.totalorder %s23, 1
    %p156 = por %p154, %p155
    %p158 = scmp.ne.s32.totalorder %s143, %s157
    %p159 = scmp.eq.s32.totalorder %s23, 0
    %p160 = por %p158, %p159
    %s162 = sadd.s32 %s161, 1
    %p165 = scmp.eq.s32.totalorder %s17, 1
    %p166 = scmp.ne.s32.totalorder %s161, %s163
    %p167 = scmp.eq.s32.totalorder %s17, 0
    %p168 = por %p166, %p167
    %p169 = scmp.ne.s32.totalorder %s161, %s163
    %p170 = scmp.eq.s32.totalorder %s22, 1
    %p171 = por %p169, %p170
    %p172 = scmp.ne.s32.totalorder %s163, %s164
    %p173 = scmp.eq.s32.totalorder %s22, 0
    %p174 = por %p172, %p173
    %p175 = scmp.ne.s32.totalorder %s163, %s164
    %p176 = scmp.eq.s32.totalorder %s23, 1
    %p177 = por %p175, %p176
    %p179 = scmp.ne.s32.totalorder %s164, %s178
    %p180 = scmp.eq.s32.totalorder %s23, 0
    %p181 = por %p179, %p180
    %s183 = sadd.s32 %s182, 1
    %p186 = scmp.eq.s32.totalorder %s17, 1
    %p187 = scmp.ne.s32.totalorder %s182, %s184
    %p188 = scmp.eq.s32.totalorder %s17, 0
    %p189 = por %p187, %p188
    %p190 = scmp.ne.s32.totalorder %s182, %s184
    %p191 = scmp.eq.s32.totalorder %s22, 1
    %p192 = por %p190, %p191
    %p193 = scmp.ne.s32.totalorder %s184, %s185
    %p194 = scmp.eq.s32.totalorder %s22, 0
    %p195 = por %p193, %p194
    %p196 = scmp.ne.s32.totalorder %s184, %s185
    %p197 = scmp.eq.s32.totalorder %s23, 1
    %p198 = por %p196, %p197
    %p200 = scmp.ne.s32.totalorder %s185, %s199
    %p201 = scmp.eq.s32.totalorder %s23, 0
    %p202 = por %p200, %p201
    %s204 = sadd.s32 %s203, 1
    %p207 = scmp.eq.s32.totalorder %s17, 1
    %p208 = scmp.ne.s32.totalorder %s203, %s205
    %p209 = scmp.eq.s32.totalorder %s17, 0
    %p210 = por %p208, %p209
    %p211 = scmp.ne.s32.totalorder %s203, %s205
    %p212 = scmp.eq.s32.totalorder %s22, 1
    %p213 = por %p211, %p212
    %p214 = scmp.ne.s32.totalorder %s205, %s206
    %p215 = scmp.eq.s32.totalorder %s22, 0
    %p216 = por %p214, %p215
    %p217 = scmp.ne.s32.totalorder %s205, %s206
    %p218 = scmp.eq.s32.totalorder %s23, 1
    %p219 = por %p217, %p218
    %p221 = scmp.ne.s32.totalorder %s206, %s220
    %p222 = scmp.eq.s32.totalorder %s23, 0
    %p223 = por %p221, %p222
    %s225 = sadd.s32 %s224, 1
    %p228 = scmp.eq.s32.totalorder %s17, 1
    %p229 = scmp.ne.s32.totalorder %s224, %s226
    %p230 = scmp.eq.s32.totalorder %s17, 0
    %p231 = por %p229, %p230
    %p232 = scmp.ne.s32.totalorder %s224, %s226
    %p233 = scmp.eq.s32.totalorder %s22, 1
    %p234 = por %p232, %p233
    %p235 = scmp.ne.s32.totalorder %s226, %s227
    %p236 = scmp.eq.s32.totalorder %s22, 0
    %p237 = por %p235, %p236
    %p238 = scmp.ne.s32.totalorder %s226, %s227
    %p239 = scmp.eq.s32.totalorder %s23, 1
    %p240 = por %p238, %p239
    %p242 = scmp.ne.s32.totalorder %s227, %s241
    %p243 = scmp.eq.s32.totalorder %s23, 0
    %p244 = por %p242, %p243
    %s246 = sadd.s32 %s245, 1
    %p249 = scmp.eq.s32.totalorder %s17, 1
    %p250 = scmp.ne.s32.totalorder %s245, %s247
    %p251 = scmp.eq.s32.totalorder %s17, 0
    %p252 = por %p250, %p251
    %p253 = scmp.ne.s32.totalorder %s245, %s247
    %p254 = scmp.eq.s32.totalorder %s22, 1
    %p255 = por %p253, %p254
    %p256 = scmp.ne.s32.totalorder %s247, %s248
    %p257 = scmp.eq.s32.totalorder %s22, 0
    %p258 = por %p256, %p257
    %p259 = scmp.ne.s32.totalorder %s247, %s248
    %p260 = scmp.eq.s32.totalorder %s23, 1
    %p261 = por %p259, %p260
    %p263 = scmp.ne.s32.totalorder %s248, %s262
    %p264 = scmp.eq.s32.totalorder %s23, 0
    %p265 = por %p263, %p264
    %s267 = sadd.s32 %s266, 1
    %p270 = scmp.eq.s32.totalorder %s17, 1
    %p271 = scmp.ne.s32.totalorder %s266, %s268
    %p272 = scmp.eq.s32.totalorder %s17, 0
    %p273 = por %p271, %p272
    %p274 = scmp.ne.s32.totalorder %s266, %s268
    %p275 = scmp.eq.s32.totalorder %s22, 1
    %p276 = por %p274, %p275
    %p277 = scmp.ne.s32.totalorder %s268, %s269
    %p278 = scmp.eq.s32.totalorder %s22, 0
    %p279 = por %p277, %p278
    %p280 = scmp.ne.s32.totalorder %s268, %s269
    %p281 = scmp.eq.s32.totalorder %s23, 1
    %p282 = por %p280, %p281
    %p284 = scmp.ne.s32.totalorder %s269, %s283
    %p285 = scmp.eq.s32.totalorder %s23, 0
    %p286 = por %p284, %p285
    %s287 = ssub.s32 %s24, %s36
    %s288 = ssub.s32 %s25, %s32
    %s289 = sor.u32 %s287, %s288
    %p290 = scmp.eq.s32.totalorder %s289, 0
    %s292 = sadd.s32 %s291, 1
    %s293 = scalar_select %p290, %s291, %s292
    %p296 = pneg %p290
    %p297 = scmp.eq.s32.totalorder %s17, 1
    %p298 = por %p296, %p297
    %p299 = scmp.ne.s32.totalorder %s291, %s294
    %p300 = scmp.eq.s32.totalorder %s17, 0
    %p301 = por %p299, %p300
    %p302 = scmp.ne.s32.totalorder %s291, %s294
    %p303 = scmp.eq.s32.totalorder %s22, 1
    %p304 = por %p302, %p303
    %p305 = scmp.ne.s32.totalorder %s294, %s295
    %p306 = scmp.eq.s32.totalorder %s22, 0
    %p307 = por %p305, %p306
    %p308 = scmp.ne.s32.totalorder %s294, %s295
    %p309 = scmp.eq.s32.totalorder %s23, 1
    %p310 = por %p308, %p309
    %p312 = scmp.ne.s32.totalorder %s295, %s311
    %p313 = scmp.eq.s32.totalorder %s23, 0
    %p314 = por %p312, %p313
    %p315 = scmp.le.s32.totalorder 1, %s17
    %p316 = scmp.lt.s32.totalorder %s17, 3
    %p317 = pnand %p315, %p316
    %p318 = pneg %p317
    // Predicated region
    $region9: #{transt_forward.3} parent=5 // pred_check
      _
    $region10: #{transt_forward.3} parent=5 // pred_check_branch
      %320 = sbr.rel (%p317) target = $region12
    $region11: #{transt_forward.3} parent=5 // pred_region
      %s321 = ssub.s32 %s17, 1
      // Predicated region
      $region13: #{transt_forward.3} parent=11 // pred_check
        %p322 = pneg %p132
      $region14: #{transt_forward.3} parent=11 // pred_check_branch
        %324 = sbr.rel (%p322) target = $region16
      $region15: #{transt_forward.3} parent=11 // pred_region
        _
      $region16: #{transt_forward.3} parent=11 // pred_fallthru
        _
      // Predicated region
      $region17: #{transt_forward.3} parent=11 // pred_check
        %p325 = pneg %p153
      $region18: #{transt_forward.3} parent=11 // pred_check_branch
        %327 = sbr.rel (%p325) target = $region20
      $region19: #{transt_forward.3} parent=11 // pred_region
        _
      $region20: #{transt_forward.3} parent=11 // pred_fallthru
        _
      // Predicated region
      $region21: #{transt_forward.3} parent=11 // pred_check
        %p328 = pneg %p174
      $region22: #{transt_forward.3} parent=11 // pred_check_branch
        %330 = sbr.rel (%p328) target = $region24
      $region23: #{transt_forward.3} parent=11 // pred_region
        _
      $region24: #{transt_forward.3} parent=11 // pred_fallthru
        _
      // Predicated region
      $region25: #{transt_forward.3} parent=11 // pred_check
        %p331 = pneg %p195
      $region26: #{transt_forward.3} parent=11 // pred_check_branch
        %333 = sbr.rel (%p331) target = $region28
      $region27: #{transt_forward.3} parent=11 // pred_region
        _
      $region28: #{transt_forward.3} parent=11 // pred_fallthru
        _
      // Predicated region
      $region29: #{transt_forward.3} parent=11 // pred_check
        %p334 = pneg %p216
      $region30: #{transt_forward.3} parent=11 // pred_check_branch
        %336 = sbr.rel (%p334) target = $region32
      $region31: #{transt_forward.3} parent=11 // pred_region
        _
      $region32: #{transt_forward.3} parent=11 // pred_fallthru
        _
      // Predicated region
      $region33: #{transt_forward.3} parent=11 // pred_check
        %p337 = pneg %p237
      $region34: #{transt_forward.3} parent=11 // pred_check_branch
        %339 = sbr.rel (%p337) target = $region36
      $region35: #{transt_forward.3} parent=11 // pred_region
        _
      $region36: #{transt_forward.3} parent=11 // pred_fallthru
        _
      // Predicated region
      $region37: #{transt_forward.3} parent=11 // pred_check
        %p340 = pneg %p258
      $region38: #{transt_forward.3} parent=11 // pred_check_branch
        %342 = sbr.rel (%p340) target = $region40
      $region39: #{transt_forward.3} parent=11 // pred_region
        _
      $region40: #{transt_forward.3} parent=11 // pred_fallthru
        _
      // Predicated region
      $region41: #{transt_forward.3} parent=11 // pred_check
        %p343 = pneg %p279
      $region42: #{transt_forward.3} parent=11 // pred_check_branch
        %345 = sbr.rel (%p343) target = $region44
      $region43: #{transt_forward.3} parent=11 // pred_region
        _
      $region44: #{transt_forward.3} parent=11 // pred_fallthru
        _
    $region12: #{transt_forward.3} parent=5 // pred_fallthru
      _
    %p346 = scmp.lt.s32.totalorder %s17, 2
    // Predicated region
    $region45: #{transt_forward.3} parent=5 // pred_check
      %p347 = pneg %p346
    $region46: #{transt_forward.3} parent=5 // pred_check_branch
      %349 = sbr.rel (%p347) target = $region48
    $region47: #{transt_forward.3} parent=5 // pred_region
      // Predicated region
      $region49: #{transt_forward.3} parent=47 // pred_check
        %p350 = pneg %p51
      $region50: #{transt_forward.3} parent=47 // pred_check_branch
        %352 = sbr.rel (%p350) target = $region52
      $region51: #{transt_forward.3} parent=47 // pred_region
        %s353 = smul.u32 32, %s25
        %p354 = scmp.lt.s32.totalorder %s24, 1
        %s355 = scalar_select %p354, %s24, 1
        %p356 = scmp.lt.s32.totalorder %s353, 31
        %s357 = scalar_select %p356, %s353, 31
        %s358 = smul.addr %s355, 32
        %s359 = sadd.s32 %s357, %s358
        %s360 = smul.addr %s359, 4
        %s361 = scalar_lea.vmem %s0, %s360
        %s362 = smul.u32 32, %s25
      $region52: #{transt_forward.3} parent=47 // pred_fallthru
        _
      // Predicated region
      $region53: #{transt_forward.3} parent=47 // pred_check
        %p363 = pneg %p79
      $region54: #{transt_forward.3} parent=47 // pred_check_branch
        %365 = sbr.rel (%p363) target = $region56
      $region55: #{transt_forward.3} parent=47 // pred_region
        %s366 = smul.u32 32, %s25
        %p367 = scmp.lt.s32.totalorder %s24, 1
        %s368 = scalar_select %p367, %s24, 1
        %p369 = scmp.lt.s32.totalorder %s366, 31
        %s370 = scalar_select %p369, %s366, 31
        %s371 = smul.addr %s368, 32
        %s372 = sadd.s32 %s370, %s371
        %s373 = smul.addr %s372, 8
        %s374 = scalar_lea.vmem %s1, %s373
        %s375 = smul.u32 32, %s25
      $region56: #{transt_forward.3} parent=47 // pred_fallthru
        _
      // Predicated region
      $region57: #{transt_forward.3} parent=47 // pred_check
        %p376 = pneg %p105
      $region58: #{transt_forward.3} parent=47 // pred_check_branch
        %378 = sbr.rel (%p376) target = $region60
      $region59: #{transt_forward.3} parent=47 // pred_region
        %p379 = scmp.lt.s32.totalorder %s24, 1
        %s380 = scalar_select %p379, %s24, 1
        %s381 = scalar_lea.vmem %s2, %s380
      $region60: #{transt_forward.3} parent=47 // pred_fallthru
        _
    $region48: #{transt_forward.3} parent=5 // pred_fallthru
      _
    %p382 = scmp.le.s32.totalorder 1, %s17
    %p383 = scmp.lt.s32.totalorder %s17, 3
    %p384 = pnand %p382, %p383
    %p385 = pneg %p384
    // Predicated region
    $region61: #{transt_forward.3} parent=5 // pred_check
      _
    $region62: #{transt_forward.3} parent=5 // pred_check_branch
      %387 = sbr.rel (%p384) target = $region64
    $region63: #{transt_forward.3} parent=5 // pred_region
      %s388 = ssub.s32 %s17, 1
      %s389 = smul.u32 32, %s27
      %p390 = scmp.lt.s32.totalorder %s26, 1
      %s391 = scalar_select %p390, %s26, 1
      %p392 = scmp.lt.s32.totalorder %s389, 31
      %s393 = scalar_select %p392, %s389, 31
      %s394 = smul.addr %s391, 32
      %s395 = sadd.s32 %s393, %s394
      %s396 = smul.addr %s395, 4
      %s397 = scalar_lea.vmem %s0, %s396
      %p398 = pneg %p57
      %p399 = pneg %p54
      %s400 = smul.u32 32, %s27
      %p401 = scmp.lt.s32.totalorder %s26, 1
      %s402 = scalar_select %p401, %s26, 1
      %p403 = scmp.lt.s32.totalorder %s400, 31
      %s404 = scalar_select %p403, %s400, 31
      %s405 = smul.addr %s402, 32
      %s406 = sadd.s32 %s404, %s405
      %s407 = smul.addr %s406, 8
      %s408 = scalar_lea.vmem %s1, %s407
      %p409 = pneg %p85
      %p410 = pneg %p82
      %p411 = scmp.lt.s32.totalorder %s26, 1
      %s412 = scalar_select %p411, %s26, 1
      %s413 = scalar_lea.vmem %s2, %s412
      %p414 = pneg %p111
      %p415 = pneg %p108
      %p416 = pneg %p132
      %p417 = pneg %p129
      %p418 = pneg %p153
      %p419 = pneg %p150
      %p420 = pneg %p174
      %p421 = pneg %p171
      %p422 = pneg %p195
      %p423 = pneg %p192
      %p424 = pneg %p216
      %p425 = pneg %p213
      %p426 = pneg %p237
      %p427 = pneg %p234
      %p428 = pneg %p258
      %p429 = pneg %p255
      %p430 = pneg %p279
      %p431 = pneg %p276
      %p432 = pneg %p307
      %p433 = pneg %p304
      %s434 = smul.u32 32, %s27
      %p435 = scmp.lt.s32.totalorder %s26, 1
      %s436 = scalar_select %p435, %s26, 1
      %p437 = scmp.lt.s32.totalorder %s434, 31
      %s438 = scalar_select %p437, %s434, 31
      %s439 = smul.addr %s436, 32
      %s440 = sadd.s32 %s438, %s439
      %s441 = smul.addr %s440, 8
      %s442 = scalar_lea.vmem %s11, %s441
      %s443 = smul.u32 32, %s27
      %p444 = scmp.lt.s32.totalorder %s26, 1
      %s445 = scalar_select %p444, %s26, 1
      %p446 = scmp.lt.s32.totalorder %s443, 31
      %s447 = scalar_select %p446, %s443, 31
      %s448 = smul.addr %s445, 32
      %s449 = sadd.s32 %s447, %s448
      %s450 = smul.addr %s449, 4
      %s451 = scalar_lea.vmem %s0, %s450
      %s452 = smul.u32 32, %s27
      %s453 = smul.u32 32, %s27
      %p454 = scmp.lt.s32.totalorder %s26, 1
      %s455 = scalar_select %p454, %s26, 1
      %p456 = scmp.lt.s32.totalorder %s453, 31
      %s457 = scalar_select %p456, %s453, 31
      %s458 = smul.addr %s455, 32
      %s459 = sadd.s32 %s457, %s458
      %s460 = smul.addr %s459, 8
      %s461 = scalar_lea.vmem %s1, %s460
      %s462 = smul.u32 32, %s27
      %p463 = scmp.lt.s32.totalorder %s26, 1
      %s464 = scalar_select %p463, %s26, 1
      %s465 = scalar_lea.vmem %s2, %s464
      %s466 = smul.u32 32, %s27
      %p467 = scmp.lt.s32.totalorder %s26, 1
      %s468 = scalar_select %p467, %s26, 1
      %p469 = scmp.lt.s32.totalorder %s466, 31
      %s470 = scalar_select %p469, %s466, 31
      %s471 = smul.addr %s468, 32
      %s472 = sadd.s32 %s470, %s471
      %s473 = smul.addr %s472, 8
      %s474 = scalar_lea.vmem %s11, %s473
      %s475 = smul.u32 32, %s27
      %v477 = vld [vmem:[%s451] sm:$0xf]
      %v478 = vld [vmem:[%s451 + $0x4] sm:$0xf]
      %v479 = vld [vmem:[%s451 + $0x8] sm:$0xf]
      %v480 = vld [vmem:[%s451 + $0xc] sm:$0xf]
      %v481 = vld [vmem:[%s451 + $0x10] sm:$0xf]
      %v482 = vld [vmem:[%s451 + $0x14] sm:$0xf]
      %v483 = vld [vmem:[%s451 + $0x18] sm:$0xf]
      %v484 = vld [vmem:[%s451 + $0x1c] sm:$0xf]
      %v485 = vld [vmem:[%s451 + $0x20] sm:$0xf]
      %v486 = vld [vmem:[%s451 + $0x24] sm:$0xf]
      %v487 = vld [vmem:[%s451 + $0x28] sm:$0xf]
      %v488 = vld [vmem:[%s451 + $0x2c] sm:$0xf]
      %v489 = vld [vmem:[%s451 + $0x30] sm:$0xf]
      %v490 = vld [vmem:[%s451 + $0x34] sm:$0xf]
      %v491 = vld [vmem:[%s451 + $0x38] sm:$0xf]
      %v492 = vld [vmem:[%s451 + $0x3c] sm:$0xf]
      %v493 = vld [vmem:[%s451 + $0x40] sm:$0xf]
      %v494 = vld [vmem:[%s451 + $0x44] sm:$0xf]
      %v495 = vld [vmem:[%s451 + $0x48] sm:$0xf]
      %v496 = vld [vmem:[%s451 + $0x4c] sm:$0xf]
      %v497 = vld [vmem:[%s451 + $0x50] sm:$0xf]
      %v498 = vld [vmem:[%s451 + $0x54] sm:$0xf]
      %v499 = vld [vmem:[%s451 + $0x58] sm:$0xf]
      %v500 = vld [vmem:[%s451 + $0x5c] sm:$0xf]
      %v501 = vld [vmem:[%s451 + $0x60] sm:$0xf]
      %v502 = vld [vmem:[%s451 + $0x64] sm:$0xf]
      %v503 = vld [vmem:[%s451 + $0x68] sm:$0xf]
      %v504 = vld [vmem:[%s451 + $0x6c] sm:$0xf]
      %v505 = vld [vmem:[%s451 + $0x70] sm:$0xf]
      %v506 = vld [vmem:[%s451 + $0x74] sm:$0xf]
      %v507 = vld [vmem:[%s451 + $0x78] sm:$0xf]
      %v508 = vld [vmem:[%s451 + $0x7c] sm:$0xf]
      %v509 = vunpack.c.l.bf16 %v477
      %v510 = vunpack.c.l.bf16 %v478
      %v511 = vunpack.c.l.bf16 %v479
      %v512 = vunpack.c.l.bf16 %v480
      %v513 = vunpack.c.l.bf16 %v481
      %v514 = vunpack.c.l.bf16 %v482
      %v515 = vunpack.c.l.bf16 %v483
      %v516 = vunpack.c.l.bf16 %v484
      %v517 = vunpack.c.l.bf16 %v485
      %v518 = vunpack.c.l.bf16 %v486
      %v519 = vunpack.c.l.bf16 %v487
      %v520 = vunpack.c.l.bf16 %v488
      %v521 = vunpack.c.l.bf16 %v489
      %v522 = vunpack.c.l.bf16 %v490
      %v523 = vunpack.c.l.bf16 %v491
      %v524 = vunpack.c.l.bf16 %v492
      %v525 = vunpack.c.l.bf16 %v493
      %v526 = vunpack.c.l.bf16 %v494
      %v527 = vunpack.c.l.bf16 %v495
      %v528 = vunpack.c.l.bf16 %v496
      %v529 = vunpack.c.l.bf16 %v497
      %v530 = vunpack.c.l.bf16 %v498
      %v531 = vunpack.c.l.bf16 %v499
      %v532 = vunpack.c.l.bf16 %v500
      %v533 = vunpack.c.l.bf16 %v501
      %v534 = vunpack.c.l.bf16 %v502
      %v535 = vunpack.c.l.bf16 %v503
      %v536 = vunpack.c.l.bf16 %v504
      %v537 = vunpack.c.l.bf16 %v505
      %v538 = vunpack.c.l.bf16 %v506
      %v539 = vunpack.c.l.bf16 %v507
      %v540 = vunpack.c.l.bf16 %v508
      %v541 = vld [vmem:[%s461] sm:$0xff]
      %v542 = vld [vmem:[%s461 + $0x8] sm:$0xff]
      %v543 = vld [vmem:[%s461 + $0x10] sm:$0xff]
      %v544 = vld [vmem:[%s461 + $0x18] sm:$0xff]
      %v545 = vld [vmem:[%s461 + $0x20] sm:$0xff]
      %v546 = vld [vmem:[%s461 + $0x28] sm:$0xff]
      %v547 = vld [vmem:[%s461 + $0x30] sm:$0xff]
      %v548 = vld [vmem:[%s461 + $0x38] sm:$0xff]
      %v549 = vld [vmem:[%s461 + $0x40] sm:$0xff]
      %v550 = vld [vmem:[%s461 + $0x48] sm:$0xff]
      %v551 = vld [vmem:[%s461 + $0x50] sm:$0xff]
      %v552 = vld [vmem:[%s461 + $0x58] sm:$0xff]
      %v553 = vld [vmem:[%s461 + $0x60] sm:$0xff]
      %v554 = vld [vmem:[%s461 + $0x68] sm:$0xff]
      %v555 = vld [vmem:[%s461 + $0x70] sm:$0xff]
      %v556 = vld [vmem:[%s461 + $0x78] sm:$0xff]
      %v557 = vld [vmem:[%s461 + $0x80] sm:$0xff]
      %v558 = vld [vmem:[%s461 + $0x88] sm:$0xff]
      %v559 = vld [vmem:[%s461 + $0x90] sm:$0xff]
      %v560 = vld [vmem:[%s461 + $0x98] sm:$0xff]
      %v561 = vld [vmem:[%s461 + $0xa0] sm:$0xff]
      %v562 = vld [vmem:[%s461 + $0xa8] sm:$0xff]
      %v563 = vld [vmem:[%s461 + $0xb0] sm:$0xff]
      %v564 = vld [vmem:[%s461 + $0xb8] sm:$0xff]
      %v565 = vld [vmem:[%s461 + $0xc0] sm:$0xff]
      %v566 = vld [vmem:[%s461 + $0xc8] sm:$0xff]
      %v567 = vld [vmem:[%s461 + $0xd0] sm:$0xff]
      %v568 = vld [vmem:[%s461 + $0xd8] sm:$0xff]
      %v569 = vld [vmem:[%s461 + $0xe0] sm:$0xff]
      %v570 = vld [vmem:[%s461 + $0xe8] sm:$0xff]
      %v571 = vld [vmem:[%s461 + $0xf0] sm:$0xff]
      %v572 = vld [vmem:[%s461 + $0xf8] sm:$0xff]
      %v573 = vadd.f32 %v509, %v541
      %v574 = vadd.f32 %v510, %v542
      %v575 = vadd.f32 %v511, %v543
      %v576 = vadd.f32 %v512, %v544
      %v577 = vadd.f32 %v513, %v545
      %v578 = vadd.f32 %v514, %v546
      %v579 = vadd.f32 %v515, %v547
      %v580 = vadd.f32 %v516, %v548
      %v581 = vadd.f32 %v517, %v549
      %v582 = vadd.f32 %v518, %v550
      %v583 = vadd.f32 %v519, %v551
      %v584 = vadd.f32 %v520, %v552
      %v585 = vadd.f32 %v521, %v553
      %v586 = vadd.f32 %v522, %v554
      %v587 = vadd.f32 %v523, %v555
      %v588 = vadd.f32 %v524, %v556
      %v589 = vadd.f32 %v525, %v557
      %v590 = vadd.f32 %v526, %v558
      %v591 = vadd.f32 %v527, %v559
      %v592 = vadd.f32 %v528, %v560
      %v593 = vadd.f32 %v529, %v561
      %v594 = vadd.f32 %v530, %v562
      %v595 = vadd.f32 %v531, %v563
      %v596 = vadd.f32 %v532, %v564
      %v597 = vadd.f32 %v533, %v565
      %v598 = vadd.f32 %v534, %v566
      %v599 = vadd.f32 %v535, %v567
      %v600 = vadd.f32 %v536, %v568
      %v601 = vadd.f32 %v537, %v569
      %v602 = vadd.f32 %v538, %v570
      %v603 = vadd.f32 %v539, %v571
      %v604 = vadd.f32 %v540, %v572
      %v605 = vld [vmem:[%s465] sm:$0x1]
      %v607 = vlaneseq
      %v608 = vshrl.u32 %v607, 7
      %v609 = vsub.s32 0, %v608
      %v610 = vrot.slane %v605, %v609
      %v612 = vadd.f32 %v573, %v610
      %v613 = vadd.f32 %v574, %v610
      %v614 = vadd.f32 %v575, %v610
      %v615 = vadd.f32 %v576, %v610
      %v616 = vadd.f32 %v577, %v610
      %v617 = vadd.f32 %v578, %v610
      %v618 = vadd.f32 %v579, %v610
      %v619 = vadd.f32 %v580, %v610
      %v620 = vadd.f32 %v581, %v610
      %v621 = vadd.f32 %v582, %v610
      %v622 = vadd.f32 %v583, %v610
      %v623 = vadd.f32 %v584, %v610
      %v624 = vadd.f32 %v585, %v610
      %v625 = vadd.f32 %v586, %v610
      %v626 = vadd.f32 %v587, %v610
      %v627 = vadd.f32 %v588, %v610
      %v628 = vadd.f32 %v589, %v610
      %v629 = vadd.f32 %v590, %v610
      %v630 = vadd.f32 %v591, %v610
      %v631 = vadd.f32 %v592, %v610
      %v632 = vadd.f32 %v593, %v610
      %v633 = vadd.f32 %v594, %v610
      %v634 = vadd.f32 %v595, %v610
      %v635 = vadd.f32 %v596, %v610
      %v636 = vadd.f32 %v597, %v610
      %v637 = vadd.f32 %v598, %v610
      %v638 = vadd.f32 %v599, %v610
      %v639 = vadd.f32 %v600, %v610
      %v640 = vadd.f32 %v601, %v610
      %v641 = vadd.f32 %v602, %v610
      %v642 = vadd.f32 %v603, %v610
      %v643 = vadd.f32 %v604, %v610
      %v644 = vpack.c.bf16 %v613, %v612
      %v645 = vpack.c.bf16 %v615, %v614
      %v646 = vpack.c.bf16 %v617, %v616
      %v647 = vpack.c.bf16 %v619, %v618
      %v648 = vpack.c.bf16 %v621, %v620
      %v649 = vpack.c.bf16 %v623, %v622
      %v650 = vpack.c.bf16 %v625, %v624
      %v651 = vpack.c.bf16 %v627, %v626
      %v652 = vpack.c.bf16 %v629, %v628
      %v653 = vpack.c.bf16 %v631, %v630
      %v654 = vpack.c.bf16 %v633, %v632
      %v655 = vpack.c.bf16 %v635, %v634
      %v656 = vpack.c.bf16 %v637, %v636
      %v657 = vpack.c.bf16 %v639, %v638
      %v658 = vpack.c.bf16 %v641, %v640
      %v659 = vpack.c.bf16 %v643, %v642
      %v660 = vld [vmem:[%s3] sm:$0xf]
      %v661 = vld [vmem:[%s3 + $0x4] sm:$0xf]
      %v662 = vld [vmem:[%s3 + $0x8] sm:$0xf]
      %v663 = vld [vmem:[%s3 + $0xc] sm:$0xf]
      %v664 = vld [vmem:[%s3 + $0x10] sm:$0xf]
      %v665 = vld [vmem:[%s3 + $0x14] sm:$0xf]
      %v666 = vld [vmem:[%s3 + $0x18] sm:$0xf]
      %v667 = vld [vmem:[%s3 + $0x1c] sm:$0xf]
      %v668 = vld [vmem:[%s3 + $0x20] sm:$0xf]
      %v669 = vld [vmem:[%s3 + $0x24] sm:$0xf]
      %v670 = vld [vmem:[%s3 + $0x28] sm:$0xf]
      %v671 = vld [vmem:[%s3 + $0x2c] sm:$0xf]
      %v672 = vld [vmem:[%s3 + $0x30] sm:$0xf]
      %v673 = vld [vmem:[%s3 + $0x34] sm:$0xf]
      %v674 = vld [vmem:[%s3 + $0x38] sm:$0xf]
      %v675 = vld [vmem:[%s3 + $0x3c] sm:$0xf]
      %v676 = vld [vmem:[%s4] sm:$0x1]
      %v678 = vlaneseq
      %v679 = vshrl.u32 %v678, 7
      %v680 = vsub.s32 0, %v679
      %v681 = vrot.slane %v676, %v680
      %v699 = vunpack.c.l.b16 %v660
      %v700 = vunpack.c.l.b16 %v661
      %v701 = vunpack.c.l.b16 %v662
      %v702 = vunpack.c.l.b16 %v663
      %v703 = vunpack.c.l.b16 %v664
      %v704 = vunpack.c.l.b16 %v665
      %v705 = vunpack.c.l.b16 %v666
      %v706 = vunpack.c.l.b16 %v667
      %v707 = vunpack.c.l.b16 %v668
      %v708 = vunpack.c.l.b16 %v669
      %v709 = vunpack.c.l.b16 %v670
      %v710 = vunpack.c.l.b16 %v671
      %v711 = vunpack.c.l.b16 %v672
      %v712 = vunpack.c.l.b16 %v673
      %v713 = vunpack.c.l.b16 %v674
      %v714 = vunpack.c.l.b16 %v675
      %v715 = vpack.c.b16 %v700, %v699
      %v716 = vpack.c.b16 %v702, %v701
      %v717 = vpack.c.b16 %v704, %v703
      %v718 = vpack.c.b16 %v706, %v705
      %v719 = vpack.c.b16 %v708, %v707
      %v720 = vpack.c.b16 %v710, %v709
      %v721 = vpack.c.b16 %v712, %v711
      %v722 = vpack.c.b16 %v714, %v713
      %731 = vmatprep.subr.bf16.mxu0 0
      %732 = vmatpush1.bf16.msra.mxu0 %v715
      %733 = vmatprep.subr.bf16.mxu0 0
      %734 = vmatpush1.bf16.msra.mxu0 %v716
      %735 = vmatprep.subr.bf16.mxu0 0
      %736 = vmatpush1.bf16.msra.mxu0 %v717
      %737 = vmatprep.subr.bf16.mxu0 0
      %738 = vmatpush1.bf16.msra.mxu0 %v718
      %739 = vmatprep.subr.bf16.mxu0 0
      %740 = vmatpush1.bf16.msra.mxu0 %v719
      %741 = vmatprep.subr.bf16.mxu0 0
      %742 = vmatpush1.bf16.msra.mxu0 %v720
      %743 = vmatprep.subr.bf16.mxu0 0
      %744 = vmatpush1.bf16.msra.mxu0 %v721
      %745 = vmatprep.subr.bf16.mxu0 0
      %746 = vmatpush1.bf16.msra.mxu0 %v722
      %747 = vmatprep.subr.bf16.mxu0 0
      %748 = vmatpush1.bf16.msra.mxu0 0
      %749 = vmatprep.subr.bf16.mxu0 0
      %750 = vmatpush1.bf16.msra.mxu0 0
      %751 = vmatprep.subr.bf16.mxu0 0
      %752 = vmatpush1.bf16.msra.mxu0 0
      %753 = vmatprep.subr.bf16.mxu0 0
      %754 = vmatpush1.bf16.msra.mxu0 0
      %755 = vmatprep.subr.bf16.mxu0 0
      %756 = vmatpush1.bf16.msra.mxu0 0
      %757 = vmatprep.subr.bf16.mxu0 0
      %758 = vmatpush1.bf16.msra.mxu0 0
      %759 = vmatprep.subr.bf16.mxu0 0
      %760 = vmatpush1.bf16.msra.mxu0 0
      %761 = vmatprep.subr.bf16.mxu0 0
      %762 = vmatpush1.bf16.msra.mxu0 0
      %763 = vmatprep.mubr.bf16.mxu0 0
      %764 = vmatmul.mubr.bf16.gmra.mrb[0].mxu0 %v644
      %v765 = vpop.f32.mrb[0].mxu0
      %v766 = vadd.f32 %v681, %v765
      %v767 = vpop.f32.mrb[0].mxu0
      %v768 = vpop.f32.mrb[0].mxu0
      %v769 = vadd.f32 %v681, %v768
      %v770 = vpop.f32.mrb[0].mxu0
      %771 = vmatprep.mubr.bf16.mxu0 0
      %772 = vmatmul.mubr.bf16.gmra.mrb[0].mxu0 %v645
      %v773 = vpop.f32.mrb[0].mxu0
      %v774 = vadd.f32 %v681, %v773
      %v775 = vpop.f32.mrb[0].mxu0
      %v776 = vpop.f32.mrb[0].mxu0
      %v777 = vadd.f32 %v681, %v776
      %v778 = vpop.f32.mrb[0].mxu0
      %779 = vmatprep.mubr.bf16.mxu0 0
      %780 = vmatmul.mubr.bf16.gmra.mrb[0].mxu0 %v646
      %v781 = vpop.f32.mrb[0].mxu0
      %v782 = vadd.f32 %v681, %v781
      %v783 = vpop.f32.mrb[0].mxu0
      %v784 = vpop.f32.mrb[0].mxu0
      %v785 = vadd.f32 %v681, %v784
      %v786 = vpop.f32.mrb[0].mxu0
      %787 = vmatprep.mubr.bf16.mxu0 0
      %788 = vmatmul.mubr.bf16.gmra.mrb[0].mxu0 %v647
      %v789 = vpop.f32.mrb[0].mxu0
      %v790 = vadd.f32 %v681, %v789
      %v791 = vpop.f32.mrb[0].mxu0
      %v792 = vpop.f32.mrb[0].mxu0
      %v793 = vadd.f32 %v681, %v792
      %v794 = vpop.f32.mrb[0].mxu0
      %795 = vmatprep.mubr.bf16.mxu0 0
      %796 = vmatmul.mubr.bf16.gmra.mrb[0].mxu0 %v648
      %v797 = vpop.f32.mrb[0].mxu0
      %v798 = vadd.f32 %v681, %v797
      %v799 = vpop.f32.mrb[0].mxu0
      %v800 = vpop.f32.mrb[0].mxu0
      %v801 = vadd.f32 %v681, %v800
      %v802 = vpop.f32.mrb[0].mxu0
      %803 = vmatprep.mubr.bf16.mxu0 0
      %804 = vmatmul.mubr.bf16.gmra.mrb[0].mxu0 %v649
      %v805 = vpop.f32.mrb[0].mxu0
      %v806 = vadd.f32 %v681, %v805
      %v807 = vpop.f32.mrb[0].mxu0
      %v808 = vpop.f32.mrb[0].mxu0
      %v809 = vadd.f32 %v681, %v808
      %v810 = vpop.f32.mrb[0].mxu0
      %811 = vmatprep.mubr.bf16.mxu0 0
      %812 = vmatmul.mubr.bf16.gmra.mrb[0].mxu0 %v650
      %v813 = vpop.f32.mrb[0].mxu0
      %v814 = vadd.f32 %v681, %v813
      %v815 = vpop.f32.mrb[0].mxu0
      %v816 = vpop.f32.mrb[0].mxu0
      %v817 = vadd.f32 %v681, %v816
      %v818 = vpop.f32.mrb[0].mxu0
      %819 = vmatprep.mubr.bf16.mxu0 0
      %820 = vmatmul.mubr.bf16.gmra.mrb[0].mxu0 %v651
      %v821 = vpop.f32.mrb[0].mxu0
      %v822 = vadd.f32 %v681, %v821
      %v823 = vpop.f32.mrb[0].mxu0
      %v824 = vpop.f32.mrb[0].mxu0
      %v825 = vadd.f32 %v681, %v824
      %v826 = vpop.f32.mrb[0].mxu0
      %827 = vmatprep.mubr.bf16.mxu0 0
      %828 = vmatmul.mubr.bf16.gmra.mrb[0].mxu0 %v652
      %v829 = vpop.f32.mrb[0].mxu0
      %v830 = vadd.f32 %v681, %v829
      %v831 = vpop.f32.mrb[0].mxu0
      %v832 = vpop.f32.mrb[0].mxu0
      %v833 = vadd.f32 %v681, %v832
      %v834 = vpop.f32.mrb[0].mxu0
      %835 = vmatprep.mubr.bf16.mxu0 0
      %836 = vmatmul.mubr.bf16.gmra.mrb[0].mxu0 %v653
      %v837 = vpop.f32.mrb[0].mxu0
      %v838 = vadd.f32 %v681, %v837
      %v839 = vpop.f32.mrb[0].mxu0
      %v840 = vpop.f32.mrb[0].mxu0
      %v841 = vadd.f32 %v681, %v840
      %v842 = vpop.f32.mrb[0].mxu0
      %843 = vmatprep.mubr.bf16.mxu0 0
      %844 = vmatmul.mubr.bf16.gmra.mrb[0].mxu0 %v654
      %v845 = vpop.f32.mrb[0].mxu0
      %v846 = vadd.f32 %v681, %v845
      %v847 = vpop.f32.mrb[0].mxu0
      %v848 = vpop.f32.mrb[0].mxu0
      %v849 = vadd.f32 %v681, %v848
      %v850 = vpop.f32.mrb[0].mxu0
      %851 = vmatprep.mubr.bf16.mxu0 0
      %852 = vmatmul.mubr.bf16.gmra.mrb[0].mxu0 %v655
      %v853 = vpop.f32.mrb[0].mxu0
      %v854 = vadd.f32 %v681, %v853
      %v855 = vpop.f32.mrb[0].mxu0
      %v856 = vpop.f32.mrb[0].mxu0
      %v857 = vadd.f32 %v681, %v856
      %v858 = vpop.f32.mrb[0].mxu0
      %859 = vmatprep.mubr.bf16.mxu0 0
      %860 = vmatmul.mubr.bf16.gmra.mrb[0].mxu0 %v656
      %v861 = vpop.f32.mrb[0].mxu0
      %v862 = vadd.f32 %v681, %v861
      %v863 = vpop.f32.mrb[0].mxu0
      %v864 = vpop.f32.mrb[0].mxu0
      %v865 = vadd.f32 %v681, %v864
      %v866 = vpop.f32.mrb[0].mxu0
      %867 = vmatprep.mubr.bf16.mxu0 0
      %868 = vmatmul.mubr.bf16.gmra.mrb[0].mxu0 %v657
      %v869 = vpop.f32.mrb[0].mxu0
      %v870 = vadd.f32 %v681, %v869
      %v871 = vpop.f32.mrb[0].mxu0
      %v872 = vpop.f32.mrb[0].mxu0
      %v873 = vadd.f32 %v681, %v872
      %v874 = vpop.f32.mrb[0].mxu0
      %875 = vmatprep.mubr.bf16.mxu0 0
      %876 = vmatmul.mubr.bf16.gmra.mrb[0].mxu0 %v658
      %v877 = vpop.f32.mrb[0].mxu0
      %v878 = vadd.f32 %v681, %v877
      %v879 = vpop.f32.mrb[0].mxu0
      %v880 = vpop.f32.mrb[0].mxu0
      %v881 = vadd.f32 %v681, %v880
      %v882 = vpop.f32.mrb[0].mxu0
      %883 = vmatprep.mubr.bf16.mxu0 0
      %884 = vmatmul.mubr.bf16.gmra.mrb[0].mxu0 %v659
      %v885 = vpop.f32.mrb[0].mxu0
      %v886 = vadd.f32 %v681, %v885
      %v887 = vpop.f32.mrb[0].mxu0
      %v888 = vpop.f32.mrb[0].mxu0
      %v889 = vadd.f32 %v681, %v888
      %v890 = vpop.f32.mrb[0].mxu0
      %891 = vdwg.mxu0
      %v892 = vmax.f32 %v766, 0.0
      %v893 = vmax.f32 %v769, 0.0
      %v894 = vmax.f32 %v774, 0.0
      %v895 = vmax.f32 %v777, 0.0
      %v896 = vmax.f32 %v782, 0.0
      %v897 = vmax.f32 %v785, 0.0
      %v898 = vmax.f32 %v790, 0.0
      %v899 = vmax.f32 %v793, 0.0
      %v900 = vmax.f32 %v798, 0.0
      %v901 = vmax.f32 %v801, 0.0
      %v902 = vmax.f32 %v806, 0.0
      %v903 = vmax.f32 %v809, 0.0
      %v904 = vmax.f32 %v814, 0.0
      %v905 = vmax.f32 %v817, 0.0
      %v906 = vmax.f32 %v822, 0.0
      %v907 = vmax.f32 %v825, 0.0
      %v908 = vmax.f32 %v830, 0.0
      %v909 = vmax.f32 %v833, 0.0
      %v910 = vmax.f32 %v838, 0.0
      %v911 = vmax.f32 %v841, 0.0
      %v912 = vmax.f32 %v846, 0.0
      %v913 = vmax.f32 %v849, 0.0
      %v914 = vmax.f32 %v854, 0.0
      %v915 = vmax.f32 %v857, 0.0
      %v916 = vmax.f32 %v862, 0.0
      %v917 = vmax.f32 %v865, 0.0
      %v918 = vmax.f32 %v870, 0.0
      %v919 = vmax.f32 %v873, 0.0
      %v920 = vmax.f32 %v878, 0.0
      %v921 = vmax.f32 %v881, 0.0
      %v922 = vmax.f32 %v886, 0.0
      %v923 = vmax.f32 %v889, 0.0
      %v924 = vpack.c.bf16 %v893, %v892
      %v925 = vpack.c.bf16 %v895, %v894
      %v926 = vpack.c.bf16 %v897, %v896
      %v927 = vpack.c.bf16 %v899, %v898
      %v928 = vpack.c.bf16 %v901, %v900
      %v929 = vpack.c.bf16 %v903, %v902
      %v930 = vpack.c.bf16 %v905, %v904
      %v931 = vpack.c.bf16 %v907, %v906
      %v932 = vpack.c.bf16 %v909, %v908
      %v933 = vpack.c.bf16 %v911, %v910
      %v934 = vpack.c.bf16 %v913, %v912
      %v935 = vpack.c.bf16 %v915, %v914
      %v936 = vpack.c.bf16 %v917, %v916
      %v937 = vpack.c.bf16 %v919, %v918
      %v938 = vpack.c.bf16 %v921, %v920
      %v939 = vpack.c.bf16 %v923, %v922
      %v940 = vld [vmem:[%s5] sm:$0xf]
      %v941 = vld [vmem:[%s5 + $0x4] sm:$0xf]
      %v942 = vld [vmem:[%s5 + $0x8] sm:$0xf]
      %v943 = vld [vmem:[%s5 + $0xc] sm:$0xf]
      %v944 = vld [vmem:[%s5 + $0x10] sm:$0xf]
      %v945 = vld [vmem:[%s5 + $0x14] sm:$0xf]
      %v946 = vld [vmem:[%s5 + $0x18] sm:$0xf]
      %v947 = vld [vmem:[%s5 + $0x1c] sm:$0xf]
      %v948 = vld [vmem:[%s6] sm:$0x1]
      %v950 = vlaneseq
      %v951 = vshrl.u32 %v950, 7
      %v952 = vsub.s32 0, %v951
      %v953 = vrot.slane %v948, %v952
      %v963 = vunpack.c.l.b16 %v940
      %v964 = vunpack.c.l.b16 %v941
      %v965 = vunpack.c.l.b16 %v942
      %v966 = vunpack.c.l.b16 %v943
      %v967 = vunpack.c.l.b16 %v944
      %v968 = vunpack.c.l.b16 %v945
      %v969 = vunpack.c.l.b16 %v946
      %v970 = vunpack.c.l.b16 %v947
      %v971 = vpack.c.b16 %v964, %v963
      %v972 = vpack.c.b16 %v966, %v965
      %v973 = vpack.c.b16 %v968, %v967
      %v974 = vpack.c.b16 %v970, %v969
      %vm979 = vcmask 523264
      %v981 = vsel %vm979, %v924, 0
      %v984 = vsel %vm979, %v925, 0
      %v987 = vsel %vm979, %v926, 0
      %v990 = vsel %vm979, %v927, 0
      %v993 = vsel %vm979, %v928, 0
      %v996 = vsel %vm979, %v929, 0
      %v999 = vsel %vm979, %v930, 0
      %v1002 = vsel %vm979, %v931, 0
      %v1005 = vsel %vm979, %v932, 0
      %v1008 = vsel %vm979, %v933, 0
      %v1011 = vsel %vm979, %v934, 0
      %v1014 = vsel %vm979, %v935, 0
      %v1017 = vsel %vm979, %v936, 0
      %v1020 = vsel %vm979, %v937, 0
      %v1023 = vsel %vm979, %v938, 0
      %v1026 = vsel %vm979, %v939, 0
      %1028 = vmatprep.subr.bf16.mxu0 0
      %1029 = vmatpush1.bf16.msra.mxu0 %v971
      %1030 = vmatprep.subr.bf16.mxu0 0
      %1031 = vmatpush1.bf16.msra.mxu0 %v972
      %1032 = vmatprep.subr.bf16.mxu0 0
      %1033 = vmatpush1.bf16.msra.mxu0 %v973
      %1034 = vmatprep.subr.bf16.mxu0 0
      %1035 = vmatpush1.bf16.msra.mxu0 %v974
      %1036 = vmatprep.subr.bf16.mxu0 0
      %1037 = vmatpush1.bf16.msra.mxu0 0
      %1038 = vmatprep.subr.bf16.mxu0 0
      %1039 = vmatpush1.bf16.msra.mxu0 0
      %1040 = vmatprep.subr.bf16.mxu0 0
      %1041 = vmatpush1.bf16.msra.mxu0 0
      %1042 = vmatprep.subr.bf16.mxu0 0
      %1043 = vmatpush1.bf16.msra.mxu0 0
      %1044 = vmatprep.subr.bf16.mxu0 0
      %1045 = vmatpush1.bf16.msra.mxu0 0
      %1046 = vmatprep.subr.bf16.mxu0 0
      %1047 = vmatpush1.bf16.msra.mxu0 0
      %1048 = vmatprep.subr.bf16.mxu0 0
      %1049 = vmatpush1.bf16.msra.mxu0 0
      %1050 = vmatprep.subr.bf16.mxu0 0
      %1051 = vmatpush1.bf16.msra.mxu0 0
      %1052 = vmatprep.subr.bf16.mxu0 0
      %1053 = vmatpush1.bf16.msra.mxu0 0
      %1054 = vmatprep.subr.bf16.mxu0 0
      %1055 = vmatpush1.bf16.msra.mxu0 0
      %1056 = vmatprep.subr.bf16.mxu0 0
      %1057 = vmatpush1.bf16.msra.mxu0 0
      %1058 = vmatprep.subr.bf16.mxu0 0
      %1059 = vmatpush1.bf16.msra.mxu0 0
      %1060 = vmatprep.mubr.bf16.mxu0 0
      %1061 = vmatmul.mubr.bf16.gmra.mrb[0].mxu0 %v981
      %v1062 = vpop.f32.mrb[0].mxu0
      %v1063 = vadd.f32 %v953, %v1062
      %v1064 = vpop.f32.mrb[0].mxu0
      %v1065 = vpop.f32.mrb[0].mxu0
      %v1066 = vadd.f32 %v953, %v1065
      %v1067 = vpop.f32.mrb[0].mxu0
      %1068 = vmatprep.mubr.bf16.mxu0 0
      %1069 = vmatmul.mubr.bf16.gmra.mrb[0].mxu0 %v984
      %v1070 = vpop.f32.mrb[0].mxu0
      %v1071 = vadd.f32 %v953, %v1070
      %v1072 = vpop.f32.mrb[0].mxu0
      %v1073 = vpop.f32.mrb[0].mxu0
      %v1074 = vadd.f32 %v953, %v1073
      %v1075 = vpop.f32.mrb[0].mxu0
      %1076 = vmatprep.mubr.bf16.mxu0 0
      %1077 = vmatmul.mubr.bf16.gmra.mrb[0].mxu0 %v987
      %v1078 = vpop.f32.mrb[0].mxu0
      %v1079 = vadd.f32 %v953, %v1078
      %v1080 = vpop.f32.mrb[0].mxu0
      %v1081 = vpop.f32.mrb[0].mxu0
      %v1082 = vadd.f32 %v953, %v1081
      %v1083 = vpop.f32.mrb[0].mxu0
      %1084 = vmatprep.mubr.bf16.mxu0 0
      %1085 = vmatmul.mubr.bf16.gmra.mrb[0].mxu0 %v990
      %v1086 = vpop.f32.mrb[0].mxu0
      %v1087 = vadd.f32 %v953, %v1086
      %v1088 = vpop.f32.mrb[0].mxu0
      %v1089 = vpop.f32.mrb[0].mxu0
      %v1090 = vadd.f32 %v953, %v1089
      %v1091 = vpop.f32.mrb[0].mxu0
      %1092 = vmatprep.mubr.bf16.mxu0 0
      %1093 = vmatmul.mubr.bf16.gmra.mrb[0].mxu0 %v993
      %v1094 = vpop.f32.mrb[0].mxu0
      %v1095 = vadd.f32 %v953, %v1094
      %v1096 = vpop.f32.mrb[0].mxu0
      %v1097 = vpop.f32.mrb[0].mxu0
      %v1098 = vadd.f32 %v953, %v1097
      %v1099 = vpop.f32.mrb[0].mxu0
      %1100 = vmatprep.mubr.bf16.mxu0 0
      %1101 = vmatmul.mubr.bf16.gmra.mrb[0].mxu0 %v996
      %v1102 = vpop.f32.mrb[0].mxu0
      %v1103 = vadd.f32 %v953, %v1102
      %v1104 = vpop.f32.mrb[0].mxu0
      %v1105 = vpop.f32.mrb[0].mxu0
      %v1106 = vadd.f32 %v953, %v1105
      %v1107 = vpop.f32.mrb[0].mxu0
      %1108 = vmatprep.mubr.bf16.mxu0 0
      %1109 = vmatmul.mubr.bf16.gmra.mrb[0].mxu0 %v999
      %v1110 = vpop.f32.mrb[0].mxu0
      %v1111 = vadd.f32 %v953, %v1110
      %v1112 = vpop.f32.mrb[0].mxu0
      %v1113 = vpop.f32.mrb[0].mxu0
      %v1114 = vadd.f32 %v953, %v1113
      %v1115 = vpop.f32.mrb[0].mxu0
      %1116 = vmatprep.mubr.bf16.mxu0 0
      %1117 = vmatmul.mubr.bf16.gmra.mrb[0].mxu0 %v1002
      %v1118 = vpop.f32.mrb[0].mxu0
      %v1119 = vadd.f32 %v953, %v1118
      %v1120 = vpop.f32.mrb[0].mxu0
      %v1121 = vpop.f32.mrb[0].mxu0
      %v1122 = vadd.f32 %v953, %v1121
      %v1123 = vpop.f32.mrb[0].mxu0
      %1124 = vmatprep.mubr.bf16.mxu0 0
      %1125 = vmatmul.mubr.bf16.gmra.mrb[0].mxu0 %v1005
      %v1126 = vpop.f32.mrb[0].mxu0
      %v1127 = vadd.f32 %v953, %v1126
      %v1128 = vpop.f32.mrb[0].mxu0
      %v1129 = vpop.f32.mrb[0].mxu0
      %v1130 = vadd.f32 %v953, %v1129
      %v1131 = vpop.f32.mrb[0].mxu0
      %1132 = vmatprep.mubr.bf16.mxu0 0
      %1133 = vmatmul.mubr.bf16.gmra.mrb[0].mxu0 %v1008
      %v1134 = vpop.f32.mrb[0].mxu0
      %v1135 = vadd.f32 %v953, %v1134
      %v1136 = vpop.f32.mrb[0].mxu0
      %v1137 = vpop.f32.mrb[0].mxu0
      %v1138 = vadd.f32 %v953, %v1137
      %v1139 = vpop.f32.mrb[0].mxu0
      %1140 = vmatprep.mubr.bf16.mxu0 0
      %1141 = vmatmul.mubr.bf16.gmra.mrb[0].mxu0 %v1011
      %v1142 = vpop.f32.mrb[0].mxu0
      %v1143 = vadd.f32 %v953, %v1142
      %v1144 = vpop.f32.mrb[0].mxu0
      %v1145 = vpop.f32.mrb[0].mxu0
      %v1146 = vadd.f32 %v953, %v1145
      %v1147 = vpop.f32.mrb[0].mxu0
      %1148 = vmatprep.mubr.bf16.mxu0 0
      %1149 = vmatmul.mubr.bf16.gmra.mrb[0].mxu0 %v1014
      %v1150 = vpop.f32.mrb[0].mxu0
      %v1151 = vadd.f32 %v953, %v1150
      %v1152 = vpop.f32.mrb[0].mxu0
      %v1153 = vpop.f32.mrb[0].mxu0
      %v1154 = vadd.f32 %v953, %v1153
      %v1155 = vpop.f32.mrb[0].mxu0
      %1156 = vmatprep.mubr.bf16.mxu0 0
      %1157 = vmatmul.mubr.bf16.gmra.mrb[0].mxu0 %v1017
      %v1158 = vpop.f32.mrb[0].mxu0
      %v1159 = vadd.f32 %v953, %v1158
      %v1160 = vpop.f32.mrb[0].mxu0
      %v1161 = vpop.f32.mrb[0].mxu0
      %v1162 = vadd.f32 %v953, %v1161
      %v1163 = vpop.f32.mrb[0].mxu0
      %1164 = vmatprep.mubr.bf16.mxu0 0
      %1165 = vmatmul.mubr.bf16.gmra.mrb[0].mxu0 %v1020
      %v1166 = vpop.f32.mrb[0].mxu0
      %v1167 = vadd.f32 %v953, %v1166
      %v1168 = vpop.f32.mrb[0].mxu0
      %v1169 = vpop.f32.mrb[0].mxu0
      %v1170 = vadd.f32 %v953, %v1169
      %v1171 = vpop.f32.mrb[0].mxu0
      %1172 = vmatprep.mubr.bf16.mxu0 0
      %1173 = vmatmul.mubr.bf16.gmra.mrb[0].mxu0 %v1023
      %v1174 = vpop.f32.mrb[0].mxu0
      %v1175 = vadd.f32 %v953, %v1174
      %v1176 = vpop.f32.mrb[0].mxu0
      %v1177 = vpop.f32.mrb[0].mxu0
      %v1178 = vadd.f32 %v953, %v1177
      %v1179 = vpop.f32.mrb[0].mxu0
      %1180 = vmatprep.mubr.bf16.mxu0 0
      %1181 = vmatmul.mubr.bf16.gmra.mrb[0].mxu0 %v1026
      %v1182 = vpop.f32.mrb[0].mxu0
      %v1183 = vadd.f32 %v953, %v1182
      %v1184 = vpop.f32.mrb[0].mxu0
      %v1185 = vpop.f32.mrb[0].mxu0
      %v1186 = vadd.f32 %v953, %v1185
      %v1187 = vpop.f32.mrb[0].mxu0
      %1188 = vdwg.mxu0
      %v1189 = vmax.f32 %v1063, 0.0
      %v1190 = vmax.f32 %v1066, 0.0
      %v1191 = vmax.f32 %v1071, 0.0
      %v1192 = vmax.f32 %v1074, 0.0
      %v1193 = vmax.f32 %v1079, 0.0
      %v1194 = vmax.f32 %v1082, 0.0
      %v1195 = vmax.f32 %v1087, 0.0
      %v1196 = vmax.f32 %v1090, 0.0
      %v1197 = vmax.f32 %v1095, 0.0
      %v1198 = vmax.f32 %v1098, 0.0
      %v1199 = vmax.f32 %v1103, 0.0
      %v1200 = vmax.f32 %v1106, 0.0
      %v1201 = vmax.f32 %v1111, 0.0
      %v1202 = vmax.f32 %v1114, 0.0
      %v1203 = vmax.f32 %v1119, 0.0
      %v1204 = vmax.f32 %v1122, 0.0
      %v1205 = vmax.f32 %v1127, 0.0
      %v1206 = vmax.f32 %v1130, 0.0
      %v1207 = vmax.f32 %v1135, 0.0
      %v1208 = vmax.f32 %v1138, 0.0
      %v1209 = vmax.f32 %v1143, 0.0
      %v1210 = vmax.f32 %v1146, 0.0
      %v1211 = vmax.f32 %v1151, 0.0
      %v1212 = vmax.f32 %v1154, 0.0
      %v1213 = vmax.f32 %v1159, 0.0
      %v1214 = vmax.f32 %v1162, 0.0
      %v1215 = vmax.f32 %v1167, 0.0
      %v1216 = vmax.f32 %v1170, 0.0
      %v1217 = vmax.f32 %v1175, 0.0
      %v1218 = vmax.f32 %v1178, 0.0
      %v1219 = vmax.f32 %v1183, 0.0
      %v1220 = vmax.f32 %v1186, 0.0
      %v1221 = vpack.c.bf16 %v1190, %v1189
      %v1222 = vpack.c.bf16 %v1192, %v1191
      %v1223 = vpack.c.bf16 %v1194, %v1193
      %v1224 = vpack.c.bf16 %v1196, %v1195
      %v1225 = vpack.c.bf16 %v1198, %v1197
      %v1226 = vpack.c.bf16 %v1200, %v1199
      %v1227 = vpack.c.bf16 %v1202, %v1201
      %v1228 = vpack.c.bf16 %v1204, %v1203
      %v1229 = vpack.c.bf16 %v1206, %v1205
      %v1230 = vpack.c.bf16 %v1208, %v1207
      %v1231 = vpack.c.bf16 %v1210, %v1209
      %v1232 = vpack.c.bf16 %v1212, %v1211
      %v1233 = vpack.c.bf16 %v1214, %v1213
      %v1234 = vpack.c.bf16 %v1216, %v1215
      %v1235 = vpack.c.bf16 %v1218, %v1217
      %v1236 = vpack.c.bf16 %v1220, %v1219
      %v1237 = vld [vmem:[%s7] sm:$0xf]
      %v1238 = vld [vmem:[%s7 + $0x4] sm:$0xf]
      %v1239 = vld [vmem:[%s7 + $0x8] sm:$0xf]
      %v1240 = vld [vmem:[%s7 + $0xc] sm:$0xf]
      %v1241 = vld [vmem:[%s7 + $0x10] sm:$0xf]
      %v1242 = vld [vmem:[%s7 + $0x14] sm:$0xf]
      %v1243 = vld [vmem:[%s7 + $0x18] sm:$0xf]
      %v1244 = vld [vmem:[%s7 + $0x1c] sm:$0xf]
      %v1245 = vld [vmem:[%s7 + $0x20] sm:$0xf]
      %v1246 = vld [vmem:[%s7 + $0x24] sm:$0xf]
      %v1247 = vld [vmem:[%s7 + $0x28] sm:$0xf]
      %v1248 = vld [vmem:[%s7 + $0x2c] sm:$0xf]
      %v1249 = vld [vmem:[%s7 + $0x30] sm:$0xf]
      %v1250 = vld [vmem:[%s7 + $0x34] sm:$0xf]
      %v1251 = vld [vmem:[%s7 + $0x38] sm:$0xf]
      %v1252 = vld [vmem:[%s7 + $0x3c] sm:$0xf]
      %v1253 = vld [vmem:[%s8] sm:$0x1]
      %v1255 = vlaneseq
      %v1256 = vshrl.u32 %v1255, 7
      %v1257 = vsub.s32 0, %v1256
      %v1258 = vrot.slane %v1253, %v1257
      %v1276 = vunpack.c.l.b16 %v1237
      %v1277 = vunpack.c.l.b16 %v1238
      %v1278 = vunpack.c.l.b16 %v1239
      %v1279 = vunpack.c.l.b16 %v1240
      %v1280 = vunpack.c.l.b16 %v1241
      %v1281 = vunpack.c.l.b16 %v1242
      %v1282 = vunpack.c.l.b16 %v1243
      %v1283 = vunpack.c.l.b16 %v1244
      %v1284 = vunpack.c.l.b16 %v1245
      %v1285 = vunpack.c.l.b16 %v1246
      %v1286 = vunpack.c.l.b16 %v1247
      %v1287 = vunpack.c.l.b16 %v1248
      %v1288 = vunpack.c.l.b16 %v1249
      %v1289 = vunpack.c.l.b16 %v1250
      %v1290 = vunpack.c.l.b16 %v1251
      %v1291 = vunpack.c.l.b16 %v1252
      %v1292 = vpack.c.b16 %v1277, %v1276
      %v1293 = vpack.c.b16 %v1279, %v1278
      %v1294 = vpack.c.b16 %v1281, %v1280
      %v1295 = vpack.c.b16 %v1283, %v1282
      %v1296 = vpack.c.b16 %v1285, %v1284
      %v1297 = vpack.c.b16 %v1287, %v1286
      %v1298 = vpack.c.b16 %v1289, %v1288
      %v1299 = vpack.c.b16 %v1291, %v1290
      %1308 = vmatprep.subr.bf16.mxu0 0
      %1309 = vmatpush1.bf16.msra.mxu0 %v1292
      %1310 = vmatprep.subr.bf16.mxu0 0
      %1311 = vmatpush1.bf16.msra.mxu0 %v1293
      %1312 = vmatprep.subr.bf16.mxu0 0
      %1313 = vmatpush1.bf16.msra.mxu0 %v1294
      %1314 = vmatprep.subr.bf16.mxu0 0
      %1315 = vmatpush1.bf16.msra.mxu0 %v1295
      %1316 = vmatprep.subr.bf16.mxu0 0
      %1317 = vmatpush1.bf16.msra.mxu0 %v1296
      %1318 = vmatprep.subr.bf16.mxu0 0
      %1319 = vmatpush1.bf16.msra.mxu0 %v1297
      %1320 = vmatprep.subr.bf16.mxu0 0
      %1321 = vmatpush1.bf16.msra.mxu0 %v1298
      %1322 = vmatprep.subr.bf16.mxu0 0
      %1323 = vmatpush1.bf16.msra.mxu0 %v1299
      %1324 = vmatprep.subr.bf16.mxu0 0
      %1325 = vmatpush1.bf16.msra.mxu0 0
      %1326 = vmatprep.subr.bf16.mxu0 0
      %1327 = vmatpush1.bf16.msra.mxu0 0
      %1328 = vmatprep.subr.bf16.mxu0 0
      %1329 = vmatpush1.bf16.msra.mxu0 0
      %1330 = vmatprep.subr.bf16.mxu0 0
      %1331 = vmatpush1.bf16.msra.mxu0 0
      %1332 = vmatprep.subr.bf16.mxu0 0
      %1333 = vmatpush1.bf16.msra.mxu0 0
      %1334 = vmatprep.subr.bf16.mxu0 0
      %1335 = vmatpush1.bf16.msra.mxu0 0
      %1336 = vmatprep.subr.bf16.mxu0 0
      %1337 = vmatpush1.bf16.msra.mxu0 0
      %1338 = vmatprep.subr.bf16.mxu0 0
      %1339 = vmatpush1.bf16.msra.mxu0 0
      %1340 = vmatprep.mubr.bf16.mxu0 0
      %1341 = vmatmul.mubr.bf16.gmra.mrb[0].mxu0 %v1221
      %v1342 = vpop.f32.mrb[0].mxu0
      %v1343 = vadd.f32 %v1258, %v1342
      %v1344 = vpop.f32.mrb[0].mxu0
      %v1345 = vpop.f32.mrb[0].mxu0
      %v1346 = vadd.f32 %v1258, %v1345
      %v1347 = vpop.f32.mrb[0].mxu0
      %1348 = vmatprep.mubr.bf16.mxu0 0
      %1349 = vmatmul.mubr.bf16.gmra.mrb[0].mxu0 %v1222
      %v1350 = vpop.f32.mrb[0].mxu0
      %v1351 = vadd.f32 %v1258, %v1350
      %v1352 = vpop.f32.mrb[0].mxu0
      %v1353 = vpop.f32.mrb[0].mxu0
      %v1354 = vadd.f32 %v1258, %v1353
      %v1355 = vpop.f32.mrb[0].mxu0
      %1356 = vmatprep.mubr.bf16.mxu0 0
      %1357 = vmatmul.mubr.bf16.gmra.mrb[0].mxu0 %v1223
      %v1358 = vpop.f32.mrb[0].mxu0
      %v1359 = vadd.f32 %v1258, %v1358
      %v1360 = vpop.f32.mrb[0].mxu0
      %v1361 = vpop.f32.mrb[0].mxu0
      %v1362 = vadd.f32 %v1258, %v1361
      %v1363 = vpop.f32.mrb[0].mxu0
      %1364 = vmatprep.mubr.bf16.mxu0 0
      %1365 = vmatmul.mubr.bf16.gmra.mrb[0].mxu0 %v1224
      %v1366 = vpop.f32.mrb[0].mxu0
      %v1367 = vadd.f32 %v1258, %v1366
      %v1368 = vpop.f32.mrb[0].mxu0
      %v1369 = vpop.f32.mrb[0].mxu0
      %v1370 = vadd.f32 %v1258, %v1369
      %v1371 = vpop.f32.mrb[0].mxu0
      %1372 = vmatprep.mubr.bf16.mxu0 0
      %1373 = vmatmul.mubr.bf16.gmra.mrb[0].mxu0 %v1225
      %v1374 = vpop.f32.mrb[0].mxu0
      %v1375 = vadd.f32 %v1258, %v1374
      %v1376 = vpop.f32.mrb[0].mxu0
      %v1377 = vpop.f32.mrb[0].mxu0
      %v1378 = vadd.f32 %v1258, %v1377
      %v1379 = vpop.f32.mrb[0].mxu0
      %1380 = vmatprep.mubr.bf16.mxu0 0
      %1381 = vmatmul.mubr.bf16.gmra.mrb[0].mxu0 %v1226
      %v1382 = vpop.f32.mrb[0].mxu0
      %v1383 = vadd.f32 %v1258, %v1382
      %v1384 = vpop.f32.mrb[0].mxu0
      %v1385 = vpop.f32.mrb[0].mxu0
      %v1386 = vadd.f32 %v1258, %v1385
      %v1387 = vpop.f32.mrb[0].mxu0
      %1388 = vmatprep.mubr.bf16.mxu0 0
      %1389 = vmatmul.mubr.bf16.gmra.mrb[0].mxu0 %v1227
      %v1390 = vpop.f32.mrb[0].mxu0
      %v1391 = vadd.f32 %v1258, %v1390
      %v1392 = vpop.f32.mrb[0].mxu0
      %v1393 = vpop.f32.mrb[0].mxu0
      %v1394 = vadd.f32 %v1258, %v1393
      %v1395 = vpop.f32.mrb[0].mxu0
      %1396 = vmatprep.mubr.bf16.mxu0 0
      %1397 = vmatmul.mubr.bf16.gmra.mrb[0].mxu0 %v1228
      %v1398 = vpop.f32.mrb[0].mxu0
      %v1399 = vadd.f32 %v1258, %v1398
      %v1400 = vpop.f32.mrb[0].mxu0
      %v1401 = vpop.f32.mrb[0].mxu0
      %v1402 = vadd.f32 %v1258, %v1401
      %v1403 = vpop.f32.mrb[0].mxu0
      %1404 = vmatprep.mubr.bf16.mxu0 0
      %1405 = vmatmul.mubr.bf16.gmra.mrb[0].mxu0 %v1229
      %v1406 = vpop.f32.mrb[0].mxu0
      %v1407 = vadd.f32 %v1258, %v1406
      %v1408 = vpop.f32.mrb[0].mxu0
      %v1409 = vpop.f32.mrb[0].mxu0
      %v1410 = vadd.f32 %v1258, %v1409
      %v1411 = vpop.f32.mrb[0].mxu0
      %1412 = vmatprep.mubr.bf16.mxu0 0
      %1413 = vmatmul.mubr.bf16.gmra.mrb[0].mxu0 %v1230
      %v1414 = vpop.f32.mrb[0].mxu0
      %v1415 = vadd.f32 %v1258, %v1414
      %v1416 = vpop.f32.mrb[0].mxu0
      %v1417 = vpop.f32.mrb[0].mxu0
      %v1418 = vadd.f32 %v1258, %v1417
      %v1419 = vpop.f32.mrb[0].mxu0
      %1420 = vmatprep.mubr.bf16.mxu0 0
      %1421 = vmatmul.mubr.bf16.gmra.mrb[0].mxu0 %v1231
      %v1422 = vpop.f32.mrb[0].mxu0
      %v1423 = vadd.f32 %v1258, %v1422
      %v1424 = vpop.f32.mrb[0].mxu0
      %v1425 = vpop.f32.mrb[0].mxu0
      %v1426 = vadd.f32 %v1258, %v1425
      %v1427 = vpop.f32.mrb[0].mxu0
      %1428 = vmatprep.mubr.bf16.mxu0 0
      %1429 = vmatmul.mubr.bf16.gmra.mrb[0].mxu0 %v1232
      %v1430 = vpop.f32.mrb[0].mxu0
      %v1431 = vadd.f32 %v1258, %v1430
      %v1432 = vpop.f32.mrb[0].mxu0
      %v1433 = vpop.f32.mrb[0].mxu0
      %v1434 = vadd.f32 %v1258, %v1433
      %v1435 = vpop.f32.mrb[0].mxu0
      %1436 = vmatprep.mubr.bf16.mxu0 0
      %1437 = vmatmul.mubr.bf16.gmra.mrb[0].mxu0 %v1233
      %v1438 = vpop.f32.mrb[0].mxu0
      %v1439 = vadd.f32 %v1258, %v1438
      %v1440 = vpop.f32.mrb[0].mxu0
      %v1441 = vpop.f32.mrb[0].mxu0
      %v1442 = vadd.f32 %v1258, %v1441
      %v1443 = vpop.f32.mrb[0].mxu0
      %1444 = vmatprep.mubr.bf16.mxu0 0
      %1445 = vmatmul.mubr.bf16.gmra.mrb[0].mxu0 %v1234
      %v1446 = vpop.f32.mrb[0].mxu0
      %v1447 = vadd.f32 %v1258, %v1446
      %v1448 = vpop.f32.mrb[0].mxu0
      %v1449 = vpop.f32.mrb[0].mxu0
      %v1450 = vadd.f32 %v1258, %v1449
      %v1451 = vpop.f32.mrb[0].mxu0
      %1452 = vmatprep.mubr.bf16.mxu0 0
      %1453 = vmatmul.mubr.bf16.gmra.mrb[0].mxu0 %v1235
      %v1454 = vpop.f32.mrb[0].mxu0
      %v1455 = vadd.f32 %v1258, %v1454
      %v1456 = vpop.f32.mrb[0].mxu0
      %v1457 = vpop.f32.mrb[0].mxu0
      %v1458 = vadd.f32 %v1258, %v1457
      %v1459 = vpop.f32.mrb[0].mxu0
      %1460 = vmatprep.mubr.bf16.mxu0 0
      %1461 = vmatmul.mubr.bf16.gmra.mrb[0].mxu0 %v1236
      %v1462 = vpop.f32.mrb[0].mxu0
      %v1463 = vadd.f32 %v1258, %v1462
      %v1464 = vpop.f32.mrb[0].mxu0
      %v1465 = vpop.f32.mrb[0].mxu0
      %v1466 = vadd.f32 %v1258, %v1465
      %v1467 = vpop.f32.mrb[0].mxu0
      %1468 = vdwg.mxu0
      %v1469 = vmax.f32 %v1343, 0.0
      %v1470 = vmax.f32 %v1346, 0.0
      %v1471 = vmax.f32 %v1351, 0.0
      %v1472 = vmax.f32 %v1354, 0.0
      %v1473 = vmax.f32 %v1359, 0.0
      %v1474 = vmax.f32 %v1362, 0.0
      %v1475 = vmax.f32 %v1367, 0.0
      %v1476 = vmax.f32 %v1370, 0.0
      %v1477 = vmax.f32 %v1375, 0.0
      %v1478 = vmax.f32 %v1378, 0.0
      %v1479 = vmax.f32 %v1383, 0.0
      %v1480 = vmax.f32 %v1386, 0.0
      %v1481 = vmax.f32 %v1391, 0.0
      %v1482 = vmax.f32 %v1394, 0.0
      %v1483 = vmax.f32 %v1399, 0.0
      %v1484 = vmax.f32 %v1402, 0.0
      %v1485 = vmax.f32 %v1407, 0.0
      %v1486 = vmax.f32 %v1410, 0.0
      %v1487 = vmax.f32 %v1415, 0.0
      %v1488 = vmax.f32 %v1418, 0.0
      %v1489 = vmax.f32 %v1423, 0.0
      %v1490 = vmax.f32 %v1426, 0.0
      %v1491 = vmax.f32 %v1431, 0.0
      %v1492 = vmax.f32 %v1434, 0.0
      %v1493 = vmax.f32 %v1439, 0.0
      %v1494 = vmax.f32 %v1442, 0.0
      %v1495 = vmax.f32 %v1447, 0.0
      %v1496 = vmax.f32 %v1450, 0.0
      %v1497 = vmax.f32 %v1455, 0.0
      %v1498 = vmax.f32 %v1458, 0.0
      %v1499 = vmax.f32 %v1463, 0.0
      %v1500 = vmax.f32 %v1466, 0.0
      %v1501 = vpack.c.bf16 %v1470, %v1469
      %v1502 = vpack.c.bf16 %v1472, %v1471
      %v1503 = vpack.c.bf16 %v1474, %v1473
      %v1504 = vpack.c.bf16 %v1476, %v1475
      %v1505 = vpack.c.bf16 %v1478, %v1477
      %v1506 = vpack.c.bf16 %v1480, %v1479
      %v1507 = vpack.c.bf16 %v1482, %v1481
      %v1508 = vpack.c.bf16 %v1484, %v1483
      %v1509 = vpack.c.bf16 %v1486, %v1485
      %v1510 = vpack.c.bf16 %v1488, %v1487
      %v1511 = vpack.c.bf16 %v1490, %v1489
      %v1512 = vpack.c.bf16 %v1492, %v1491
      %v1513 = vpack.c.bf16 %v1494, %v1493
      %v1514 = vpack.c.bf16 %v1496, %v1495
      %v1515 = vpack.c.bf16 %v1498, %v1497
      %v1516 = vpack.c.bf16 %v1500, %v1499
      %v1517 = vld [vmem:[%s9] sm:$0xf]
      %v1518 = vld [vmem:[%s9 + $0x4] sm:$0xf]
      %v1519 = vld [vmem:[%s9 + $0x8] sm:$0xf]
      %v1520 = vld [vmem:[%s9 + $0xc] sm:$0xf]
      %v1521 = vld [vmem:[%s9 + $0x10] sm:$0xf]
      %v1522 = vld [vmem:[%s9 + $0x14] sm:$0xf]
      %v1523 = vld [vmem:[%s9 + $0x18] sm:$0xf]
      %v1524 = vld [vmem:[%s9 + $0x1c] sm:$0xf]
      %v1525 = vld [vmem:[%s9 + $0x20] sm:$0xf]
      %v1526 = vld [vmem:[%s9 + $0x24] sm:$0xf]
      %v1527 = vld [vmem:[%s9 + $0x28] sm:$0xf]
      %v1528 = vld [vmem:[%s9 + $0x2c] sm:$0xf]
      %v1529 = vld [vmem:[%s9 + $0x30] sm:$0xf]
      %v1530 = vld [vmem:[%s9 + $0x34] sm:$0xf]
      %v1531 = vld [vmem:[%s9 + $0x38] sm:$0xf]
      %v1532 = vld [vmem:[%s9 + $0x3c] sm:$0xf]
      %v1533 = vld [vmem:[%s10] sm:$0x1]
      %v1535 = vlaneseq
      %v1536 = vshrl.u32 %v1535, 7
      %v1537 = vsub.s32 0, %v1536
      %v1538 = vrot.slane %v1533, %v1537
      %v1556 = vunpack.c.l.b16 %v1517
      %v1557 = vunpack.c.l.b16 %v1518
      %v1558 = vunpack.c.l.b16 %v1519
      %v1559 = vunpack.c.l.b16 %v1520
      %v1560 = vunpack.c.l.b16 %v1521
      %v1561 = vunpack.c.l.b16 %v1522
      %v1562 = vunpack.c.l.b16 %v1523
      %v1563 = vunpack.c.l.b16 %v1524
      %v1564 = vunpack.c.l.b16 %v1525
      %v1565 = vunpack.c.l.b16 %v1526
      %v1566 = vunpack.c.l.b16 %v1527
      %v1567 = vunpack.c.l.b16 %v1528
      %v1568 = vunpack.c.l.b16 %v1529
      %v1569 = vunpack.c.l.b16 %v1530
      %v1570 = vunpack.c.l.b16 %v1531
      %v1571 = vunpack.c.l.b16 %v1532
      %v1572 = vpack.c.b16 %v1557, %v1556
      %v1573 = vpack.c.b16 %v1559, %v1558
      %v1574 = vpack.c.b16 %v1561, %v1560
      %v1575 = vpack.c.b16 %v1563, %v1562
      %v1576 = vpack.c.b16 %v1565, %v1564
      %v1577 = vpack.c.b16 %v1567, %v1566
      %v1578 = vpack.c.b16 %v1569, %v1568
      %v1579 = vpack.c.b16 %v1571, %v1570
      %1588 = vmatprep.subr.bf16.mxu0 0
      %1589 = vmatpush1.bf16.msra.mxu0 %v1572
      %1590 = vmatprep.subr.bf16.mxu0 0
      %1591 = vmatpush1.bf16.msra.mxu0 %v1573
      %1592 = vmatprep.subr.bf16.mxu0 0
      %1593 = vmatpush1.bf16.msra.mxu0 %v1574
      %1594 = vmatprep.subr.bf16.mxu0 0
      %1595 = vmatpush1.bf16.msra.mxu0 %v1575
      %1596 = vmatprep.subr.bf16.mxu0 0
      %1597 = vmatpush1.bf16.msra.mxu0 %v1576
      %1598 = vmatprep.subr.bf16.mxu0 0
      %1599 = vmatpush1.bf16.msra.mxu0 %v1577
      %1600 = vmatprep.subr.bf16.mxu0 0
      %1601 = vmatpush1.bf16.msra.mxu0 %v1578
      %1602 = vmatprep.subr.bf16.mxu0 0
      %1603 = vmatpush1.bf16.msra.mxu0 %v1579
      %1604 = vmatprep.subr.bf16.mxu0 0
      %1605 = vmatpush1.bf16.msra.mxu0 0
      %1606 = vmatprep.subr.bf16.mxu0 0
      %1607 = vmatpush1.bf16.msra.mxu0 0
      %1608 = vmatprep.subr.bf16.mxu0 0
      %1609 = vmatpush1.bf16.msra.mxu0 0
      %1610 = vmatprep.subr.bf16.mxu0 0
      %1611 = vmatpush1.bf16.msra.mxu0 0
      %1612 = vmatprep.subr.bf16.mxu0 0
      %1613 = vmatpush1.bf16.msra.mxu0 0
      %1614 = vmatprep.subr.bf16.mxu0 0
      %1615 = vmatpush1.bf16.msra.mxu0 0
      %1616 = vmatprep.subr.bf16.mxu0 0
      %1617 = vmatpush1.bf16.msra.mxu0 0
      %1618 = vmatprep.subr.bf16.mxu0 0
      %1619 = vmatpush1.bf16.msra.mxu0 0
      %1620 = vmatprep.mubr.bf16.mxu0 0
      %1621 = vmatmul.mubr.bf16.gmra.mrb[0].mxu0 %v1501
      %v1622 = vpop.f32.mrb[0].mxu0
      %v1623 = vadd.f32 %v1538, %v1622
      %v1624 = vpop.f32.mrb[0].mxu0
      %v1625 = vpop.f32.mrb[0].mxu0
      %v1626 = vadd.f32 %v1538, %v1625
      %v1627 = vpop.f32.mrb[0].mxu0
      %1628 = vmatprep.mubr.bf16.mxu0 0
      %1629 = vmatmul.mubr.bf16.gmra.mrb[0].mxu0 %v1502
      %v1630 = vpop.f32.mrb[0].mxu0
      %v1631 = vadd.f32 %v1538, %v1630
      %v1632 = vpop.f32.mrb[0].mxu0
      %v1633 = vpop.f32.mrb[0].mxu0
      %v1634 = vadd.f32 %v1538, %v1633
      %v1635 = vpop.f32.mrb[0].mxu0
      %1636 = vmatprep.mubr.bf16.mxu0 0
      %1637 = vmatmul.mubr.bf16.gmra.mrb[0].mxu0 %v1503
      %v1638 = vpop.f32.mrb[0].mxu0
      %v1639 = vadd.f32 %v1538, %v1638
      %v1640 = vpop.f32.mrb[0].mxu0
      %v1641 = vpop.f32.mrb[0].mxu0
      %v1642 = vadd.f32 %v1538, %v1641
      %v1643 = vpop.f32.mrb[0].mxu0
      %1644 = vmatprep.mubr.bf16.mxu0 0
      %1645 = vmatmul.mubr.bf16.gmra.mrb[0].mxu0 %v1504
      %v1646 = vpop.f32.mrb[0].mxu0
      %v1647 = vadd.f32 %v1538, %v1646
      %v1648 = vpop.f32.mrb[0].mxu0
      %v1649 = vpop.f32.mrb[0].mxu0
      %v1650 = vadd.f32 %v1538, %v1649
      %v1651 = vpop.f32.mrb[0].mxu0
      %1652 = vmatprep.mubr.bf16.mxu0 0
      %1653 = vmatmul.mubr.bf16.gmra.mrb[0].mxu0 %v1505
      %v1654 = vpop.f32.mrb[0].mxu0
      %v1655 = vadd.f32 %v1538, %v1654
      %v1656 = vpop.f32.mrb[0].mxu0
      %v1657 = vpop.f32.mrb[0].mxu0
      %v1658 = vadd.f32 %v1538, %v1657
      %v1659 = vpop.f32.mrb[0].mxu0
      %1660 = vmatprep.mubr.bf16.mxu0 0
      %1661 = vmatmul.mubr.bf16.gmra.mrb[0].mxu0 %v1506
      %v1662 = vpop.f32.mrb[0].mxu0
      %v1663 = vadd.f32 %v1538, %v1662
      %v1664 = vpop.f32.mrb[0].mxu0
      %v1665 = vpop.f32.mrb[0].mxu0
      %v1666 = vadd.f32 %v1538, %v1665
      %v1667 = vpop.f32.mrb[0].mxu0
      %1668 = vmatprep.mubr.bf16.mxu0 0
      %1669 = vmatmul.mubr.bf16.gmra.mrb[0].mxu0 %v1507
      %v1670 = vpop.f32.mrb[0].mxu0
      %v1671 = vadd.f32 %v1538, %v1670
      %v1672 = vpop.f32.mrb[0].mxu0
      %v1673 = vpop.f32.mrb[0].mxu0
      %v1674 = vadd.f32 %v1538, %v1673
      %v1675 = vpop.f32.mrb[0].mxu0
      %1676 = vmatprep.mubr.bf16.mxu0 0
      %1677 = vmatmul.mubr.bf16.gmra.mrb[0].mxu0 %v1508
      %v1678 = vpop.f32.mrb[0].mxu0
      %v1679 = vadd.f32 %v1538, %v1678
      %v1680 = vpop.f32.mrb[0].mxu0
      %v1681 = vpop.f32.mrb[0].mxu0
      %v1682 = vadd.f32 %v1538, %v1681
      %v1683 = vpop.f32.mrb[0].mxu0
      %1684 = vmatprep.mubr.bf16.mxu0 0
      %1685 = vmatmul.mubr.bf16.gmra.mrb[0].mxu0 %v1509
      %v1686 = vpop.f32.mrb[0].mxu0
      %v1687 = vadd.f32 %v1538, %v1686
      %v1688 = vpop.f32.mrb[0].mxu0
      %v1689 = vpop.f32.mrb[0].mxu0
      %v1690 = vadd.f32 %v1538, %v1689
      %v1691 = vpop.f32.mrb[0].mxu0
      %1692 = vmatprep.mubr.bf16.mxu0 0
      %1693 = vmatmul.mubr.bf16.gmra.mrb[0].mxu0 %v1510
      %v1694 = vpop.f32.mrb[0].mxu0
      %v1695 = vadd.f32 %v1538, %v1694
      %v1696 = vpop.f32.mrb[0].mxu0
      %v1697 = vpop.f32.mrb[0].mxu0
      %v1698 = vadd.f32 %v1538, %v1697
      %v1699 = vpop.f32.mrb[0].mxu0
      %1700 = vmatprep.mubr.bf16.mxu0 0
      %1701 = vmatmul.mubr.bf16.gmra.mrb[0].mxu0 %v1511
      %v1702 = vpop.f32.mrb[0].mxu0
      %v1703 = vadd.f32 %v1538, %v1702
      %v1704 = vpop.f32.mrb[0].mxu0
      %v1705 = vpop.f32.mrb[0].mxu0
      %v1706 = vadd.f32 %v1538, %v1705
      %v1707 = vpop.f32.mrb[0].mxu0
      %1708 = vmatprep.mubr.bf16.mxu0 0
      %1709 = vmatmul.mubr.bf16.gmra.mrb[0].mxu0 %v1512
      %v1710 = vpop.f32.mrb[0].mxu0
      %v1711 = vadd.f32 %v1538, %v1710
      %v1712 = vpop.f32.mrb[0].mxu0
      %v1713 = vpop.f32.mrb[0].mxu0
      %v1714 = vadd.f32 %v1538, %v1713
      %v1715 = vpop.f32.mrb[0].mxu0
      %1716 = vmatprep.mubr.bf16.mxu0 0
      %1717 = vmatmul.mubr.bf16.gmra.mrb[0].mxu0 %v1513
      %v1718 = vpop.f32.mrb[0].mxu0
      %v1719 = vadd.f32 %v1538, %v1718
      %v1720 = vpop.f32.mrb[0].mxu0
      %v1721 = vpop.f32.mrb[0].mxu0
      %v1722 = vadd.f32 %v1538, %v1721
      %v1723 = vpop.f32.mrb[0].mxu0
      %1724 = vmatprep.mubr.bf16.mxu0 0
      %1725 = vmatmul.mubr.bf16.gmra.mrb[0].mxu0 %v1514
      %v1726 = vpop.f32.mrb[0].mxu0
      %v1727 = vadd.f32 %v1538, %v1726
      %v1728 = vpop.f32.mrb[0].mxu0
      %v1729 = vpop.f32.mrb[0].mxu0
      %v1730 = vadd.f32 %v1538, %v1729
      %v1731 = vpop.f32.mrb[0].mxu0
      %1732 = vmatprep.mubr.bf16.mxu0 0
      %1733 = vmatmul.mubr.bf16.gmra.mrb[0].mxu0 %v1515
      %v1734 = vpop.f32.mrb[0].mxu0
      %v1735 = vadd.f32 %v1538, %v1734
      %v1736 = vpop.f32.mrb[0].mxu0
      %v1737 = vpop.f32.mrb[0].mxu0
      %v1738 = vadd.f32 %v1538, %v1737
      %v1739 = vpop.f32.mrb[0].mxu0
      %1740 = vmatprep.mubr.bf16.mxu0 0
      %1741 = vmatmul.mubr.bf16.gmra.mrb[0].mxu0 %v1516
      %v1742 = vpop.f32.mrb[0].mxu0
      %v1743 = vadd.f32 %v1538, %v1742
      %v1744 = vpop.f32.mrb[0].mxu0
      %v1745 = vpop.f32.mrb[0].mxu0
      %v1746 = vadd.f32 %v1538, %v1745
      %v1747 = vpop.f32.mrb[0].mxu0
      %1748 = vdwg.mxu0
      %1749 = vst [vmem:[%s474] sm:$0xff] %v1623
      %1750 = vst [vmem:[%s474 + $0x8] sm:$0xff] %v1626
      %1751 = vst [vmem:[%s474 + $0x10] sm:$0xff] %v1631
      %1752 = vst [vmem:[%s474 + $0x18] sm:$0xff] %v1634
      %1753 = vst [vmem:[%s474 + $0x20] sm:$0xff] %v1639
      %1754 = vst [vmem:[%s474 + $0x28] sm:$0xff] %v1642
      %1755 = vst [vmem:[%s474 + $0x30] sm:$0xff] %v1647
      %1756 = vst [vmem:[%s474 + $0x38] sm:$0xff] %v1650
      %1757 = vst [vmem:[%s474 + $0x40] sm:$0xff] %v1655
      %1758 = vst [vmem:[%s474 + $0x48] sm:$0xff] %v1658
      %1759 = vst [vmem:[%s474 + $0x50] sm:$0xff] %v1663
      %1760 = vst [vmem:[%s474 + $0x58] sm:$0xff] %v1666
      %1761 = vst [vmem:[%s474 + $0x60] sm:$0xff] %v1671
      %1762 = vst [vmem:[%s474 + $0x68] sm:$0xff] %v1674
      %1763 = vst [vmem:[%s474 + $0x70] sm:$0xff] %v1679
      %1764 = vst [vmem:[%s474 + $0x78] sm:$0xff] %v1682
      %1765 = vst [vmem:[%s474 + $0x80] sm:$0xff] %v1687
      %1766 = vst [vmem:[%s474 + $0x88] sm:$0xff] %v1690
      %1767 = vst [vmem:[%s474 + $0x90] sm:$0xff] %v1695
      %1768 = vst [vmem:[%s474 + $0x98] sm:$0xff] %v1698
      %1769 = vst [vmem:[%s474 + $0xa0] sm:$0xff] %v1703
      %1770 = vst [vmem:[%s474 + $0xa8] sm:$0xff] %v1706
      %1771 = vst [vmem:[%s474 + $0xb0] sm:$0xff] %v1711
      %1772 = vst [vmem:[%s474 + $0xb8] sm:$0xff] %v1714
      %1773 = vst [vmem:[%s474 + $0xc0] sm:$0xff] %v1719
      %1774 = vst [vmem:[%s474 + $0xc8] sm:$0xff] %v1722
      %1775 = vst [vmem:[%s474 + $0xd0] sm:$0xff] %v1727
      %1776 = vst [vmem:[%s474 + $0xd8] sm:$0xff] %v1730
      %1777 = vst [vmem:[%s474 + $0xe0] sm:$0xff] %v1735
      %1778 = vst [vmem:[%s474 + $0xe8] sm:$0xff] %v1738
      %1779 = vst [vmem:[%s474 + $0xf0] sm:$0xff] %v1743
      %1780 = vst [vmem:[%s474 + $0xf8] sm:$0xff] %v1746
      %s1781 = smul.u32 32, %s27
      %p1782 = scmp.lt.s32.totalorder %s26, 1
      %s1783 = scalar_select %p1782, %s26, 1
      %p1784 = scmp.lt.s32.totalorder %s1781, 31
      %s1785 = scalar_select %p1784, %s1781, 31
      %s1786 = smul.addr %s1783, 32
      %s1787 = sadd.s32 %s1785, %s1786
      %s1788 = smul.addr %s1787, 8
      %s1789 = scalar_lea.vmem %s11, %s1788
      // Predicated region
      $region65: #{transt_forward.3} parent=63 // pred_check
        %p1790 = pneg %p304
      $region66: #{transt_forward.3} parent=63 // pred_check_branch
        %1792 = sbr.rel (%p1790) target = $region68
      $region67: #{transt_forward.3} parent=63 // pred_region
        %s1793 = smul.u32 32, %s27
      $region68: #{transt_forward.3} parent=63 // pred_fallthru
        _
    $region64: #{transt_forward.3} parent=5 // pred_fallthru
      _
    %p1794 = scmp.le.s32.totalorder 2, %s17
    // Predicated region
    $region69: #{transt_forward.3} parent=5 // pred_check
      %p1795 = pneg %p1794
    $region70: #{transt_forward.3} parent=5 // pred_check_branch
      %1797 = sbr.rel (%p1795) target = $region72
    $region71: #{transt_forward.3} parent=5 // pred_region
      %s1798 = ssub.s32 %s17, 2
      // Predicated region
      $region73: #{transt_forward.3} parent=71 // pred_check
        %p1799 = pneg %p310
      $region74: #{transt_forward.3} parent=71 // pred_check_branch
        %1801 = sbr.rel (%p1799) target = $region76
      $region75: #{transt_forward.3} parent=71 // pred_region
        %s1802 = smul.u32 32, %s29
        %p1803 = scmp.lt.s32.totalorder %s28, 1
        %s1804 = scalar_select %p1803, %s28, 1
        %p1805 = scmp.lt.s32.totalorder %s1802, 31
        %s1806 = scalar_select %p1805, %s1802, 31
        %s1807 = smul.addr %s1804, 32
        %s1808 = sadd.s32 %s1806, %s1807
        %s1809 = smul.addr %s1808, 8
        %s1810 = scalar_lea.vmem %s11, %s1809
      $region76: #{transt_forward.3} parent=71 // pred_fallthru
        _
    $region72: #{transt_forward.3} parent=5 // pred_fallthru
      _
  $region6: #{transt_forward.3} parent=0 // loop_footer
    %s21 = sadd.s32 1, %s17
  $region7: #{transt_forward.3} parent=0 // loop_footer_branch
    %16 = sbr.rel target = $region3
  $region8: #{transt_forward.3} parent=0 // loop_exit
    _

</llo_original>
